<compile_context>
chip_gen: v5e
topology: v5e:2x2
jax: 0.10.0
libtpu: 0.0.40
codegen_flags: <defaults>
</compile_context>

<pallas_src>
import functools
import numpy as np

import jax
import jax.numpy as jnp
from jax.experimental import pallas as pl
from jax.experimental.pallas import tpu as pltpu

SQRT_HALF = 0.7071067811865476


def _gelu(v):
    # tanh-approximate GELU: lowers to the EUP (its own VLIW slot, idle in
    # this kernel) instead of a multi-instruction erf polynomial on the VPU.
    return jax.nn.gelu(v, approximate=True)


def _gelu_exact(v):
    # exact erf-based GELU (torch.nn.GELU default) — reference only
    return 0.5 * v * (1.0 + jax.lax.erf(v * SQRT_HALF))


def _relu(v):
    return jnp.maximum(v, 0.0)


def _mm(a, w_bf16):
    # MXU matmul: bf16 operands (native on v6e/v7x), f32 accumulation.
    # Elementwise math before/after stays in f32 (v5e VPU/EUP are f32-only).
    return jnp.dot(a.astype(jnp.bfloat16), w_bf16,
                   preferred_element_type=jnp.float32)


def _lin(v, w, b):
    return jnp.dot(v, w, preferred_element_type=jnp.float32) + b


# ----------------------------------------------------------------------------
# Pallas kernel: one batch sample per grid step (grid = (B,), "parallel").
# ----------------------------------------------------------------------------
def action_recog_kernel(T, N, C,
                        xb_ref, px_ref, py_ref, pz_ref,
                        wb_ref, bb_ref,
                        wpos0_ref, wpos1_ref, wpos2_ref, bpos_ref,
                        w0f_ref, b0f_ref, w1f_ref, b1f_ref, wsf_ref,
                        w0t_ref, w0b_ref, b0_ref, w1_ref, b1_ref,
                        wst_ref, wsb_ref,
                        wfcc_ref, bfcc_ref,
                        wlin_ref, blin_ref,
                        wfin_ref, bfin_ref,
                        pred_ref, fseq_ref):
    TN = T * N

    xb = xb_ref[0]          # (T, 144)
    px = px_ref[0]          # (TN, 1)
    py = py_ref[0]          # (TN, 1)
    pz = pz_ref[0]          # (TN, 1)

    # --- fused body embeddings: single (T,144)x(144,2C) MXU op --------------
    b12 = _gelu(_mm(xb, wb_ref[...]) + bb_ref[...])                 # (T, 2C)
    body = b12[:, :C] + b12[:, C:]                                  # gelu(b1)+gelu(b2)

    # --- ResnetPointnet object embedding -------------------------------------
    # fc_pos: K=3 contraction done as three VPU multiply-adds (MXU would waste
    # ~98% of its K depth and still pay the push/pop latency).
    net = (px * wpos0_ref[...] +
           py * wpos1_ref[...] +
           pz * wpos2_ref[...] + bpos_ref[...])                     # (TN, 2C)

    # block 0: ResnetBlockFC(2C -> C), plain (no concat input)
    h = _mm(_relu(net), w0f_ref[...]) + b0f_ref[...]
    dx = _mm(_relu(h), w1f_ref[...]) + b1f_ref[...]
    net = _mm(net, wsf_ref[...]) + dx                               # (TN, C)

    def pool_max(v):
        # (TN,C)->(T,C).  N == 8, so the reshape splits the sublane axis on
        # 8-row tile boundaries (layout preserving); the reduce is an XLU
        # sublane max.
        return jnp.max(v.reshape(T, N, C), axis=1)

    def bcast_rows(v):
        # (T,C)->(TN,C), each row repeated N times.  Only small *results*
        # are ever broadcast — matmuls run on the un-broadcast (T,C) data.
        return jnp.broadcast_to(v.reshape(T, 1, C), (T, N, C)).reshape(TN, C)

    # blocks 1..4: concat([net, pooled]) @ W replaced by split matmuls:
    #   top half on the (TN,C) per-point rows, bottom half on the (T,C)
    #   pooled rows (8x fewer FLOPs, no lane concat, no pre-matmul broadcast).
    for i in range(4):
        pooled = pool_max(net)                                      # (T, C)
        h = (_mm(_relu(net), w0t_ref[i]) +
             bcast_rows(_mm(_relu(pooled), w0b_ref[i])) + b0_ref[i])
        dx = _mm(_relu(h), w1_ref[i]) + b1_ref[i]
        net = (_mm(net, wst_ref[i]) +
               bcast_rows(_mm(pooled, wsb_ref[i])) + dx)            # (TN, C)

    pooled = pool_max(net)                                          # (T, C)
    obj = _gelu(_mm(_relu(pooled), wfcc_ref[...]) + bfcc_ref[...])  # (T, C)

    # --- fusion + MLP head (wlin loaded once, reused for both matmuls) ------
    emb = body + obj                                                # (T, C)
    wlin = wlin_ref[...]
    blin = blin_ref[...]
    e2 = _gelu(_mm(emb, wlin) + blin)
    e4 = _gelu(_mm(e2, wlin) + blin)                                # (T, C)
    f_seq = jnp.max(e4, axis=0, keepdims=True)                      # (1, C)
    pred = _gelu(_mm(f_seq, wfin_ref[...]) + bfin_ref[...])         # (1, 9)

    fseq_ref[0] = f_seq
    pred_ref[0] = pred


# ----------------------------------------------------------------------------
# Parameter preparation: fuse / split / bf16-cast the "PyTorch-like" params.
# ----------------------------------------------------------------------------
def prepare_kernel_params(p, C):
    bf16 = jnp.bfloat16
    kp = {}

    # fused body-embedding weight: block-diagonal (144, 2C)
    wb = jnp.zeros((144, 2 * C), jnp.float32)
    wb = wb.at[:72, :C].set(p['wb1'])
    wb = wb.at[72:, C:].set(p['wb2'])
    kp['wb'] = wb.astype(bf16)
    kp['bb'] = jnp.concatenate([p['bb1'], p['bb2']], axis=1)        # (1, 2C) f32

    # fc_pos rows kept f32 (VPU path), passed separately to avoid sublane slices
    kp['wpos0'] = p['wpos'][0:1, :]
    kp['wpos1'] = p['wpos'][1:2, :]
    kp['wpos2'] = p['wpos'][2:3, :]
    kp['bpos'] = p['bpos']

    # resblock 0 (full 2C input)
    kp['w0f'] = p['blk_w0'][0].astype(bf16)
    kp['b0f'] = p['blk_b0'][0]
    kp['w1f'] = p['blk_w1'][0].astype(bf16)
    kp['b1f'] = p['blk_b1'][0]
    kp['wsf'] = p['blk_ws'][0].astype(bf16)

    # resblocks 1..4: split (2C,C) weights into net-half (top) / pooled-half (bottom)
    kp['w0t'] = p['blk_w0'][1:, :C, :].astype(bf16)
    kp['w0b'] = p['blk_w0'][1:, C:, :].astype(bf16)
    kp['b0'] = p['blk_b0'][1:]
    kp['w1'] = p['blk_w1'][1:].astype(bf16)
    kp['b1'] = p['blk_b1'][1:]
    kp['wst'] = p['blk_ws'][1:, :C, :].astype(bf16)
    kp['wsb'] = p['blk_ws'][1:, C:, :].astype(bf16)

    kp['wfcc'] = p['wfcc'].astype(bf16)
    kp['bfcc'] = p['bfcc']
    kp['wlin'] = p['wlin'].astype(bf16)
    kp['blin'] = p['blin']
    kp['wfin'] = p['wfin'].astype(bf16)
    kp['bfin'] = p['bfin']
    return kp


# ----------------------------------------------------------------------------
# Wrapper: plain-JAX glue (slicing / reshapes / param prep) + pallas_call
# ----------------------------------------------------------------------------
def action_recog_forward(x, params, B, T, N, C):
    kp = prepare_kernel_params(params, C)

    xb = x[:, :, :144]                                   # (B, T, 144)
    pts = x[:, :, 144:].reshape(B, T * N, 3)             # (B, TN, 3)
    px, py, pz = pts[:, :, 0:1], pts[:, :, 1:2], pts[:, :, 2:3]

    args = (xb, px, py, pz,
            kp['wb'], kp['bb'],
            kp['wpos0'], kp['wpos1'], kp['wpos2'], kp['bpos'],
            kp['w0f'], kp['b0f'], kp['w1f'], kp['b1f'], kp['wsf'],
            kp['w0t'], kp['w0b'], kp['b0'], kp['w1'], kp['b1'],
            kp['wst'], kp['wsb'],
            kp['wfcc'], kp['bfcc'],
            kp['wlin'], kp['blin'],
            kp['wfin'], kp['bfin'])

    # Whole-array VMEM residency for weights (constant block index across the
    # batch grid -> fetched once); per-sample blocks for data and outputs.
    vmem = pl.BlockSpec(memory_space=pltpu.MemorySpace.VMEM)

    def per_sample(shape):
        return pl.BlockSpec((1,) + shape, lambda b: (b,) + (0,) * len(shape))

    in_specs = ([per_sample((T, 144)),
                 per_sample((T * N, 1)),
                 per_sample((T * N, 1)),
                 per_sample((T * N, 1))]
                + [vmem] * 24)

    out_specs = (pl.BlockSpec((1, 1, 9), lambda b: (b, 0, 0)),
                 pl.BlockSpec((1, 1, C), lambda b: (b, 0, 0)))

    kernel = functools.partial(action_recog_kernel, T, N, C)
    pred3, fseq3 = pl.pallas_call(
        kernel,
        grid=(B,),
        out_shape=(jax.ShapeDtypeStruct((B, 1, 9), jnp.float32),
                   jax.ShapeDtypeStruct((B, 1, C), jnp.float32)),
        in_specs=in_specs,
        out_specs=out_specs,
        compiler_params=pltpu.CompilerParams(
            dimension_semantics=("parallel",)),
    )(*args)
    return pred3[:, 0, :], fseq3[:, 0, :]


# ----------------------------------------------------------------------------
# Pure-JAX f32 reference (exact erf-GELU, unfused math) for correctness check
# ----------------------------------------------------------------------------
def reference_forward(x, p, B, T, N, C):
    BT = B * T
    xb1 = x[:, :, :72].reshape(BT, 72)
    xb2 = x[:, :, 72:144].reshape(BT, 72)
    pts = x[:, :, 144:].reshape(BT * N, 3)

    body1 = _gelu_exact(_lin(xb1, p['wb1'], p['bb1']))
    body2 = _gelu_exact(_lin(xb2, p['wb2'], p['bb2']))

    net = _lin(pts, p['wpos'], p['bpos'])

    def resblock(v, i):
        h = _lin(_relu(v), p['blk_w0'][i], p['blk_b0'][i])
        dx = _lin(_relu(h), p['blk_w1'][i], p['blk_b1'][i])
        return jnp.dot(v, p['blk_ws'][i]) + dx

    net = resblock(net, 0)
    for i in range(1, 5):
        pooled = jnp.broadcast_to(
            jnp.max(net.reshape(BT, N, C), axis=1, keepdims=True),
            (BT, N, C)).reshape(BT * N, C)
        net = jnp.concatenate([net, pooled], axis=1)
        net = resblock(net, i)

    pooled = jnp.max(net.reshape(BT, N, C), axis=1)
    obj = _gelu_exact(_lin(_relu(pooled), p['wfcc'], p['bfcc']))

    emb = body1 + body2 + obj
    e2 = _gelu_exact(_lin(emb, p['wlin'], p['blin']))
    e4 = _gelu_exact(_lin(e2, p['wlin'], p['blin']))
    f_seq = jnp.max(e4.reshape(B, T, C), axis=1)
    pred = _gelu_exact(_lin(f_seq, p['wfin'], p['bfin']))
    return pred, f_seq


def init_params(key, C):
    def dense(k, shape):
        return jax.random.normal(k, shape, jnp.float32) * 0.05

    ks = jax.random.split(key, 17)
    p = {}
    p['wb1'] = dense(ks[0], (72, C));        p['bb1'] = dense(ks[1], (1, C))
    p['wb2'] = dense(ks[2], (72, C));        p['bb2'] = dense(ks[3], (1, C))
    p['wpos'] = dense(ks[4], (3, 2 * C));    p['bpos'] = dense(ks[5], (1, 2 * C))
    p['blk_w0'] = dense(ks[6], (5, 2 * C, C)); p['blk_b0'] = dense(ks[7], (5, 1, C))
    p['blk_w1'] = dense(ks[8], (5, C, C));     p['blk_b1'] = dense(ks[9], (5, 1, C))
    p['blk_ws'] = dense(ks[10], (5, 2 * C, C))
    p['wfcc'] = dense(ks[11], (C, C));       p['bfcc'] = dense(ks[12], (1, C))
    p['wlin'] = dense(ks[13], (C, C));       p['blin'] = dense(ks[14], (1, C))
    p['wfin'] = dense(ks[15], (C, 9));       p['bfin'] = dense(ks[16], (1, 9))
    return p


if __name__ == "__main__":
    B, T, N, C = 2, 8, 8, 32   # batch, seq, points-per-frame, embedding_dim
    key = jax.random.PRNGKey(0)
    kx, kp = jax.random.split(key)

    x = jax.random.normal(kx, (B, T, 24 * 3 + 24 * 3 + N * 3), jnp.float32)
    params = init_params(kp, C)

    pred, f_seq = action_recog_forward(x, params, B, T, N, C)
    jax.block_until_ready((pred, f_seq))

    assert pred.shape == (B, 9) and f_seq.shape == (B, C)

    # bf16 matmul operands + tanh-GELU vs. exact f32 reference: well inside 2e-2
    pred_ref, fseq_ref = reference_forward(x, params, B, T, N, C)
    np.testing.assert_allclose(np.asarray(pred), np.asarray(pred_ref),
                               rtol=2e-2, atol=2e-2)
    np.testing.assert_allclose(np.asarray(f_seq), np.asarray(fseq_ref),
                               rtol=2e-2, atol=2e-2)

    print("KERNEL_OK")
</pallas_src>

<mosaic_0001>
module attributes {stable_mosaic.version = 11 : i64} {
  func.func @action_recog_kernel(%arg0: i32, %arg1: memref<1x8x144xf32, #tpu.memory_space<vmem>>, %arg2: memref<1x64x1xf32, #tpu.memory_space<vmem>>, %arg3: memref<1x64x1xf32, #tpu.memory_space<vmem>>, %arg4: memref<1x64x1xf32, #tpu.memory_space<vmem>>, %arg5: memref<144x64xbf16, #tpu.memory_space<vmem>>, %arg6: memref<1x64xf32, #tpu.memory_space<vmem>>, %arg7: memref<1x64xf32, #tpu.memory_space<vmem>>, %arg8: memref<1x64xf32, #tpu.memory_space<vmem>>, %arg9: memref<1x64xf32, #tpu.memory_space<vmem>>, %arg10: memref<1x64xf32, #tpu.memory_space<vmem>>, %arg11: memref<64x32xbf16, #tpu.memory_space<vmem>>, %arg12: memref<1x32xf32, #tpu.memory_space<vmem>>, %arg13: memref<32x32xbf16, #tpu.memory_space<vmem>>, %arg14: memref<1x32xf32, #tpu.memory_space<vmem>>, %arg15: memref<64x32xbf16, #tpu.memory_space<vmem>>, %arg16: memref<4x32x32xbf16, #tpu.memory_space<vmem>>, %arg17: memref<4x32x32xbf16, #tpu.memory_space<vmem>>, %arg18: memref<4x1x32xf32, #tpu.memory_space<vmem>>, %arg19: memref<4x32x32xbf16, #tpu.memory_space<vmem>>, %arg20: memref<4x1x32xf32, #tpu.memory_space<vmem>>, %arg21: memref<4x32x32xbf16, #tpu.memory_space<vmem>>, %arg22: memref<4x32x32xbf16, #tpu.memory_space<vmem>>, %arg23: memref<32x32xbf16, #tpu.memory_space<vmem>>, %arg24: memref<1x32xf32, #tpu.memory_space<vmem>>, %arg25: memref<32x32xbf16, #tpu.memory_space<vmem>>, %arg26: memref<1x32xf32, #tpu.memory_space<vmem>>, %arg27: memref<32x9xbf16, #tpu.memory_space<vmem>>, %arg28: memref<1x9xf32, #tpu.memory_space<vmem>>, %arg29: memref<1x1x9xf32, #tpu.memory_space<vmem>>, %arg30: memref<1x1x32xf32, #tpu.memory_space<vmem>>) attributes {dimension_semantics = [#tpu.dimension_semantics<parallel>], iteration_bounds = array<i64: 2>, scalar_prefetch = 0 : i64, scratch_operands = 0 : i64, tpu.core_type = #tpu.core_type<tc>, window_params = [{transform_indices = @transform_0, window_bounds = array<i64: 1, 8, 144>}, {transform_indices = @transform_1, window_bounds = array<i64: 1, 64, 1>}, {transform_indices = @transform_2, window_bounds = array<i64: 1, 64, 1>}, {transform_indices = @transform_3, window_bounds = array<i64: 1, 64, 1>}, {pipeline_mode = #tpu.pipeline_mode<synchronous>, transform_indices = @transform_4, window_bounds = array<i64: 144, 64>}, {pipeline_mode = #tpu.pipeline_mode<synchronous>, transform_indices = @transform_5, window_bounds = array<i64: 1, 64>}, {pipeline_mode = #tpu.pipeline_mode<synchronous>, transform_indices = @transform_6, window_bounds = array<i64: 1, 64>}, {pipeline_mode = #tpu.pipeline_mode<synchronous>, transform_indices = @transform_7, window_bounds = array<i64: 1, 64>}, {pipeline_mode = #tpu.pipeline_mode<synchronous>, transform_indices = @transform_8, window_bounds = array<i64: 1, 64>}, {pipeline_mode = #tpu.pipeline_mode<synchronous>, transform_indices = @transform_9, window_bounds = array<i64: 1, 64>}, {pipeline_mode = #tpu.pipeline_mode<synchronous>, transform_indices = @transform_10, window_bounds = array<i64: 64, 32>}, {pipeline_mode = #tpu.pipeline_mode<synchronous>, transform_indices = @transform_11, window_bounds = array<i64: 1, 32>}, {pipeline_mode = #tpu.pipeline_mode<synchronous>, transform_indices = @transform_12, window_bounds = array<i64: 32, 32>}, {pipeline_mode = #tpu.pipeline_mode<synchronous>, transform_indices = @transform_13, window_bounds = array<i64: 1, 32>}, {pipeline_mode = #tpu.pipeline_mode<synchronous>, transform_indices = @transform_14, window_bounds = array<i64: 64, 32>}, {pipeline_mode = #tpu.pipeline_mode<synchronous>, transform_indices = @transform_15, window_bounds = array<i64: 4, 32, 32>}, {pipeline_mode = #tpu.pipeline_mode<synchronous>, transform_indices = @transform_16, window_bounds = array<i64: 4, 32, 32>}, {pipeline_mode = #tpu.pipeline_mode<synchronous>, transform_indices = @transform_17, window_bounds = array<i64: 4, 1, 32>}, {pipeline_mode = #tpu.pipeline_mode<synchronous>, transform_indices = @transform_18, window_bounds = array<i64: 4, 32, 32>}, {pipeline_mode = #tpu.pipeline_mode<synchronous>, transform_indices = @transform_19, window_bounds = array<i64: 4, 1, 32>}, {pipeline_mode = #tpu.pipeline_mode<synchronous>, transform_indices = @transform_20, window_bounds = array<i64: 4, 32, 32>}, {pipeline_mode = #tpu.pipeline_mode<synchronous>, transform_indices = @transform_21, window_bounds = array<i64: 4, 32, 32>}, {pipeline_mode = #tpu.pipeline_mode<synchronous>, transform_indices = @transform_22, window_bounds = array<i64: 32, 32>}, {pipeline_mode = #tpu.pipeline_mode<synchronous>, transform_indices = @transform_23, window_bounds = array<i64: 1, 32>}, {pipeline_mode = #tpu.pipeline_mode<synchronous>, transform_indices = @transform_24, window_bounds = array<i64: 32, 32>}, {pipeline_mode = #tpu.pipeline_mode<synchronous>, transform_indices = @transform_25, window_bounds = array<i64: 1, 32>}, {pipeline_mode = #tpu.pipeline_mode<synchronous>, transform_indices = @transform_26, window_bounds = array<i64: 32, 9>}, {pipeline_mode = #tpu.pipeline_mode<synchronous>, transform_indices = @transform_27, window_bounds = array<i64: 1, 9>}, {transform_indices = @transform_28, window_bounds = array<i64: 1, 1, 9>}, {transform_indices = @transform_29, window_bounds = array<i64: 1, 1, 32>}]} {
    %c0 = arith.constant 0 : index
    %c0_0 = arith.constant 0 : index
    %c0_1 = arith.constant 0 : index
    %0 = vector.load %arg1[%c0, %c0_0, %c0_1] : memref<1x8x144xf32, #tpu.memory_space<vmem>>, vector<1x8x144xf32>
    %1 = vector.shape_cast %0 : vector<1x8x144xf32> to vector<8x144xf32>
    %c0_2 = arith.constant 0 : index
    %c0_3 = arith.constant 0 : index
    %c0_4 = arith.constant 0 : index
    %2 = vector.load %arg2[%c0_2, %c0_3, %c0_4] : memref<1x64x1xf32, #tpu.memory_space<vmem>>, vector<1x64x1xf32>
    %3 = vector.shape_cast %2 : vector<1x64x1xf32> to vector<64x1xf32>
    %c0_5 = arith.constant 0 : index
    %c0_6 = arith.constant 0 : index
    %c0_7 = arith.constant 0 : index
    %4 = vector.load %arg3[%c0_5, %c0_6, %c0_7] : memref<1x64x1xf32, #tpu.memory_space<vmem>>, vector<1x64x1xf32>
    %5 = vector.shape_cast %4 : vector<1x64x1xf32> to vector<64x1xf32>
    %c0_8 = arith.constant 0 : index
    %c0_9 = arith.constant 0 : index
    %c0_10 = arith.constant 0 : index
    %6 = vector.load %arg4[%c0_8, %c0_9, %c0_10] : memref<1x64x1xf32, #tpu.memory_space<vmem>>, vector<1x64x1xf32>
    %7 = vector.shape_cast %6 : vector<1x64x1xf32> to vector<64x1xf32>
    %c0_11 = arith.constant 0 : index
    %c0_12 = arith.constant 0 : index
    %8 = vector.load %arg5[%c0_11, %c0_12] : memref<144x64xbf16, #tpu.memory_space<vmem>>, vector<144x64xbf16>
    %9 = arith.truncf %1 : vector<8x144xf32> to vector<8x144xbf16>
    %cst = arith.constant dense<0.000000e+00> : vector<8x64xf32>
    %10 = tpu.matmul %9, %8, %cst {dimension_numbers = #tpu.dot_dimension_numbers<[1], [0], [0], [1], [0, 0, 1, 1], [], []>} : vector<8x144xbf16>, vector<144x64xbf16>, vector<8x64xf32> -> vector<8x64xf32>
    %c0_13 = arith.constant 0 : index
    %c0_14 = arith.constant 0 : index
    %11 = vector.load %arg6[%c0_13, %c0_14] : memref<1x64xf32, #tpu.memory_space<vmem>>, vector<1x64xf32>
    %12 = vector.broadcast %11 : vector<1x64xf32> to vector<8x64xf32>
    %13 = arith.addf %10, %12 : vector<8x64xf32>
    %14 = arith.mulf %13, %13 : vector<8x64xf32>
    %15 = arith.mulf %13, %14 : vector<8x64xf32>
    %cst_15 = arith.constant 4.471500e-02 : f32
    %16 = vector.broadcast %cst_15 : f32 to vector<8x64xf32>
    %17 = arith.mulf %16, %15 : vector<8x64xf32>
    %18 = arith.addf %13, %17 : vector<8x64xf32>
    %cst_16 = arith.constant 0.797884583 : f32
    %19 = vector.broadcast %cst_16 : f32 to vector<8x64xf32>
    %20 = arith.mulf %19, %18 : vector<8x64xf32>
    %21 = math.tanh %20 : vector<8x64xf32>
    %cst_17 = arith.constant 1.000000e+00 : f32
    %22 = vector.broadcast %cst_17 : f32 to vector<8x64xf32>
    %23 = arith.addf %22, %21 : vector<8x64xf32>
    %cst_18 = arith.constant 5.000000e-01 : f32
    %24 = vector.broadcast %cst_18 : f32 to vector<8x64xf32>
    %25 = arith.mulf %24, %23 : vector<8x64xf32>
    %26 = arith.mulf %13, %25 : vector<8x64xf32>
    %27 = vector.extract_strided_slice %26 {offsets = [0, 0], sizes = [8, 32], strides = [1, 1]} : vector<8x64xf32> to vector<8x32xf32>
    %28 = vector.extract_strided_slice %26 {offsets = [0, 32], sizes = [8, 32], strides = [1, 1]} : vector<8x64xf32> to vector<8x32xf32>
    %29 = arith.addf %27, %28 : vector<8x32xf32>
    %c0_19 = arith.constant 0 : index
    %c0_20 = arith.constant 0 : index
    %30 = vector.load %arg7[%c0_19, %c0_20] : memref<1x64xf32, #tpu.memory_space<vmem>>, vector<1x64xf32>
    %31 = vector.broadcast %3 : vector<64x1xf32> to vector<64x64xf32>
    %32 = vector.broadcast %30 : vector<1x64xf32> to vector<64x64xf32>
    %33 = arith.mulf %31, %32 : vector<64x64xf32>
    %c0_21 = arith.constant 0 : index
    %c0_22 = arith.constant 0 : index
    %34 = vector.load %arg8[%c0_21, %c0_22] : memref<1x64xf32, #tpu.memory_space<vmem>>, vector<1x64xf32>
    %35 = vector.broadcast %5 : vector<64x1xf32> to vector<64x64xf32>
    %36 = vector.broadcast %34 : vector<1x64xf32> to vector<64x64xf32>
    %37 = arith.mulf %35, %36 : vector<64x64xf32>
    %38 = arith.addf %33, %37 : vector<64x64xf32>
    %c0_23 = arith.constant 0 : index
    %c0_24 = arith.constant 0 : index
    %39 = vector.load %arg9[%c0_23, %c0_24] : memref<1x64xf32, #tpu.memory_space<vmem>>, vector<1x64xf32>
    %40 = vector.broadcast %7 : vector<64x1xf32> to vector<64x64xf32>
    %41 = vector.broadcast %39 : vector<1x64xf32> to vector<64x64xf32>
    %42 = arith.mulf %40, %41 : vector<64x64xf32>
    %43 = arith.addf %38, %42 : vector<64x64xf32>
    %c0_25 = arith.constant 0 : index
    %c0_26 = arith.constant 0 : index
    %44 = vector.load %arg10[%c0_25, %c0_26] : memref<1x64xf32, #tpu.memory_space<vmem>>, vector<1x64xf32>
    %45 = vector.broadcast %44 : vector<1x64xf32> to vector<64x64xf32>
    %46 = arith.addf %43, %45 : vector<64x64xf32>
    %cst_27 = arith.constant 0.000000e+00 : f32
    %47 = vector.broadcast %cst_27 : f32 to vector<64x64xf32>
    %48 = arith.maximumf %46, %47 : vector<64x64xf32>
    %c0_28 = arith.constant 0 : index
    %c0_29 = arith.constant 0 : index
    %49 = vector.load %arg11[%c0_28, %c0_29] : memref<64x32xbf16, #tpu.memory_space<vmem>>, vector<64x32xbf16>
    %50 = arith.truncf %48 : vector<64x64xf32> to vector<64x64xbf16>
    %cst_30 = arith.constant dense<0.000000e+00> : vector<64x32xf32>
    %51 = tpu.matmul %50, %49, %cst_30 {dimension_numbers = #tpu.dot_dimension_numbers<[1], [0], [0], [1], [0, 0, 1, 1], [], []>} : vector<64x64xbf16>, vector<64x32xbf16>, vector<64x32xf32> -> vector<64x32xf32>
    %c0_31 = arith.constant 0 : index
    %c0_32 = arith.constant 0 : index
    %52 = vector.load %arg12[%c0_31, %c0_32] : memref<1x32xf32, #tpu.memory_space<vmem>>, vector<1x32xf32>
    %53 = vector.broadcast %52 : vector<1x32xf32> to vector<64x32xf32>
    %54 = arith.addf %51, %53 : vector<64x32xf32>
    %cst_33 = arith.constant 0.000000e+00 : f32
    %55 = vector.broadcast %cst_33 : f32 to vector<64x32xf32>
    %56 = arith.maximumf %54, %55 : vector<64x32xf32>
    %c0_34 = arith.constant 0 : index
    %c0_35 = arith.constant 0 : index
    %57 = vector.load %arg13[%c0_34, %c0_35] : memref<32x32xbf16, #tpu.memory_space<vmem>>, vector<32x32xbf16>
    %58 = arith.truncf %56 : vector<64x32xf32> to vector<64x32xbf16>
    %cst_36 = arith.constant dense<0.000000e+00> : vector<64x32xf32>
    %59 = tpu.matmul %58, %57, %cst_36 {dimension_numbers = #tpu.dot_dimension_numbers<[1], [0], [0], [1], [0, 0, 1, 1], [], []>} : vector<64x32xbf16>, vector<32x32xbf16>, vector<64x32xf32> -> vector<64x32xf32>
    %c0_37 = arith.constant 0 : index
    %c0_38 = arith.constant 0 : index
    %60 = vector.load %arg14[%c0_37, %c0_38] : memref<1x32xf32, #tpu.memory_space<vmem>>, vector<1x32xf32>
    %61 = vector.broadcast %60 : vector<1x32xf32> to vector<64x32xf32>
    %62 = arith.addf %59, %61 : vector<64x32xf32>
    %c0_39 = arith.constant 0 : index
    %c0_40 = arith.constant 0 : index
    %63 = vector.load %arg15[%c0_39, %c0_40] : memref<64x32xbf16, #tpu.memory_space<vmem>>, vector<64x32xbf16>
    %64 = arith.truncf %46 : vector<64x64xf32> to vector<64x64xbf16>
    %cst_41 = arith.constant dense<0.000000e+00> : vector<64x32xf32>
    %65 = tpu.matmul %64, %63, %cst_41 {dimension_numbers = #tpu.dot_dimension_numbers<[1], [0], [0], [1], [0, 0, 1, 1], [], []>} : vector<64x64xbf16>, vector<64x32xbf16>, vector<64x32xf32> -> vector<64x32xf32>
    %66 = arith.addf %65, %62 : vector<64x32xf32>
    %67 = vector.shape_cast %66 : vector<64x32xf32> to vector<8x8x32xf32>
    %cst_42 = arith.constant dense<0xFF800000> : vector<8x32xf32>
    %68 = vector.multi_reduction <maximumf>, %67, %cst_42 [1] : vector<8x8x32xf32> to vector<8x32xf32>
    %cst_43 = arith.constant 0.000000e+00 : f32
    %69 = vector.broadcast %cst_43 : f32 to vector<64x32xf32>
    %70 = arith.maximumf %66, %69 : vector<64x32xf32>
    %c0_44 = arith.constant 0 : index
    %c0_45 = arith.constant 0 : index
    %c0_46 = arith.constant 0 : index
    %71 = vector.load %arg16[%c0_44, %c0_45, %c0_46] : memref<4x32x32xbf16, #tpu.memory_space<vmem>>, vector<1x32x32xbf16>
    %72 = vector.shape_cast %71 : vector<1x32x32xbf16> to vector<32x32xbf16>
    %73 = arith.truncf %70 : vector<64x32xf32> to vector<64x32xbf16>
    %cst_47 = arith.constant dense<0.000000e+00> : vector<64x32xf32>
    %74 = tpu.matmul %73, %72, %cst_47 {dimension_numbers = #tpu.dot_dimension_numbers<[1], [0], [0], [1], [0, 0, 1, 1], [], []>} : vector<64x32xbf16>, vector<32x32xbf16>, vector<64x32xf32> -> vector<64x32xf32>
    %cst_48 = arith.constant 0.000000e+00 : f32
    %75 = vector.broadcast %cst_48 : f32 to vector<8x32xf32>
    %76 = arith.maximumf %68, %75 : vector<8x32xf32>
    %c0_49 = arith.constant 0 : index
    %c0_50 = arith.constant 0 : index
    %c0_51 = arith.constant 0 : index
    %77 = vector.load %arg17[%c0_49, %c0_50, %c0_51] : memref<4x32x32xbf16, #tpu.memory_space<vmem>>, vector<1x32x32xbf16>
    %78 = vector.shape_cast %77 : vector<1x32x32xbf16> to vector<32x32xbf16>
    %79 = arith.truncf %76 : vector<8x32xf32> to vector<8x32xbf16>
    %cst_52 = arith.constant dense<0.000000e+00> : vector<8x32xf32>
    %80 = tpu.matmul %79, %78, %cst_52 {dimension_numbers = #tpu.dot_dimension_numbers<[1], [0], [0], [1], [0, 0, 1, 1], [], []>} : vector<8x32xbf16>, vector<32x32xbf16>, vector<8x32xf32> -> vector<8x32xf32>
    %81 = vector.shape_cast %80 : vector<8x32xf32> to vector<8x1x32xf32>
    %82 = vector.shape_cast %81 : vector<8x1x32xf32> to vector<8x1x32xf32>
    %83 = vector.broadcast %82 : vector<8x1x32xf32> to vector<8x8x32xf32>
    %84 = vector.shape_cast %83 : vector<8x8x32xf32> to vector<64x32xf32>
    %85 = arith.addf %74, %84 : vector<64x32xf32>
    %c0_53 = arith.constant 0 : index
    %c0_54 = arith.constant 0 : index
    %c0_55 = arith.constant 0 : index
    %86 = vector.load %arg18[%c0_53, %c0_54, %c0_55] : memref<4x1x32xf32, #tpu.memory_space<vmem>>, vector<1x1x32xf32>
    %87 = vector.shape_cast %86 : vector<1x1x32xf32> to vector<1x32xf32>
    %88 = vector.broadcast %87 : vector<1x32xf32> to vector<64x32xf32>
    %89 = arith.addf %85, %88 : vector<64x32xf32>
    %cst_56 = arith.constant 0.000000e+00 : f32
    %90 = vector.broadcast %cst_56 : f32 to vector<64x32xf32>
    %91 = arith.maximumf %89, %90 : vector<64x32xf32>
    %c0_57 = arith.constant 0 : index
    %c0_58 = arith.constant 0 : index
    %c0_59 = arith.constant 0 : index
    %92 = vector.load %arg19[%c0_57, %c0_58, %c0_59] : memref<4x32x32xbf16, #tpu.memory_space<vmem>>, vector<1x32x32xbf16>
    %93 = vector.shape_cast %92 : vector<1x32x32xbf16> to vector<32x32xbf16>
    %94 = arith.truncf %91 : vector<64x32xf32> to vector<64x32xbf16>
    %cst_60 = arith.constant dense<0.000000e+00> : vector<64x32xf32>
    %95 = tpu.matmul %94, %93, %cst_60 {dimension_numbers = #tpu.dot_dimension_numbers<[1], [0], [0], [1], [0, 0, 1, 1], [], []>} : vector<64x32xbf16>, vector<32x32xbf16>, vector<64x32xf32> -> vector<64x32xf32>
    %c0_61 = arith.constant 0 : index
    %c0_62 = arith.constant 0 : index
    %c0_63 = arith.constant 0 : index
    %96 = vector.load %arg20[%c0_61, %c0_62, %c0_63] : memref<4x1x32xf32, #tpu.memory_space<vmem>>, vector<1x1x32xf32>
    %97 = vector.shape_cast %96 : vector<1x1x32xf32> to vector<1x32xf32>
    %98 = vector.broadcast %97 : vector<1x32xf32> to vector<64x32xf32>
    %99 = arith.addf %95, %98 : vector<64x32xf32>
    %c0_64 = arith.constant 0 : index
    %c0_65 = arith.constant 0 : index
    %c0_66 = arith.constant 0 : index
    %100 = vector.load %arg21[%c0_64, %c0_65, %c0_66] : memref<4x32x32xbf16, #tpu.memory_space<vmem>>, vector<1x32x32xbf16>
    %101 = vector.shape_cast %100 : vector<1x32x32xbf16> to vector<32x32xbf16>
    %102 = arith.truncf %66 : vector<64x32xf32> to vector<64x32xbf16>
    %cst_67 = arith.constant dense<0.000000e+00> : vector<64x32xf32>
    %103 = tpu.matmul %102, %101, %cst_67 {dimension_numbers = #tpu.dot_dimension_numbers<[1], [0], [0], [1], [0, 0, 1, 1], [], []>} : vector<64x32xbf16>, vector<32x32xbf16>, vector<64x32xf32> -> vector<64x32xf32>
    %c0_68 = arith.constant 0 : index
    %c0_69 = arith.constant 0 : index
    %c0_70 = arith.constant 0 : index
    %104 = vector.load %arg22[%c0_68, %c0_69, %c0_70] : memref<4x32x32xbf16, #tpu.memory_space<vmem>>, vector<1x32x32xbf16>
    %105 = vector.shape_cast %104 : vector<1x32x32xbf16> to vector<32x32xbf16>
    %106 = arith.truncf %68 : vector<8x32xf32> to vector<8x32xbf16>
    %cst_71 = arith.constant dense<0.000000e+00> : vector<8x32xf32>
    %107 = tpu.matmul %106, %105, %cst_71 {dimension_numbers = #tpu.dot_dimension_numbers<[1], [0], [0], [1], [0, 0, 1, 1], [], []>} : vector<8x32xbf16>, vector<32x32xbf16>, vector<8x32xf32> -> vector<8x32xf32>
    %108 = vector.shape_cast %107 : vector<8x32xf32> to vector<8x1x32xf32>
    %109 = vector.shape_cast %108 : vector<8x1x32xf32> to vector<8x1x32xf32>
    %110 = vector.broadcast %109 : vector<8x1x32xf32> to vector<8x8x32xf32>
    %111 = vector.shape_cast %110 : vector<8x8x32xf32> to vector<64x32xf32>
    %112 = arith.addf %103, %111 : vector<64x32xf32>
    %113 = arith.addf %112, %99 : vector<64x32xf32>
    %114 = vector.shape_cast %113 : vector<64x32xf32> to vector<8x8x32xf32>
    %cst_72 = arith.constant dense<0xFF800000> : vector<8x32xf32>
    %115 = vector.multi_reduction <maximumf>, %114, %cst_72 [1] : vector<8x8x32xf32> to vector<8x32xf32>
    %cst_73 = arith.constant 0.000000e+00 : f32
    %116 = vector.broadcast %cst_73 : f32 to vector<64x32xf32>
    %117 = arith.maximumf %113, %116 : vector<64x32xf32>
    %c1 = arith.constant 1 : index
    %c0_74 = arith.constant 0 : index
    %c0_75 = arith.constant 0 : index
    %118 = vector.load %arg16[%c1, %c0_74, %c0_75] : memref<4x32x32xbf16, #tpu.memory_space<vmem>>, vector<1x32x32xbf16>
    %119 = vector.shape_cast %118 : vector<1x32x32xbf16> to vector<32x32xbf16>
    %120 = arith.truncf %117 : vector<64x32xf32> to vector<64x32xbf16>
    %cst_76 = arith.constant dense<0.000000e+00> : vector<64x32xf32>
    %121 = tpu.matmul %120, %119, %cst_76 {dimension_numbers = #tpu.dot_dimension_numbers<[1], [0], [0], [1], [0, 0, 1, 1], [], []>} : vector<64x32xbf16>, vector<32x32xbf16>, vector<64x32xf32> -> vector<64x32xf32>
    %cst_77 = arith.constant 0.000000e+00 : f32
    %122 = vector.broadcast %cst_77 : f32 to vector<8x32xf32>
    %123 = arith.maximumf %115, %122 : vector<8x32xf32>
    %c1_78 = arith.constant 1 : index
    %c0_79 = arith.constant 0 : index
    %c0_80 = arith.constant 0 : index
    %124 = vector.load %arg17[%c1_78, %c0_79, %c0_80] : memref<4x32x32xbf16, #tpu.memory_space<vmem>>, vector<1x32x32xbf16>
    %125 = vector.shape_cast %124 : vector<1x32x32xbf16> to vector<32x32xbf16>
    %126 = arith.truncf %123 : vector<8x32xf32> to vector<8x32xbf16>
    %cst_81 = arith.constant dense<0.000000e+00> : vector<8x32xf32>
    %127 = tpu.matmul %126, %125, %cst_81 {dimension_numbers = #tpu.dot_dimension_numbers<[1], [0], [0], [1], [0, 0, 1, 1], [], []>} : vector<8x32xbf16>, vector<32x32xbf16>, vector<8x32xf32> -> vector<8x32xf32>
    %128 = vector.shape_cast %127 : vector<8x32xf32> to vector<8x1x32xf32>
    %129 = vector.shape_cast %128 : vector<8x1x32xf32> to vector<8x1x32xf32>
    %130 = vector.broadcast %129 : vector<8x1x32xf32> to vector<8x8x32xf32>
    %131 = vector.shape_cast %130 : vector<8x8x32xf32> to vector<64x32xf32>
    %132 = arith.addf %121, %131 : vector<64x32xf32>
    %c1_82 = arith.constant 1 : index
    %c0_83 = arith.constant 0 : index
    %c0_84 = arith.constant 0 : index
    %133 = vector.load %arg18[%c1_82, %c0_83, %c0_84] : memref<4x1x32xf32, #tpu.memory_space<vmem>>, vector<1x1x32xf32>
    %134 = vector.shape_cast %133 : vector<1x1x32xf32> to vector<1x32xf32>
    %135 = vector.broadcast %134 : vector<1x32xf32> to vector<64x32xf32>
    %136 = arith.addf %132, %135 : vector<64x32xf32>
    %cst_85 = arith.constant 0.000000e+00 : f32
    %137 = vector.broadcast %cst_85 : f32 to vector<64x32xf32>
    %138 = arith.maximumf %136, %137 : vector<64x32xf32>
    %c1_86 = arith.constant 1 : index
    %c0_87 = arith.constant 0 : index
    %c0_88 = arith.constant 0 : index
    %139 = vector.load %arg19[%c1_86, %c0_87, %c0_88] : memref<4x32x32xbf16, #tpu.memory_space<vmem>>, vector<1x32x32xbf16>
    %140 = vector.shape_cast %139 : vector<1x32x32xbf16> to vector<32x32xbf16>
    %141 = arith.truncf %138 : vector<64x32xf32> to vector<64x32xbf16>
    %cst_89 = arith.constant dense<0.000000e+00> : vector<64x32xf32>
    %142 = tpu.matmul %141, %140, %cst_89 {dimension_numbers = #tpu.dot_dimension_numbers<[1], [0], [0], [1], [0, 0, 1, 1], [], []>} : vector<64x32xbf16>, vector<32x32xbf16>, vector<64x32xf32> -> vector<64x32xf32>
    %c1_90 = arith.constant 1 : index
    %c0_91 = arith.constant 0 : index
    %c0_92 = arith.constant 0 : index
    %143 = vector.load %arg20[%c1_90, %c0_91, %c0_92] : memref<4x1x32xf32, #tpu.memory_space<vmem>>, vector<1x1x32xf32>
    %144 = vector.shape_cast %143 : vector<1x1x32xf32> to vector<1x32xf32>
    %145 = vector.broadcast %144 : vector<1x32xf32> to vector<64x32xf32>
    %146 = arith.addf %142, %145 : vector<64x32xf32>
    %c1_93 = arith.constant 1 : index
    %c0_94 = arith.constant 0 : index
    %c0_95 = arith.constant 0 : index
    %147 = vector.load %arg21[%c1_93, %c0_94, %c0_95] : memref<4x32x32xbf16, #tpu.memory_space<vmem>>, vector<1x32x32xbf16>
    %148 = vector.shape_cast %147 : vector<1x32x32xbf16> to vector<32x32xbf16>
    %149 = arith.truncf %113 : vector<64x32xf32> to vector<64x32xbf16>
    %cst_96 = arith.constant dense<0.000000e+00> : vector<64x32xf32>
    %150 = tpu.matmul %149, %148, %cst_96 {dimension_numbers = #tpu.dot_dimension_numbers<[1], [0], [0], [1], [0, 0, 1, 1], [], []>} : vector<64x32xbf16>, vector<32x32xbf16>, vector<64x32xf32> -> vector<64x32xf32>
    %c1_97 = arith.constant 1 : index
    %c0_98 = arith.constant 0 : index
    %c0_99 = arith.constant 0 : index
    %151 = vector.load %arg22[%c1_97, %c0_98, %c0_99] : memref<4x32x32xbf16, #tpu.memory_space<vmem>>, vector<1x32x32xbf16>
    %152 = vector.shape_cast %151 : vector<1x32x32xbf16> to vector<32x32xbf16>
    %153 = arith.truncf %115 : vector<8x32xf32> to vector<8x32xbf16>
    %cst_100 = arith.constant dense<0.000000e+00> : vector<8x32xf32>
    %154 = tpu.matmul %153, %152, %cst_100 {dimension_numbers = #tpu.dot_dimension_numbers<[1], [0], [0], [1], [0, 0, 1, 1], [], []>} : vector<8x32xbf16>, vector<32x32xbf16>, vector<8x32xf32> -> vector<8x32xf32>
    %155 = vector.shape_cast %154 : vector<8x32xf32> to vector<8x1x32xf32>
    %156 = vector.shape_cast %155 : vector<8x1x32xf32> to vector<8x1x32xf32>
    %157 = vector.broadcast %156 : vector<8x1x32xf32> to vector<8x8x32xf32>
    %158 = vector.shape_cast %157 : vector<8x8x32xf32> to vector<64x32xf32>
    %159 = arith.addf %150, %158 : vector<64x32xf32>
    %160 = arith.addf %159, %146 : vector<64x32xf32>
    %161 = vector.shape_cast %160 : vector<64x32xf32> to vector<8x8x32xf32>
    %cst_101 = arith.constant dense<0xFF800000> : vector<8x32xf32>
    %162 = vector.multi_reduction <maximumf>, %161, %cst_101 [1] : vector<8x8x32xf32> to vector<8x32xf32>
    %cst_102 = arith.constant 0.000000e+00 : f32
    %163 = vector.broadcast %cst_102 : f32 to vector<64x32xf32>
    %164 = arith.maximumf %160, %163 : vector<64x32xf32>
    %c2 = arith.constant 2 : index
    %c0_103 = arith.constant 0 : index
    %c0_104 = arith.constant 0 : index
    %165 = vector.load %arg16[%c2, %c0_103, %c0_104] : memref<4x32x32xbf16, #tpu.memory_space<vmem>>, vector<1x32x32xbf16>
    %166 = vector.shape_cast %165 : vector<1x32x32xbf16> to vector<32x32xbf16>
    %167 = arith.truncf %164 : vector<64x32xf32> to vector<64x32xbf16>
    %cst_105 = arith.constant dense<0.000000e+00> : vector<64x32xf32>
    %168 = tpu.matmul %167, %166, %cst_105 {dimension_numbers = #tpu.dot_dimension_numbers<[1], [0], [0], [1], [0, 0, 1, 1], [], []>} : vector<64x32xbf16>, vector<32x32xbf16>, vector<64x32xf32> -> vector<64x32xf32>
    %cst_106 = arith.constant 0.000000e+00 : f32
    %169 = vector.broadcast %cst_106 : f32 to vector<8x32xf32>
    %170 = arith.maximumf %162, %169 : vector<8x32xf32>
    %c2_107 = arith.constant 2 : index
    %c0_108 = arith.constant 0 : index
    %c0_109 = arith.constant 0 : index
    %171 = vector.load %arg17[%c2_107, %c0_108, %c0_109] : memref<4x32x32xbf16, #tpu.memory_space<vmem>>, vector<1x32x32xbf16>
    %172 = vector.shape_cast %171 : vector<1x32x32xbf16> to vector<32x32xbf16>
    %173 = arith.truncf %170 : vector<8x32xf32> to vector<8x32xbf16>
    %cst_110 = arith.constant dense<0.000000e+00> : vector<8x32xf32>
    %174 = tpu.matmul %173, %172, %cst_110 {dimension_numbers = #tpu.dot_dimension_numbers<[1], [0], [0], [1], [0, 0, 1, 1], [], []>} : vector<8x32xbf16>, vector<32x32xbf16>, vector<8x32xf32> -> vector<8x32xf32>
    %175 = vector.shape_cast %174 : vector<8x32xf32> to vector<8x1x32xf32>
    %176 = vector.shape_cast %175 : vector<8x1x32xf32> to vector<8x1x32xf32>
    %177 = vector.broadcast %176 : vector<8x1x32xf32> to vector<8x8x32xf32>
    %178 = vector.shape_cast %177 : vector<8x8x32xf32> to vector<64x32xf32>
    %179 = arith.addf %168, %178 : vector<64x32xf32>
    %c2_111 = arith.constant 2 : index
    %c0_112 = arith.constant 0 : index
    %c0_113 = arith.constant 0 : index
    %180 = vector.load %arg18[%c2_111, %c0_112, %c0_113] : memref<4x1x32xf32, #tpu.memory_space<vmem>>, vector<1x1x32xf32>
    %181 = vector.shape_cast %180 : vector<1x1x32xf32> to vector<1x32xf32>
    %182 = vector.broadcast %181 : vector<1x32xf32> to vector<64x32xf32>
    %183 = arith.addf %179, %182 : vector<64x32xf32>
    %cst_114 = arith.constant 0.000000e+00 : f32
    %184 = vector.broadcast %cst_114 : f32 to vector<64x32xf32>
    %185 = arith.maximumf %183, %184 : vector<64x32xf32>
    %c2_115 = arith.constant 2 : index
    %c0_116 = arith.constant 0 : index
    %c0_117 = arith.constant 0 : index
    %186 = vector.load %arg19[%c2_115, %c0_116, %c0_117] : memref<4x32x32xbf16, #tpu.memory_space<vmem>>, vector<1x32x32xbf16>
    %187 = vector.shape_cast %186 : vector<1x32x32xbf16> to vector<32x32xbf16>
    %188 = arith.truncf %185 : vector<64x32xf32> to vector<64x32xbf16>
    %cst_118 = arith.constant dense<0.000000e+00> : vector<64x32xf32>
    %189 = tpu.matmul %188, %187, %cst_118 {dimension_numbers = #tpu.dot_dimension_numbers<[1], [0], [0], [1], [0, 0, 1, 1], [], []>} : vector<64x32xbf16>, vector<32x32xbf16>, vector<64x32xf32> -> vector<64x32xf32>
    %c2_119 = arith.constant 2 : index
    %c0_120 = arith.constant 0 : index
    %c0_121 = arith.constant 0 : index
    %190 = vector.load %arg20[%c2_119, %c0_120, %c0_121] : memref<4x1x32xf32, #tpu.memory_space<vmem>>, vector<1x1x32xf32>
    %191 = vector.shape_cast %190 : vector<1x1x32xf32> to vector<1x32xf32>
    %192 = vector.broadcast %191 : vector<1x32xf32> to vector<64x32xf32>
    %193 = arith.addf %189, %192 : vector<64x32xf32>
    %c2_122 = arith.constant 2 : index
    %c0_123 = arith.constant 0 : index
    %c0_124 = arith.constant 0 : index
    %194 = vector.load %arg21[%c2_122, %c0_123, %c0_124] : memref<4x32x32xbf16, #tpu.memory_space<vmem>>, vector<1x32x32xbf16>
    %195 = vector.shape_cast %194 : vector<1x32x32xbf16> to vector<32x32xbf16>
    %196 = arith.truncf %160 : vector<64x32xf32> to vector<64x32xbf16>
    %cst_125 = arith.constant dense<0.000000e+00> : vector<64x32xf32>
    %197 = tpu.matmul %196, %195, %cst_125 {dimension_numbers = #tpu.dot_dimension_numbers<[1], [0], [0], [1], [0, 0, 1, 1], [], []>} : vector<64x32xbf16>, vector<32x32xbf16>, vector<64x32xf32> -> vector<64x32xf32>
    %c2_126 = arith.constant 2 : index
    %c0_127 = arith.constant 0 : index
    %c0_128 = arith.constant 0 : index
    %198 = vector.load %arg22[%c2_126, %c0_127, %c0_128] : memref<4x32x32xbf16, #tpu.memory_space<vmem>>, vector<1x32x32xbf16>
    %199 = vector.shape_cast %198 : vector<1x32x32xbf16> to vector<32x32xbf16>
    %200 = arith.truncf %162 : vector<8x32xf32> to vector<8x32xbf16>
    %cst_129 = arith.constant dense<0.000000e+00> : vector<8x32xf32>
    %201 = tpu.matmul %200, %199, %cst_129 {dimension_numbers = #tpu.dot_dimension_numbers<[1], [0], [0], [1], [0, 0, 1, 1], [], []>} : vector<8x32xbf16>, vector<32x32xbf16>, vector<8x32xf32> -> vector<8x32xf32>
    %202 = vector.shape_cast %201 : vector<8x32xf32> to vector<8x1x32xf32>
    %203 = vector.shape_cast %202 : vector<8x1x32xf32> to vector<8x1x32xf32>
    %204 = vector.broadcast %203 : vector<8x1x32xf32> to vector<8x8x32xf32>
    %205 = vector.shape_cast %204 : vector<8x8x32xf32> to vector<64x32xf32>
    %206 = arith.addf %197, %205 : vector<64x32xf32>
    %207 = arith.addf %206, %193 : vector<64x32xf32>
    %208 = vector.shape_cast %207 : vector<64x32xf32> to vector<8x8x32xf32>
    %cst_130 = arith.constant dense<0xFF800000> : vector<8x32xf32>
    %209 = vector.multi_reduction <maximumf>, %208, %cst_130 [1] : vector<8x8x32xf32> to vector<8x32xf32>
    %cst_131 = arith.constant 0.000000e+00 : f32
    %210 = vector.broadcast %cst_131 : f32 to vector<64x32xf32>
    %211 = arith.maximumf %207, %210 : vector<64x32xf32>
    %c3 = arith.constant 3 : index
    %c0_132 = arith.constant 0 : index
    %c0_133 = arith.constant 0 : index
    %212 = vector.load %arg16[%c3, %c0_132, %c0_133] : memref<4x32x32xbf16, #tpu.memory_space<vmem>>, vector<1x32x32xbf16>
    %213 = vector.shape_cast %212 : vector<1x32x32xbf16> to vector<32x32xbf16>
    %214 = arith.truncf %211 : vector<64x32xf32> to vector<64x32xbf16>
    %cst_134 = arith.constant dense<0.000000e+00> : vector<64x32xf32>
    %215 = tpu.matmul %214, %213, %cst_134 {dimension_numbers = #tpu.dot_dimension_numbers<[1], [0], [0], [1], [0, 0, 1, 1], [], []>} : vector<64x32xbf16>, vector<32x32xbf16>, vector<64x32xf32> -> vector<64x32xf32>
    %cst_135 = arith.constant 0.000000e+00 : f32
    %216 = vector.broadcast %cst_135 : f32 to vector<8x32xf32>
    %217 = arith.maximumf %209, %216 : vector<8x32xf32>
    %c3_136 = arith.constant 3 : index
    %c0_137 = arith.constant 0 : index
    %c0_138 = arith.constant 0 : index
    %218 = vector.load %arg17[%c3_136, %c0_137, %c0_138] : memref<4x32x32xbf16, #tpu.memory_space<vmem>>, vector<1x32x32xbf16>
    %219 = vector.shape_cast %218 : vector<1x32x32xbf16> to vector<32x32xbf16>
    %220 = arith.truncf %217 : vector<8x32xf32> to vector<8x32xbf16>
    %cst_139 = arith.constant dense<0.000000e+00> : vector<8x32xf32>
    %221 = tpu.matmul %220, %219, %cst_139 {dimension_numbers = #tpu.dot_dimension_numbers<[1], [0], [0], [1], [0, 0, 1, 1], [], []>} : vector<8x32xbf16>, vector<32x32xbf16>, vector<8x32xf32> -> vector<8x32xf32>
    %222 = vector.shape_cast %221 : vector<8x32xf32> to vector<8x1x32xf32>
    %223 = vector.shape_cast %222 : vector<8x1x32xf32> to vector<8x1x32xf32>
    %224 = vector.broadcast %223 : vector<8x1x32xf32> to vector<8x8x32xf32>
    %225 = vector.shape_cast %224 : vector<8x8x32xf32> to vector<64x32xf32>
    %226 = arith.addf %215, %225 : vector<64x32xf32>
    %c3_140 = arith.constant 3 : index
    %c0_141 = arith.constant 0 : index
    %c0_142 = arith.constant 0 : index
    %227 = vector.load %arg18[%c3_140, %c0_141, %c0_142] : memref<4x1x32xf32, #tpu.memory_space<vmem>>, vector<1x1x32xf32>
    %228 = vector.shape_cast %227 : vector<1x1x32xf32> to vector<1x32xf32>
    %229 = vector.broadcast %228 : vector<1x32xf32> to vector<64x32xf32>
    %230 = arith.addf %226, %229 : vector<64x32xf32>
    %cst_143 = arith.constant 0.000000e+00 : f32
    %231 = vector.broadcast %cst_143 : f32 to vector<64x32xf32>
    %232 = arith.maximumf %230, %231 : vector<64x32xf32>
    %c3_144 = arith.constant 3 : index
    %c0_145 = arith.constant 0 : index
    %c0_146 = arith.constant 0 : index
    %233 = vector.load %arg19[%c3_144, %c0_145, %c0_146] : memref<4x32x32xbf16, #tpu.memory_space<vmem>>, vector<1x32x32xbf16>
    %234 = vector.shape_cast %233 : vector<1x32x32xbf16> to vector<32x32xbf16>
    %235 = arith.truncf %232 : vector<64x32xf32> to vector<64x32xbf16>
    %cst_147 = arith.constant dense<0.000000e+00> : vector<64x32xf32>
    %236 = tpu.matmul %235, %234, %cst_147 {dimension_numbers = #tpu.dot_dimension_numbers<[1], [0], [0], [1], [0, 0, 1, 1], [], []>} : vector<64x32xbf16>, vector<32x32xbf16>, vector<64x32xf32> -> vector<64x32xf32>
    %c3_148 = arith.constant 3 : index
    %c0_149 = arith.constant 0 : index
    %c0_150 = arith.constant 0 : index
    %237 = vector.load %arg20[%c3_148, %c0_149, %c0_150] : memref<4x1x32xf32, #tpu.memory_space<vmem>>, vector<1x1x32xf32>
    %238 = vector.shape_cast %237 : vector<1x1x32xf32> to vector<1x32xf32>
    %239 = vector.broadcast %238 : vector<1x32xf32> to vector<64x32xf32>
    %240 = arith.addf %236, %239 : vector<64x32xf32>
    %c3_151 = arith.constant 3 : index
    %c0_152 = arith.constant 0 : index
    %c0_153 = arith.constant 0 : index
    %241 = vector.load %arg21[%c3_151, %c0_152, %c0_153] : memref<4x32x32xbf16, #tpu.memory_space<vmem>>, vector<1x32x32xbf16>
    %242 = vector.shape_cast %241 : vector<1x32x32xbf16> to vector<32x32xbf16>
    %243 = arith.truncf %207 : vector<64x32xf32> to vector<64x32xbf16>
    %cst_154 = arith.constant dense<0.000000e+00> : vector<64x32xf32>
    %244 = tpu.matmul %243, %242, %cst_154 {dimension_numbers = #tpu.dot_dimension_numbers<[1], [0], [0], [1], [0, 0, 1, 1], [], []>} : vector<64x32xbf16>, vector<32x32xbf16>, vector<64x32xf32> -> vector<64x32xf32>
    %c3_155 = arith.constant 3 : index
    %c0_156 = arith.constant 0 : index
    %c0_157 = arith.constant 0 : index
    %245 = vector.load %arg22[%c3_155, %c0_156, %c0_157] : memref<4x32x32xbf16, #tpu.memory_space<vmem>>, vector<1x32x32xbf16>
    %246 = vector.shape_cast %245 : vector<1x32x32xbf16> to vector<32x32xbf16>
    %247 = arith.truncf %209 : vector<8x32xf32> to vector<8x32xbf16>
    %cst_158 = arith.constant dense<0.000000e+00> : vector<8x32xf32>
    %248 = tpu.matmul %247, %246, %cst_158 {dimension_numbers = #tpu.dot_dimension_numbers<[1], [0], [0], [1], [0, 0, 1, 1], [], []>} : vector<8x32xbf16>, vector<32x32xbf16>, vector<8x32xf32> -> vector<8x32xf32>
    %249 = vector.shape_cast %248 : vector<8x32xf32> to vector<8x1x32xf32>
    %250 = vector.shape_cast %249 : vector<8x1x32xf32> to vector<8x1x32xf32>
    %251 = vector.broadcast %250 : vector<8x1x32xf32> to vector<8x8x32xf32>
    %252 = vector.shape_cast %251 : vector<8x8x32xf32> to vector<64x32xf32>
    %253 = arith.addf %244, %252 : vector<64x32xf32>
    %254 = arith.addf %253, %240 : vector<64x32xf32>
    %255 = vector.shape_cast %254 : vector<64x32xf32> to vector<8x8x32xf32>
    %cst_159 = arith.constant dense<0xFF800000> : vector<8x32xf32>
    %256 = vector.multi_reduction <maximumf>, %255, %cst_159 [1] : vector<8x8x32xf32> to vector<8x32xf32>
    %cst_160 = arith.constant 0.000000e+00 : f32
    %257 = vector.broadcast %cst_160 : f32 to vector<8x32xf32>
    %258 = arith.maximumf %256, %257 : vector<8x32xf32>
    %c0_161 = arith.constant 0 : index
    %c0_162 = arith.constant 0 : index
    %259 = vector.load %arg23[%c0_161, %c0_162] : memref<32x32xbf16, #tpu.memory_space<vmem>>, vector<32x32xbf16>
    %260 = arith.truncf %258 : vector<8x32xf32> to vector<8x32xbf16>
    %cst_163 = arith.constant dense<0.000000e+00> : vector<8x32xf32>
    %261 = tpu.matmul %260, %259, %cst_163 {dimension_numbers = #tpu.dot_dimension_numbers<[1], [0], [0], [1], [0, 0, 1, 1], [], []>} : vector<8x32xbf16>, vector<32x32xbf16>, vector<8x32xf32> -> vector<8x32xf32>
    %c0_164 = arith.constant 0 : index
    %c0_165 = arith.constant 0 : index
    %262 = vector.load %arg24[%c0_164, %c0_165] : memref<1x32xf32, #tpu.memory_space<vmem>>, vector<1x32xf32>
    %263 = vector.broadcast %262 : vector<1x32xf32> to vector<8x32xf32>
    %264 = arith.addf %261, %263 : vector<8x32xf32>
    %265 = arith.mulf %264, %264 : vector<8x32xf32>
    %266 = arith.mulf %264, %265 : vector<8x32xf32>
    %cst_166 = arith.constant 4.471500e-02 : f32
    %267 = vector.broadcast %cst_166 : f32 to vector<8x32xf32>
    %268 = arith.mulf %267, %266 : vector<8x32xf32>
    %269 = arith.addf %264, %268 : vector<8x32xf32>
    %cst_167 = arith.constant 0.797884583 : f32
    %270 = vector.broadcast %cst_167 : f32 to vector<8x32xf32>
    %271 = arith.mulf %270, %269 : vector<8x32xf32>
    %272 = math.tanh %271 : vector<8x32xf32>
    %cst_168 = arith.constant 1.000000e+00 : f32
    %273 = vector.broadcast %cst_168 : f32 to vector<8x32xf32>
    %274 = arith.addf %273, %272 : vector<8x32xf32>
    %cst_169 = arith.constant 5.000000e-01 : f32
    %275 = vector.broadcast %cst_169 : f32 to vector<8x32xf32>
    %276 = arith.mulf %275, %274 : vector<8x32xf32>
    %277 = arith.mulf %264, %276 : vector<8x32xf32>
    %278 = arith.addf %29, %277 : vector<8x32xf32>
    %c0_170 = arith.constant 0 : index
    %c0_171 = arith.constant 0 : index
    %279 = vector.load %arg25[%c0_170, %c0_171] : memref<32x32xbf16, #tpu.memory_space<vmem>>, vector<32x32xbf16>
    %c0_172 = arith.constant 0 : index
    %c0_173 = arith.constant 0 : index
    %280 = vector.load %arg26[%c0_172, %c0_173] : memref<1x32xf32, #tpu.memory_space<vmem>>, vector<1x32xf32>
    %281 = arith.truncf %278 : vector<8x32xf32> to vector<8x32xbf16>
    %cst_174 = arith.constant dense<0.000000e+00> : vector<8x32xf32>
    %282 = tpu.matmul %281, %279, %cst_174 {dimension_numbers = #tpu.dot_dimension_numbers<[1], [0], [0], [1], [0, 0, 1, 1], [], []>} : vector<8x32xbf16>, vector<32x32xbf16>, vector<8x32xf32> -> vector<8x32xf32>
    %283 = vector.broadcast %280 : vector<1x32xf32> to vector<8x32xf32>
    %284 = arith.addf %282, %283 : vector<8x32xf32>
    %285 = arith.mulf %284, %284 : vector<8x32xf32>
    %286 = arith.mulf %284, %285 : vector<8x32xf32>
    %cst_175 = arith.constant 4.471500e-02 : f32
    %287 = vector.broadcast %cst_175 : f32 to vector<8x32xf32>
    %288 = arith.mulf %287, %286 : vector<8x32xf32>
    %289 = arith.addf %284, %288 : vector<8x32xf32>
    %cst_176 = arith.constant 0.797884583 : f32
    %290 = vector.broadcast %cst_176 : f32 to vector<8x32xf32>
    %291 = arith.mulf %290, %289 : vector<8x32xf32>
    %292 = math.tanh %291 : vector<8x32xf32>
    %cst_177 = arith.constant 1.000000e+00 : f32
    %293 = vector.broadcast %cst_177 : f32 to vector<8x32xf32>
    %294 = arith.addf %293, %292 : vector<8x32xf32>
    %cst_178 = arith.constant 5.000000e-01 : f32
    %295 = vector.broadcast %cst_178 : f32 to vector<8x32xf32>
    %296 = arith.mulf %295, %294 : vector<8x32xf32>
    %297 = arith.mulf %284, %296 : vector<8x32xf32>
    %298 = arith.truncf %297 : vector<8x32xf32> to vector<8x32xbf16>
    %cst_179 = arith.constant dense<0.000000e+00> : vector<8x32xf32>
    %299 = tpu.matmul %298, %279, %cst_179 {dimension_numbers = #tpu.dot_dimension_numbers<[1], [0], [0], [1], [0, 0, 1, 1], [], []>} : vector<8x32xbf16>, vector<32x32xbf16>, vector<8x32xf32> -> vector<8x32xf32>
    %300 = vector.broadcast %280 : vector<1x32xf32> to vector<8x32xf32>
    %301 = arith.addf %299, %300 : vector<8x32xf32>
    %302 = arith.mulf %301, %301 : vector<8x32xf32>
    %303 = arith.mulf %301, %302 : vector<8x32xf32>
    %cst_180 = arith.constant 4.471500e-02 : f32
    %304 = vector.broadcast %cst_180 : f32 to vector<8x32xf32>
    %305 = arith.mulf %304, %303 : vector<8x32xf32>
    %306 = arith.addf %301, %305 : vector<8x32xf32>
    %cst_181 = arith.constant 0.797884583 : f32
    %307 = vector.broadcast %cst_181 : f32 to vector<8x32xf32>
    %308 = arith.mulf %307, %306 : vector<8x32xf32>
    %309 = math.tanh %308 : vector<8x32xf32>
    %cst_182 = arith.constant 1.000000e+00 : f32
    %310 = vector.broadcast %cst_182 : f32 to vector<8x32xf32>
    %311 = arith.addf %310, %309 : vector<8x32xf32>
    %cst_183 = arith.constant 5.000000e-01 : f32
    %312 = vector.broadcast %cst_183 : f32 to vector<8x32xf32>
    %313 = arith.mulf %312, %311 : vector<8x32xf32>
    %314 = arith.mulf %301, %313 : vector<8x32xf32>
    %cst_184 = arith.constant dense<0xFF800000> : vector<32xf32>
    %315 = vector.multi_reduction <maximumf>, %314, %cst_184 [0] : vector<8x32xf32> to vector<32xf32>
    %316 = vector.shape_cast %315 : vector<32xf32> to vector<1x32xf32>
    %c0_185 = arith.constant 0 : index
    %c0_186 = arith.constant 0 : index
    %317 = vector.load %arg27[%c0_185, %c0_186] : memref<32x9xbf16, #tpu.memory_space<vmem>>, vector<32x9xbf16>
    %318 = arith.truncf %316 : vector<1x32xf32> to vector<1x32xbf16>
    %cst_187 = arith.constant dense<0.000000e+00> : vector<1x9xf32>
    %319 = tpu.matmul %318, %317, %cst_187 {dimension_numbers = #tpu.dot_dimension_numbers<[1], [0], [0], [1], [0, 0, 1, 1], [], []>} : vector<1x32xbf16>, vector<32x9xbf16>, vector<1x9xf32> -> vector<1x9xf32>
    %c0_188 = arith.constant 0 : index
    %c0_189 = arith.constant 0 : index
    %320 = vector.load %arg28[%c0_188, %c0_189] : memref<1x9xf32, #tpu.memory_space<vmem>>, vector<1x9xf32>
    %321 = arith.addf %319, %320 : vector<1x9xf32>
    %322 = arith.mulf %321, %321 : vector<1x9xf32>
    %323 = arith.mulf %321, %322 : vector<1x9xf32>
    %cst_190 = arith.constant 4.471500e-02 : f32
    %324 = vector.broadcast %cst_190 : f32 to vector<1x9xf32>
    %325 = arith.mulf %324, %323 : vector<1x9xf32>
    %326 = arith.addf %321, %325 : vector<1x9xf32>
    %cst_191 = arith.constant 0.797884583 : f32
    %327 = vector.broadcast %cst_191 : f32 to vector<1x9xf32>
    %328 = arith.mulf %327, %326 : vector<1x9xf32>
    %329 = math.tanh %328 : vector<1x9xf32>
    %cst_192 = arith.constant 1.000000e+00 : f32
    %330 = vector.broadcast %cst_192 : f32 to vector<1x9xf32>
    %331 = arith.addf %330, %329 : vector<1x9xf32>
    %cst_193 = arith.constant 5.000000e-01 : f32
    %332 = vector.broadcast %cst_193 : f32 to vector<1x9xf32>
    %333 = arith.mulf %332, %331 : vector<1x9xf32>
    %334 = arith.mulf %321, %333 : vector<1x9xf32>
    %c0_194 = arith.constant 0 : index
    %c0_195 = arith.constant 0 : index
    %c0_196 = arith.constant 0 : index
    %335 = vector.load %arg30[%c0_194, %c0_195, %c0_196] : memref<1x1x32xf32, #tpu.memory_space<vmem>>, vector<1x1x32xf32>
    %336 = vector.shape_cast %335 : vector<1x1x32xf32> to vector<1x32xf32>
    %337 = vector.shape_cast %316 : vector<1x32xf32> to vector<1x1x32xf32>
    tpu.vector_store %arg30[%c0_194, %c0_195, %c0_196], %337 {strides = array<i32>} : memref<1x1x32xf32, #tpu.memory_space<vmem>>, vector<1x1x32xf32>,
    %c0_197 = arith.constant 0 : index
    %c0_198 = arith.constant 0 : index
    %c0_199 = arith.constant 0 : index
    %338 = vector.load %arg29[%c0_197, %c0_198, %c0_199] : memref<1x1x9xf32, #tpu.memory_space<vmem>>, vector<1x1x9xf32>
    %339 = vector.shape_cast %338 : vector<1x1x9xf32> to vector<1x9xf32>
    %340 = vector.shape_cast %334 : vector<1x9xf32> to vector<1x1x9xf32>
    tpu.vector_store %arg29[%c0_197, %c0_198, %c0_199], %340 {strides = array<i32>} : memref<1x1x9xf32, #tpu.memory_space<vmem>>, vector<1x1x9xf32>,
    return
  }
  func.func @transform_0(%arg0: i32) -> (i32, i32, i32) {
    %c0_i32 = arith.constant 0 : i32
    %c0_i32_0 = arith.constant 0 : i32
    %c0_i32_1 = arith.constant 0 : i32
    return %arg0, %c0_i32, %c0_i32_0 : i32, i32, i32
  }
  func.func @transform_1(%arg0: i32) -> (i32, i32, i32) {
    %c0_i32 = arith.constant 0 : i32
    %c0_i32_0 = arith.constant 0 : i32
    %c0_i32_1 = arith.constant 0 : i32
    return %arg0, %c0_i32, %c0_i32_0 : i32, i32, i32
  }
  func.func @transform_2(%arg0: i32) -> (i32, i32, i32) {
    %c0_i32 = arith.constant 0 : i32
    %c0_i32_0 = arith.constant 0 : i32
    %c0_i32_1 = arith.constant 0 : i32
    return %arg0, %c0_i32, %c0_i32_0 : i32, i32, i32
  }
  func.func @transform_3(%arg0: i32) -> (i32, i32, i32) {
    %c0_i32 = arith.constant 0 : i32
    %c0_i32_0 = arith.constant 0 : i32
    %c0_i32_1 = arith.constant 0 : i32
    return %arg0, %c0_i32, %c0_i32_0 : i32, i32, i32
  }
  func.func @transform_4(%arg0: i32) -> (i32, i32) {
    %c0_i32 = arith.constant 0 : i32
    %c0_i32_0 = arith.constant 0 : i32
    %c0_i32_1 = arith.constant 0 : i32
    return %c0_i32, %c0_i32_0 : i32, i32
  }
  func.func @transform_5(%arg0: i32) -> (i32, i32) {
    %c0_i32 = arith.constant 0 : i32
    %c0_i32_0 = arith.constant 0 : i32
    %c0_i32_1 = arith.constant 0 : i32
    return %c0_i32, %c0_i32_0 : i32, i32
  }
  func.func @transform_6(%arg0: i32) -> (i32, i32) {
    %c0_i32 = arith.constant 0 : i32
    %c0_i32_0 = arith.constant 0 : i32
    %c0_i32_1 = arith.constant 0 : i32
    return %c0_i32, %c0_i32_0 : i32, i32
  }
  func.func @transform_7(%arg0: i32) -> (i32, i32) {
    %c0_i32 = arith.constant 0 : i32
    %c0_i32_0 = arith.constant 0 : i32
    %c0_i32_1 = arith.constant 0 : i32
    return %c0_i32, %c0_i32_0 : i32, i32
  }
  func.func @transform_8(%arg0: i32) -> (i32, i32) {
    %c0_i32 = arith.constant 0 : i32
    %c0_i32_0 = arith.constant 0 : i32
    %c0_i32_1 = arith.constant 0 : i32
    return %c0_i32, %c0_i32_0 : i32, i32
  }
  func.func @transform_9(%arg0: i32) -> (i32, i32) {
    %c0_i32 = arith.constant 0 : i32
    %c0_i32_0 = arith.constant 0 : i32
    %c0_i32_1 = arith.constant 0 : i32
    return %c0_i32, %c0_i32_0 : i32, i32
  }
  func.func @transform_10(%arg0: i32) -> (i32, i32) {
    %c0_i32 = arith.constant 0 : i32
    %c0_i32_0 = arith.constant 0 : i32
    %c0_i32_1 = arith.constant 0 : i32
    return %c0_i32, %c0_i32_0 : i32, i32
  }
  func.func @transform_11(%arg0: i32) -> (i32, i32) {
    %c0_i32 = arith.constant 0 : i32
    %c0_i32_0 = arith.constant 0 : i32
    %c0_i32_1 = arith.constant 0 : i32
    return %c0_i32, %c0_i32_0 : i32, i32
  }
  func.func @transform_12(%arg0: i32) -> (i32, i32) {
    %c0_i32 = arith.constant 0 : i32
    %c0_i32_0 = arith.constant 0 : i32
    %c0_i32_1 = arith.constant 0 : i32
    return %c0_i32, %c0_i32_0 : i32, i32
  }
  func.func @transform_13(%arg0: i32) -> (i32, i32) {
    %c0_i32 = arith.constant 0 : i32
    %c0_i32_0 = arith.constant 0 : i32
    %c0_i32_1 = arith.constant 0 : i32
    return %c0_i32, %c0_i32_0 : i32, i32
  }
  func.func @transform_14(%arg0: i32) -> (i32, i32) {
    %c0_i32 = arith.constant 0 : i32
    %c0_i32_0 = arith.constant 0 : i32
    %c0_i32_1 = arith.constant 0 : i32
    return %c0_i32, %c0_i32_0 : i32, i32
  }
  func.func @transform_15(%arg0: i32) -> (i32, i32, i32) {
    %c0_i32 = arith.constant 0 : i32
    %c0_i32_0 = arith.constant 0 : i32
    %c0_i32_1 = arith.constant 0 : i32
    %c0_i32_2 = arith.constant 0 : i32
    return %c0_i32, %c0_i32_0, %c0_i32_1 : i32, i32, i32
  }
  func.func @transform_16(%arg0: i32) -> (i32, i32, i32) {
    %c0_i32 = arith.constant 0 : i32
    %c0_i32_0 = arith.constant 0 : i32
    %c0_i32_1 = arith.constant 0 : i32
    %c0_i32_2 = arith.constant 0 : i32
    return %c0_i32, %c0_i32_0, %c0_i32_1 : i32, i32, i32
  }
  func.func @transform_17(%arg0: i32) -> (i32, i32, i32) {
    %c0_i32 = arith.constant 0 : i32
    %c0_i32_0 = arith.constant 0 : i32
    %c0_i32_1 = arith.constant 0 : i32
    %c0_i32_2 = arith.constant 0 : i32
    return %c0_i32, %c0_i32_0, %c0_i32_1 : i32, i32, i32
  }
  func.func @transform_18(%arg0: i32) -> (i32, i32, i32) {
    %c0_i32 = arith.constant 0 : i32
    %c0_i32_0 = arith.constant 0 : i32
    %c0_i32_1 = arith.constant 0 : i32
    %c0_i32_2 = arith.constant 0 : i32
    return %c0_i32, %c0_i32_0, %c0_i32_1 : i32, i32, i32
  }
  func.func @transform_19(%arg0: i32) -> (i32, i32, i32) {
    %c0_i32 = arith.constant 0 : i32
    %c0_i32_0 = arith.constant 0 : i32
    %c0_i32_1 = arith.constant 0 : i32
    %c0_i32_2 = arith.constant 0 : i32
    return %c0_i32, %c0_i32_0, %c0_i32_1 : i32, i32, i32
  }
  func.func @transform_20(%arg0: i32) -> (i32, i32, i32) {
    %c0_i32 = arith.constant 0 : i32
    %c0_i32_0 = arith.constant 0 : i32
    %c0_i32_1 = arith.constant 0 : i32
    %c0_i32_2 = arith.constant 0 : i32
    return %c0_i32, %c0_i32_0, %c0_i32_1 : i32, i32, i32
  }
  func.func @transform_21(%arg0: i32) -> (i32, i32, i32) {
    %c0_i32 = arith.constant 0 : i32
    %c0_i32_0 = arith.constant 0 : i32
    %c0_i32_1 = arith.constant 0 : i32
    %c0_i32_2 = arith.constant 0 : i32
    return %c0_i32, %c0_i32_0, %c0_i32_1 : i32, i32, i32
  }
  func.func @transform_22(%arg0: i32) -> (i32, i32) {
    %c0_i32 = arith.constant 0 : i32
    %c0_i32_0 = arith.constant 0 : i32
    %c0_i32_1 = arith.constant 0 : i32
    return %c0_i32, %c0_i32_0 : i32, i32
  }
  func.func @transform_23(%arg0: i32) -> (i32, i32) {
    %c0_i32 = arith.constant 0 : i32
    %c0_i32_0 = arith.constant 0 : i32
    %c0_i32_1 = arith.constant 0 : i32
    return %c0_i32, %c0_i32_0 : i32, i32
  }
  func.func @transform_24(%arg0: i32) -> (i32, i32) {
    %c0_i32 = arith.constant 0 : i32
    %c0_i32_0 = arith.constant 0 : i32
    %c0_i32_1 = arith.constant 0 : i32
    return %c0_i32, %c0_i32_0 : i32, i32
  }
  func.func @transform_25(%arg0: i32) -> (i32, i32) {
    %c0_i32 = arith.constant 0 : i32
    %c0_i32_0 = arith.constant 0 : i32
    %c0_i32_1 = arith.constant 0 : i32
    return %c0_i32, %c0_i32_0 : i32, i32
  }
  func.func @transform_26(%arg0: i32) -> (i32, i32) {
    %c0_i32 = arith.constant 0 : i32
    %c0_i32_0 = arith.constant 0 : i32
    %c0_i32_1 = arith.constant 0 : i32
    return %c0_i32, %c0_i32_0 : i32, i32
  }
  func.func @transform_27(%arg0: i32) -> (i32, i32) {
    %c0_i32 = arith.constant 0 : i32
    %c0_i32_0 = arith.constant 0 : i32
    %c0_i32_1 = arith.constant 0 : i32
    return %c0_i32, %c0_i32_0 : i32, i32
  }
  func.func @transform_28(%arg0: i32) -> (i32, i32, i32) {
    %c0_i32 = arith.constant 0 : i32
    %c0_i32_0 = arith.constant 0 : i32
    %c0_i32_1 = arith.constant 0 : i32
    return %arg0, %c0_i32, %c0_i32_0 : i32, i32, i32
  }
  func.func @transform_29(%arg0: i32) -> (i32, i32, i32) {
    %c0_i32 = arith.constant 0 : i32
    %c0_i32_0 = arith.constant 0 : i32
    %c0_i32_1 = arith.constant 0 : i32
    return %arg0, %c0_i32, %c0_i32_0 : i32, i32, i32
  }
}

</mosaic_0001>

<llo_original>
// kernel: tpu_custom_call.1
$region0: #{tpu_custom_call.1}
  #allocation0 [shape = 'u32[]', space=smem, size = 0x4, offset = 0x4, fixed_abs, tag = 'smem constant byte address 0x4 - core index']
  #allocation1 [shape = 'u32[72,128]{1,0:T(1,128)}', space=vmem, size = 0x9000, scoped, tag = 'internal scratch']
  %s0 = inlined_call_operand.smem [shape: u32[30], index: -1, kind: input, shape index: {}]
  %s1 = sld [smem:[%s0]]
  %s2 = scalar_lea.smem %s0, 1
  %s3 = sld [smem:[%s2]]
  %s4 = scalar_lea.smem %s0, 2
  %s5 = sld [smem:[%s4]]
  %s6 = scalar_lea.smem %s0, 3
  %s7 = sld [smem:[%s6]]
  %s8 = scalar_lea.smem %s0, 4
  %s9 = sld [smem:[%s8]]
  %s10 = scalar_lea.smem %s0, 5
  %s11 = sld [smem:[%s10]]
  %s12 = scalar_lea.smem %s0, 6
  %s13 = sld [smem:[%s12]]
  %s14 = scalar_lea.smem %s0, 7
  %s15 = sld [smem:[%s14]]
  %s16 = scalar_lea.smem %s0, 8
  %s17 = sld [smem:[%s16]]
  %s18 = scalar_lea.smem %s0, 9
  %s19 = sld [smem:[%s18]]
  %s20 = scalar_lea.smem %s0, 10
  %s21 = sld [smem:[%s20]]
  %s22 = scalar_lea.smem %s0, 11
  %s23 = sld [smem:[%s22]]
  %s24 = scalar_lea.smem %s0, 12
  %s25 = sld [smem:[%s24]]
  %s26 = scalar_lea.smem %s0, 13
  %s27 = sld [smem:[%s26]]
  %s28 = scalar_lea.smem %s0, 14
  %s29 = sld [smem:[%s28]]
  %s30 = scalar_lea.smem %s0, 15
  %s31 = sld [smem:[%s30]]
  %s32 = scalar_lea.smem %s0, 16
  %s33 = sld [smem:[%s32]]
  %s34 = scalar_lea.smem %s0, 17
  %s35 = sld [smem:[%s34]]
  %s36 = scalar_lea.smem %s0, 18
  %s37 = sld [smem:[%s36]]
  %s38 = scalar_lea.smem %s0, 19
  %s39 = sld [smem:[%s38]]
  %s40 = scalar_lea.smem %s0, 20
  %s41 = sld [smem:[%s40]]
  %s42 = scalar_lea.smem %s0, 21
  %s43 = sld [smem:[%s42]]
  %s44 = scalar_lea.smem %s0, 22
  %s45 = sld [smem:[%s44]]
  %s46 = scalar_lea.smem %s0, 23
  %s47 = sld [smem:[%s46]]
  %s48 = scalar_lea.smem %s0, 24
  %s49 = sld [smem:[%s48]]
  %s50 = scalar_lea.smem %s0, 25
  %s51 = sld [smem:[%s50]]
  %s52 = scalar_lea.smem %s0, 26
  %s53 = sld [smem:[%s52]]
  %s54 = scalar_lea.smem %s0, 27
  %s55 = sld [smem:[%s54]]
  %s56 = scalar_lea.smem %s0, 28
  %s57 = sld [smem:[%s56]]
  %s58 = scalar_lea.smem %s0, 29
  %s59 = sld [smem:[%s58]]
  %60 = xla_tuple %s57, %s59
  %s61 = sld [smem:[#allocation0]]
  $region153: #{tpu_custom_call.1} parent=0
    _
  %s63 = ssub.s32 1, %s61
  %s64 = scalar_select 0, %s63, %s61
  $region1: #{tpu_custom_call.1} parent=0
    #allocation2 [shape = 'u8[1024]{0}', space=vmem, size = 0x400, scoped, tag = 'output window, operand 0']
    #allocation3 [shape = 's32[2]{0}', space=sflag, size = 0x8, scoped, tag = 'scoped memory for tpu_custom_call.1']
    #allocation4 [shape = 'u8[1024]{0}', space=vmem, size = 0x400, scoped, tag = 'output window, operand 1']
    #allocation5 [shape = 's32[2]{0}', space=sflag, size = 0x8, scoped, tag = 'scoped memory for tpu_custom_call.1']
    %65 = vsyncpa [#allocation3], 0
    %s66 = scalar_lea.sflag [#allocation3], 1
    %67 = vsyncpa %s66, 0
    %68 = vsyncpa [#allocation5], 0
    %s69 = scalar_lea.sflag [#allocation5], 1
    %70 = vsyncpa %s69, 0
    loop: start=0, step=1, limit=4
    $region2: #{tpu_custom_call.1} parent=1 // loop_pre_header
      _
    $region3: #{tpu_custom_call.1} parent=1 // loop_header
      %s72 = sphi 0, %s76
      %p73 = scmp.ge.s32.totalorder %s72, 4
      %s82 = sphi 0, %s84
      %s85 = sphi 0, %s82
      %s86 = sphi 0, %s85
      %s102 = sphi 0, %s86
      %s108 = sphi 0, %s110
      %s111 = sphi 0, %s108
      %s112 = sphi 0, %s111
      %s128 = sphi 0, %s112
      %s134 = sphi 0, %s136
      %s137 = sphi 0, %s134
      %s138 = sphi 0, %s137
      %s154 = sphi 0, %s138
      %s160 = sphi 0, %s162
      %s163 = sphi 0, %s160
      %s164 = sphi 0, %s163
      %s180 = sphi 0, %s164
      %s184 = sphi 0, %s184
      %s186 = sphi 0, %s184
      %s187 = sphi 0, %s186
      %s201 = sphi 0, %s187
      %s205 = sphi 0, %s205
      %s207 = sphi 0, %s205
      %s208 = sphi 0, %s207
      %s222 = sphi 0, %s208
      %s226 = sphi 0, %s226
      %s228 = sphi 0, %s226
      %s229 = sphi 0, %s228
      %s243 = sphi 0, %s229
      %s247 = sphi 0, %s247
      %s249 = sphi 0, %s247
      %s250 = sphi 0, %s249
      %s264 = sphi 0, %s250
      %s268 = sphi 0, %s268
      %s270 = sphi 0, %s268
      %s271 = sphi 0, %s270
      %s285 = sphi 0, %s271
      %s289 = sphi 0, %s289
      %s291 = sphi 0, %s289
      %s292 = sphi 0, %s291
      %s306 = sphi 0, %s292
      %s310 = sphi 0, %s310
      %s312 = sphi 0, %s310
      %s313 = sphi 0, %s312
      %s327 = sphi 0, %s313
      %s331 = sphi 0, %s331
      %s333 = sphi 0, %s331
      %s334 = sphi 0, %s333
      %s348 = sphi 0, %s334
      %s352 = sphi 0, %s352
      %s354 = sphi 0, %s352
      %s355 = sphi 0, %s354
      %s369 = sphi 0, %s355
      %s373 = sphi 0, %s373
      %s375 = sphi 0, %s373
      %s376 = sphi 0, %s375
      %s390 = sphi 0, %s376
      %s394 = sphi 0, %s394
      %s396 = sphi 0, %s394
      %s397 = sphi 0, %s396
      %s411 = sphi 0, %s397
      %s415 = sphi 0, %s415
      %s417 = sphi 0, %s415
      %s418 = sphi 0, %s417
      %s432 = sphi 0, %s418
      %s436 = sphi 0, %s436
      %s438 = sphi 0, %s436
      %s439 = sphi 0, %s438
      %s453 = sphi 0, %s439
      %s457 = sphi 0, %s457
      %s459 = sphi 0, %s457
      %s460 = sphi 0, %s459
      %s474 = sphi 0, %s460
      %s478 = sphi 0, %s478
      %s480 = sphi 0, %s478
      %s481 = sphi 0, %s480
      %s495 = sphi 0, %s481
      %s499 = sphi 0, %s499
      %s501 = sphi 0, %s499
      %s502 = sphi 0, %s501
      %s516 = sphi 0, %s502
      %s520 = sphi 0, %s520
      %s522 = sphi 0, %s520
      %s523 = sphi 0, %s522
      %s537 = sphi 0, %s523
      %s541 = sphi 0, %s541
      %s543 = sphi 0, %s541
      %s544 = sphi 0, %s543
      %s558 = sphi 0, %s544
      %s562 = sphi 0, %s562
      %s564 = sphi 0, %s562
      %s565 = sphi 0, %s564
      %s579 = sphi 0, %s565
      %s583 = sphi 0, %s583
      %s585 = sphi 0, %s583
      %s586 = sphi 0, %s585
      %s600 = sphi 0, %s586
      %s604 = sphi 0, %s604
      %s606 = sphi 0, %s604
      %s607 = sphi 0, %s606
      %s621 = sphi 0, %s607
      %s625 = sphi 0, %s625
      %s627 = sphi 0, %s625
      %s628 = sphi 0, %s627
      %s642 = sphi 0, %s628
      %s646 = sphi 0, %s646
      %s648 = sphi 0, %s646
      %s649 = sphi 0, %s648
      %s663 = sphi 0, %s649
      %s667 = sphi 0, %s667
      %s669 = sphi 0, %s667
      %s670 = sphi 0, %s669
      %s684 = sphi 0, %s670
      %s690 = sphi 0, %s692
      %s693 = sphi 0, %s690
      %s694 = sphi 0, %s693
      %s710 = sphi 0, %s694
      %s716 = sphi 0, %s718
      %s719 = sphi 0, %s716
      %s720 = sphi 0, %s719
      %s736 = sphi 0, %s720
    $region4: #{tpu_custom_call.1} parent=1 // loop_header_branch
      %75 = sbr.rel (%p73) target = $region8
    $region5: #{tpu_custom_call.1} parent=1 // loop_body
      %s77 = ssub.s32 %s72, 1
      %s78 = ssub.s32 %s72, 2
      %s79 = sadd.s32 %s72, 1
      %s80 = ssub.s32 %s72, %s79
      %p81 = scmp.eq.s32.totalorder %s80, 0
      %s83 = sadd.s32 %s82, 1
      %s84 = scalar_select %p81, %s82, %s83
      %p87 = pneg %p81
      %p88 = scmp.eq.s32.totalorder %s72, 1
      %p89 = por %p87, %p88
      %p90 = scmp.ne.s32.totalorder %s82, %s85
      %p91 = scmp.eq.s32.totalorder %s72, 0
      %p92 = por %p90, %p91
      %p93 = scmp.ne.s32.totalorder %s82, %s85
      %p94 = scmp.eq.s32.totalorder %s77, 1
      %p95 = por %p93, %p94
      %p96 = scmp.ne.s32.totalorder %s85, %s86
      %p97 = scmp.eq.s32.totalorder %s77, 0
      %p98 = por %p96, %p97
      %p99 = scmp.ne.s32.totalorder %s85, %s86
      %p100 = scmp.eq.s32.totalorder %s78, 1
      %p101 = por %p99, %p100
      %p103 = scmp.ne.s32.totalorder %s86, %s102
      %p104 = scmp.eq.s32.totalorder %s78, 0
      %p105 = por %p103, %p104
      %s106 = ssub.s32 %s72, %s79
      %p107 = scmp.eq.s32.totalorder %s106, 0
      %s109 = sadd.s32 %s108, 1
      %s110 = scalar_select %p107, %s108, %s109
      %p113 = pneg %p107
      %p114 = scmp.eq.s32.totalorder %s72, 1
      %p115 = por %p113, %p114
      %p116 = scmp.ne.s32.totalorder %s108, %s111
      %p117 = scmp.eq.s32.totalorder %s72, 0
      %p118 = por %p116, %p117
      %p119 = scmp.ne.s32.totalorder %s108, %s111
      %p120 = scmp.eq.s32.totalorder %s77, 1
      %p121 = por %p119, %p120
      %p122 = scmp.ne.s32.totalorder %s111, %s112
      %p123 = scmp.eq.s32.totalorder %s77, 0
      %p124 = por %p122, %p123
      %p125 = scmp.ne.s32.totalorder %s111, %s112
      %p126 = scmp.eq.s32.totalorder %s78, 1
      %p127 = por %p125, %p126
      %p129 = scmp.ne.s32.totalorder %s112, %s128
      %p130 = scmp.eq.s32.totalorder %s78, 0
      %p131 = por %p129, %p130
      %s132 = ssub.s32 %s72, %s79
      %p133 = scmp.eq.s32.totalorder %s132, 0
      %s135 = sadd.s32 %s134, 1
      %s136 = scalar_select %p133, %s134, %s135
      %p139 = pneg %p133
      %p140 = scmp.eq.s32.totalorder %s72, 1
      %p141 = por %p139, %p140
      %p142 = scmp.ne.s32.totalorder %s134, %s137
      %p143 = scmp.eq.s32.totalorder %s72, 0
      %p144 = por %p142, %p143
      %p145 = scmp.ne.s32.totalorder %s134, %s137
      %p146 = scmp.eq.s32.totalorder %s77, 1
      %p147 = por %p145, %p146
      %p148 = scmp.ne.s32.totalorder %s137, %s138
      %p149 = scmp.eq.s32.totalorder %s77, 0
      %p150 = por %p148, %p149
      %p151 = scmp.ne.s32.totalorder %s137, %s138
      %p152 = scmp.eq.s32.totalorder %s78, 1
      %p153 = por %p151, %p152
      %p155 = scmp.ne.s32.totalorder %s138, %s154
      %p156 = scmp.eq.s32.totalorder %s78, 0
      %p157 = por %p155, %p156
      %s158 = ssub.s32 %s72, %s79
      %p159 = scmp.eq.s32.totalorder %s158, 0
      %s161 = sadd.s32 %s160, 1
      %s162 = scalar_select %p159, %s160, %s161
      %p165 = pneg %p159
      %p166 = scmp.eq.s32.totalorder %s72, 1
      %p167 = por %p165, %p166
      %p168 = scmp.ne.s32.totalorder %s160, %s163
      %p169 = scmp.eq.s32.totalorder %s72, 0
      %p170 = por %p168, %p169
      %p171 = scmp.ne.s32.totalorder %s160, %s163
      %p172 = scmp.eq.s32.totalorder %s77, 1
      %p173 = por %p171, %p172
      %p174 = scmp.ne.s32.totalorder %s163, %s164
      %p175 = scmp.eq.s32.totalorder %s77, 0
      %p176 = por %p174, %p175
      %p177 = scmp.ne.s32.totalorder %s163, %s164
      %p178 = scmp.eq.s32.totalorder %s78, 1
      %p179 = por %p177, %p178
      %p181 = scmp.ne.s32.totalorder %s164, %s180
      %p182 = scmp.eq.s32.totalorder %s78, 0
      %p183 = por %p181, %p182
      %s185 = sadd.s32 %s184, 1
      %p188 = scmp.eq.s32.totalorder %s72, 1
      %p189 = scmp.ne.s32.totalorder %s184, %s186
      %p190 = scmp.eq.s32.totalorder %s72, 0
      %p191 = por %p189, %p190
      %p192 = scmp.ne.s32.totalorder %s184, %s186
      %p193 = scmp.eq.s32.totalorder %s77, 1
      %p194 = por %p192, %p193
      %p195 = scmp.ne.s32.totalorder %s186, %s187
      %p196 = scmp.eq.s32.totalorder %s77, 0
      %p197 = por %p195, %p196
      %p198 = scmp.ne.s32.totalorder %s186, %s187
      %p199 = scmp.eq.s32.totalorder %s78, 1
      %p200 = por %p198, %p199
      %p202 = scmp.ne.s32.totalorder %s187, %s201
      %p203 = scmp.eq.s32.totalorder %s78, 0
      %p204 = por %p202, %p203
      %s206 = sadd.s32 %s205, 1
      %p209 = scmp.eq.s32.totalorder %s72, 1
      %p210 = scmp.ne.s32.totalorder %s205, %s207
      %p211 = scmp.eq.s32.totalorder %s72, 0
      %p212 = por %p210, %p211
      %p213 = scmp.ne.s32.totalorder %s205, %s207
      %p214 = scmp.eq.s32.totalorder %s77, 1
      %p215 = por %p213, %p214
      %p216 = scmp.ne.s32.totalorder %s207, %s208
      %p217 = scmp.eq.s32.totalorder %s77, 0
      %p218 = por %p216, %p217
      %p219 = scmp.ne.s32.totalorder %s207, %s208
      %p220 = scmp.eq.s32.totalorder %s78, 1
      %p221 = por %p219, %p220
      %p223 = scmp.ne.s32.totalorder %s208, %s222
      %p224 = scmp.eq.s32.totalorder %s78, 0
      %p225 = por %p223, %p224
      %s227 = sadd.s32 %s226, 1
      %p230 = scmp.eq.s32.totalorder %s72, 1
      %p231 = scmp.ne.s32.totalorder %s226, %s228
      %p232 = scmp.eq.s32.totalorder %s72, 0
      %p233 = por %p231, %p232
      %p234 = scmp.ne.s32.totalorder %s226, %s228
      %p235 = scmp.eq.s32.totalorder %s77, 1
      %p236 = por %p234, %p235
      %p237 = scmp.ne.s32.totalorder %s228, %s229
      %p238 = scmp.eq.s32.totalorder %s77, 0
      %p239 = por %p237, %p238
      %p240 = scmp.ne.s32.totalorder %s228, %s229
      %p241 = scmp.eq.s32.totalorder %s78, 1
      %p242 = por %p240, %p241
      %p244 = scmp.ne.s32.totalorder %s229, %s243
      %p245 = scmp.eq.s32.totalorder %s78, 0
      %p246 = por %p244, %p245
      %s248 = sadd.s32 %s247, 1
      %p251 = scmp.eq.s32.totalorder %s72, 1
      %p252 = scmp.ne.s32.totalorder %s247, %s249
      %p253 = scmp.eq.s32.totalorder %s72, 0
      %p254 = por %p252, %p253
      %p255 = scmp.ne.s32.totalorder %s247, %s249
      %p256 = scmp.eq.s32.totalorder %s77, 1
      %p257 = por %p255, %p256
      %p258 = scmp.ne.s32.totalorder %s249, %s250
      %p259 = scmp.eq.s32.totalorder %s77, 0
      %p260 = por %p258, %p259
      %p261 = scmp.ne.s32.totalorder %s249, %s250
      %p262 = scmp.eq.s32.totalorder %s78, 1
      %p263 = por %p261, %p262
      %p265 = scmp.ne.s32.totalorder %s250, %s264
      %p266 = scmp.eq.s32.totalorder %s78, 0
      %p267 = por %p265, %p266
      %s269 = sadd.s32 %s268, 1
      %p272 = scmp.eq.s32.totalorder %s72, 1
      %p273 = scmp.ne.s32.totalorder %s268, %s270
      %p274 = scmp.eq.s32.totalorder %s72, 0
      %p275 = por %p273, %p274
      %p276 = scmp.ne.s32.totalorder %s268, %s270
      %p277 = scmp.eq.s32.totalorder %s77, 1
      %p278 = por %p276, %p277
      %p279 = scmp.ne.s32.totalorder %s270, %s271
      %p280 = scmp.eq.s32.totalorder %s77, 0
      %p281 = por %p279, %p280
      %p282 = scmp.ne.s32.totalorder %s270, %s271
      %p283 = scmp.eq.s32.totalorder %s78, 1
      %p284 = por %p282, %p283
      %p286 = scmp.ne.s32.totalorder %s271, %s285
      %p287 = scmp.eq.s32.totalorder %s78, 0
      %p288 = por %p286, %p287
      %s290 = sadd.s32 %s289, 1
      %p293 = scmp.eq.s32.totalorder %s72, 1
      %p294 = scmp.ne.s32.totalorder %s289, %s291
      %p295 = scmp.eq.s32.totalorder %s72, 0
      %p296 = por %p294, %p295
      %p297 = scmp.ne.s32.totalorder %s289, %s291
      %p298 = scmp.eq.s32.totalorder %s77, 1
      %p299 = por %p297, %p298
      %p300 = scmp.ne.s32.totalorder %s291, %s292
      %p301 = scmp.eq.s32.totalorder %s77, 0
      %p302 = por %p300, %p301
      %p303 = scmp.ne.s32.totalorder %s291, %s292
      %p304 = scmp.eq.s32.totalorder %s78, 1
      %p305 = por %p303, %p304
      %p307 = scmp.ne.s32.totalorder %s292, %s306
      %p308 = scmp.eq.s32.totalorder %s78, 0
      %p309 = por %p307, %p308
      %s311 = sadd.s32 %s310, 1
      %p314 = scmp.eq.s32.totalorder %s72, 1
      %p315 = scmp.ne.s32.totalorder %s310, %s312
      %p316 = scmp.eq.s32.totalorder %s72, 0
      %p317 = por %p315, %p316
      %p318 = scmp.ne.s32.totalorder %s310, %s312
      %p319 = scmp.eq.s32.totalorder %s77, 1
      %p320 = por %p318, %p319
      %p321 = scmp.ne.s32.totalorder %s312, %s313
      %p322 = scmp.eq.s32.totalorder %s77, 0
      %p323 = por %p321, %p322
      %p324 = scmp.ne.s32.totalorder %s312, %s313
      %p325 = scmp.eq.s32.totalorder %s78, 1
      %p326 = por %p324, %p325
      %p328 = scmp.ne.s32.totalorder %s313, %s327
      %p329 = scmp.eq.s32.totalorder %s78, 0
      %p330 = por %p328, %p329
      %s332 = sadd.s32 %s331, 1
      %p335 = scmp.eq.s32.totalorder %s72, 1
      %p336 = scmp.ne.s32.totalorder %s331, %s333
      %p337 = scmp.eq.s32.totalorder %s72, 0
      %p338 = por %p336, %p337
      %p339 = scmp.ne.s32.totalorder %s331, %s333
      %p340 = scmp.eq.s32.totalorder %s77, 1
      %p341 = por %p339, %p340
      %p342 = scmp.ne.s32.totalorder %s333, %s334
      %p343 = scmp.eq.s32.totalorder %s77, 0
      %p344 = por %p342, %p343
      %p345 = scmp.ne.s32.totalorder %s333, %s334
      %p346 = scmp.eq.s32.totalorder %s78, 1
      %p347 = por %p345, %p346
      %p349 = scmp.ne.s32.totalorder %s334, %s348
      %p350 = scmp.eq.s32.totalorder %s78, 0
      %p351 = por %p349, %p350
      %s353 = sadd.s32 %s352, 1
      %p356 = scmp.eq.s32.totalorder %s72, 1
      %p357 = scmp.ne.s32.totalorder %s352, %s354
      %p358 = scmp.eq.s32.totalorder %s72, 0
      %p359 = por %p357, %p358
      %p360 = scmp.ne.s32.totalorder %s352, %s354
      %p361 = scmp.eq.s32.totalorder %s77, 1
      %p362 = por %p360, %p361
      %p363 = scmp.ne.s32.totalorder %s354, %s355
      %p364 = scmp.eq.s32.totalorder %s77, 0
      %p365 = por %p363, %p364
      %p366 = scmp.ne.s32.totalorder %s354, %s355
      %p367 = scmp.eq.s32.totalorder %s78, 1
      %p368 = por %p366, %p367
      %p370 = scmp.ne.s32.totalorder %s355, %s369
      %p371 = scmp.eq.s32.totalorder %s78, 0
      %p372 = por %p370, %p371
      %s374 = sadd.s32 %s373, 1
      %p377 = scmp.eq.s32.totalorder %s72, 1
      %p378 = scmp.ne.s32.totalorder %s373, %s375
      %p379 = scmp.eq.s32.totalorder %s72, 0
      %p380 = por %p378, %p379
      %p381 = scmp.ne.s32.totalorder %s373, %s375
      %p382 = scmp.eq.s32.totalorder %s77, 1
      %p383 = por %p381, %p382
      %p384 = scmp.ne.s32.totalorder %s375, %s376
      %p385 = scmp.eq.s32.totalorder %s77, 0
      %p386 = por %p384, %p385
      %p387 = scmp.ne.s32.totalorder %s375, %s376
      %p388 = scmp.eq.s32.totalorder %s78, 1
      %p389 = por %p387, %p388
      %p391 = scmp.ne.s32.totalorder %s376, %s390
      %p392 = scmp.eq.s32.totalorder %s78, 0
      %p393 = por %p391, %p392
      %s395 = sadd.s32 %s394, 1
      %p398 = scmp.eq.s32.totalorder %s72, 1
      %p399 = scmp.ne.s32.totalorder %s394, %s396
      %p400 = scmp.eq.s32.totalorder %s72, 0
      %p401 = por %p399, %p400
      %p402 = scmp.ne.s32.totalorder %s394, %s396
      %p403 = scmp.eq.s32.totalorder %s77, 1
      %p404 = por %p402, %p403
      %p405 = scmp.ne.s32.totalorder %s396, %s397
      %p406 = scmp.eq.s32.totalorder %s77, 0
      %p407 = por %p405, %p406
      %p408 = scmp.ne.s32.totalorder %s396, %s397
      %p409 = scmp.eq.s32.totalorder %s78, 1
      %p410 = por %p408, %p409
      %p412 = scmp.ne.s32.totalorder %s397, %s411
      %p413 = scmp.eq.s32.totalorder %s78, 0
      %p414 = por %p412, %p413
      %s416 = sadd.s32 %s415, 1
      %p419 = scmp.eq.s32.totalorder %s72, 1
      %p420 = scmp.ne.s32.totalorder %s415, %s417
      %p421 = scmp.eq.s32.totalorder %s72, 0
      %p422 = por %p420, %p421
      %p423 = scmp.ne.s32.totalorder %s415, %s417
      %p424 = scmp.eq.s32.totalorder %s77, 1
      %p425 = por %p423, %p424
      %p426 = scmp.ne.s32.totalorder %s417, %s418
      %p427 = scmp.eq.s32.totalorder %s77, 0
      %p428 = por %p426, %p427
      %p429 = scmp.ne.s32.totalorder %s417, %s418
      %p430 = scmp.eq.s32.totalorder %s78, 1
      %p431 = por %p429, %p430
      %p433 = scmp.ne.s32.totalorder %s418, %s432
      %p434 = scmp.eq.s32.totalorder %s78, 0
      %p435 = por %p433, %p434
      %s437 = sadd.s32 %s436, 1
      %p440 = scmp.eq.s32.totalorder %s72, 1
      %p441 = scmp.ne.s32.totalorder %s436, %s438
      %p442 = scmp.eq.s32.totalorder %s72, 0
      %p443 = por %p441, %p442
      %p444 = scmp.ne.s32.totalorder %s436, %s438
      %p445 = scmp.eq.s32.totalorder %s77, 1
      %p446 = por %p444, %p445
      %p447 = scmp.ne.s32.totalorder %s438, %s439
      %p448 = scmp.eq.s32.totalorder %s77, 0
      %p449 = por %p447, %p448
      %p450 = scmp.ne.s32.totalorder %s438, %s439
      %p451 = scmp.eq.s32.totalorder %s78, 1
      %p452 = por %p450, %p451
      %p454 = scmp.ne.s32.totalorder %s439, %s453
      %p455 = scmp.eq.s32.totalorder %s78, 0
      %p456 = por %p454, %p455
      %s458 = sadd.s32 %s457, 1
      %p461 = scmp.eq.s32.totalorder %s72, 1
      %p462 = scmp.ne.s32.totalorder %s457, %s459
      %p463 = scmp.eq.s32.totalorder %s72, 0
      %p464 = por %p462, %p463
      %p465 = scmp.ne.s32.totalorder %s457, %s459
      %p466 = scmp.eq.s32.totalorder %s77, 1
      %p467 = por %p465, %p466
      %p468 = scmp.ne.s32.totalorder %s459, %s460
      %p469 = scmp.eq.s32.totalorder %s77, 0
      %p470 = por %p468, %p469
      %p471 = scmp.ne.s32.totalorder %s459, %s460
      %p472 = scmp.eq.s32.totalorder %s78, 1
      %p473 = por %p471, %p472
      %p475 = scmp.ne.s32.totalorder %s460, %s474
      %p476 = scmp.eq.s32.totalorder %s78, 0
      %p477 = por %p475, %p476
      %s479 = sadd.s32 %s478, 1
      %p482 = scmp.eq.s32.totalorder %s72, 1
      %p483 = scmp.ne.s32.totalorder %s478, %s480
      %p484 = scmp.eq.s32.totalorder %s72, 0
      %p485 = por %p483, %p484
      %p486 = scmp.ne.s32.totalorder %s478, %s480
      %p487 = scmp.eq.s32.totalorder %s77, 1
      %p488 = por %p486, %p487
      %p489 = scmp.ne.s32.totalorder %s480, %s481
      %p490 = scmp.eq.s32.totalorder %s77, 0
      %p491 = por %p489, %p490
      %p492 = scmp.ne.s32.totalorder %s480, %s481
      %p493 = scmp.eq.s32.totalorder %s78, 1
      %p494 = por %p492, %p493
      %p496 = scmp.ne.s32.totalorder %s481, %s495
      %p497 = scmp.eq.s32.totalorder %s78, 0
      %p498 = por %p496, %p497
      %s500 = sadd.s32 %s499, 1
      %p503 = scmp.eq.s32.totalorder %s72, 1
      %p504 = scmp.ne.s32.totalorder %s499, %s501
      %p505 = scmp.eq.s32.totalorder %s72, 0
      %p506 = por %p504, %p505
      %p507 = scmp.ne.s32.totalorder %s499, %s501
      %p508 = scmp.eq.s32.totalorder %s77, 1
      %p509 = por %p507, %p508
      %p510 = scmp.ne.s32.totalorder %s501, %s502
      %p511 = scmp.eq.s32.totalorder %s77, 0
      %p512 = por %p510, %p511
      %p513 = scmp.ne.s32.totalorder %s501, %s502
      %p514 = scmp.eq.s32.totalorder %s78, 1
      %p515 = por %p513, %p514
      %p517 = scmp.ne.s32.totalorder %s502, %s516
      %p518 = scmp.eq.s32.totalorder %s78, 0
      %p519 = por %p517, %p518
      %s521 = sadd.s32 %s520, 1
      %p524 = scmp.eq.s32.totalorder %s72, 1
      %p525 = scmp.ne.s32.totalorder %s520, %s522
      %p526 = scmp.eq.s32.totalorder %s72, 0
      %p527 = por %p525, %p526
      %p528 = scmp.ne.s32.totalorder %s520, %s522
      %p529 = scmp.eq.s32.totalorder %s77, 1
      %p530 = por %p528, %p529
      %p531 = scmp.ne.s32.totalorder %s522, %s523
      %p532 = scmp.eq.s32.totalorder %s77, 0
      %p533 = por %p531, %p532
      %p534 = scmp.ne.s32.totalorder %s522, %s523
      %p535 = scmp.eq.s32.totalorder %s78, 1
      %p536 = por %p534, %p535
      %p538 = scmp.ne.s32.totalorder %s523, %s537
      %p539 = scmp.eq.s32.totalorder %s78, 0
      %p540 = por %p538, %p539
      %s542 = sadd.s32 %s541, 1
      %p545 = scmp.eq.s32.totalorder %s72, 1
      %p546 = scmp.ne.s32.totalorder %s541, %s543
      %p547 = scmp.eq.s32.totalorder %s72, 0
      %p548 = por %p546, %p547
      %p549 = scmp.ne.s32.totalorder %s541, %s543
      %p550 = scmp.eq.s32.totalorder %s77, 1
      %p551 = por %p549, %p550
      %p552 = scmp.ne.s32.totalorder %s543, %s544
      %p553 = scmp.eq.s32.totalorder %s77, 0
      %p554 = por %p552, %p553
      %p555 = scmp.ne.s32.totalorder %s543, %s544
      %p556 = scmp.eq.s32.totalorder %s78, 1
      %p557 = por %p555, %p556
      %p559 = scmp.ne.s32.totalorder %s544, %s558
      %p560 = scmp.eq.s32.totalorder %s78, 0
      %p561 = por %p559, %p560
      %s563 = sadd.s32 %s562, 1
      %p566 = scmp.eq.s32.totalorder %s72, 1
      %p567 = scmp.ne.s32.totalorder %s562, %s564
      %p568 = scmp.eq.s32.totalorder %s72, 0
      %p569 = por %p567, %p568
      %p570 = scmp.ne.s32.totalorder %s562, %s564
      %p571 = scmp.eq.s32.totalorder %s77, 1
      %p572 = por %p570, %p571
      %p573 = scmp.ne.s32.totalorder %s564, %s565
      %p574 = scmp.eq.s32.totalorder %s77, 0
      %p575 = por %p573, %p574
      %p576 = scmp.ne.s32.totalorder %s564, %s565
      %p577 = scmp.eq.s32.totalorder %s78, 1
      %p578 = por %p576, %p577
      %p580 = scmp.ne.s32.totalorder %s565, %s579
      %p581 = scmp.eq.s32.totalorder %s78, 0
      %p582 = por %p580, %p581
      %s584 = sadd.s32 %s583, 1
      %p587 = scmp.eq.s32.totalorder %s72, 1
      %p588 = scmp.ne.s32.totalorder %s583, %s585
      %p589 = scmp.eq.s32.totalorder %s72, 0
      %p590 = por %p588, %p589
      %p591 = scmp.ne.s32.totalorder %s583, %s585
      %p592 = scmp.eq.s32.totalorder %s77, 1
      %p593 = por %p591, %p592
      %p594 = scmp.ne.s32.totalorder %s585, %s586
      %p595 = scmp.eq.s32.totalorder %s77, 0
      %p596 = por %p594, %p595
      %p597 = scmp.ne.s32.totalorder %s585, %s586
      %p598 = scmp.eq.s32.totalorder %s78, 1
      %p599 = por %p597, %p598
      %p601 = scmp.ne.s32.totalorder %s586, %s600
      %p602 = scmp.eq.s32.totalorder %s78, 0
      %p603 = por %p601, %p602
      %s605 = sadd.s32 %s604, 1
      %p608 = scmp.eq.s32.totalorder %s72, 1
      %p609 = scmp.ne.s32.totalorder %s604, %s606
      %p610 = scmp.eq.s32.totalorder %s72, 0
      %p611 = por %p609, %p610
      %p612 = scmp.ne.s32.totalorder %s604, %s606
      %p613 = scmp.eq.s32.totalorder %s77, 1
      %p614 = por %p612, %p613
      %p615 = scmp.ne.s32.totalorder %s606, %s607
      %p616 = scmp.eq.s32.totalorder %s77, 0
      %p617 = por %p615, %p616
      %p618 = scmp.ne.s32.totalorder %s606, %s607
      %p619 = scmp.eq.s32.totalorder %s78, 1
      %p620 = por %p618, %p619
      %p622 = scmp.ne.s32.totalorder %s607, %s621
      %p623 = scmp.eq.s32.totalorder %s78, 0
      %p624 = por %p622, %p623
      %s626 = sadd.s32 %s625, 1
      %p629 = scmp.eq.s32.totalorder %s72, 1
      %p630 = scmp.ne.s32.totalorder %s625, %s627
      %p631 = scmp.eq.s32.totalorder %s72, 0
      %p632 = por %p630, %p631
      %p633 = scmp.ne.s32.totalorder %s625, %s627
      %p634 = scmp.eq.s32.totalorder %s77, 1
      %p635 = por %p633, %p634
      %p636 = scmp.ne.s32.totalorder %s627, %s628
      %p637 = scmp.eq.s32.totalorder %s77, 0
      %p638 = por %p636, %p637
      %p639 = scmp.ne.s32.totalorder %s627, %s628
      %p640 = scmp.eq.s32.totalorder %s78, 1
      %p641 = por %p639, %p640
      %p643 = scmp.ne.s32.totalorder %s628, %s642
      %p644 = scmp.eq.s32.totalorder %s78, 0
      %p645 = por %p643, %p644
      %s647 = sadd.s32 %s646, 1
      %p650 = scmp.eq.s32.totalorder %s72, 1
      %p651 = scmp.ne.s32.totalorder %s646, %s648
      %p652 = scmp.eq.s32.totalorder %s72, 0
      %p653 = por %p651, %p652
      %p654 = scmp.ne.s32.totalorder %s646, %s648
      %p655 = scmp.eq.s32.totalorder %s77, 1
      %p656 = por %p654, %p655
      %p657 = scmp.ne.s32.totalorder %s648, %s649
      %p658 = scmp.eq.s32.totalorder %s77, 0
      %p659 = por %p657, %p658
      %p660 = scmp.ne.s32.totalorder %s648, %s649
      %p661 = scmp.eq.s32.totalorder %s78, 1
      %p662 = por %p660, %p661
      %p664 = scmp.ne.s32.totalorder %s649, %s663
      %p665 = scmp.eq.s32.totalorder %s78, 0
      %p666 = por %p664, %p665
      %s668 = sadd.s32 %s667, 1
      %p671 = scmp.eq.s32.totalorder %s72, 1
      %p672 = scmp.ne.s32.totalorder %s667, %s669
      %p673 = scmp.eq.s32.totalorder %s72, 0
      %p674 = por %p672, %p673
      %p675 = scmp.ne.s32.totalorder %s667, %s669
      %p676 = scmp.eq.s32.totalorder %s77, 1
      %p677 = por %p675, %p676
      %p678 = scmp.ne.s32.totalorder %s669, %s670
      %p679 = scmp.eq.s32.totalorder %s77, 0
      %p680 = por %p678, %p679
      %p681 = scmp.ne.s32.totalorder %s669, %s670
      %p682 = scmp.eq.s32.totalorder %s78, 1
      %p683 = por %p681, %p682
      %p685 = scmp.ne.s32.totalorder %s670, %s684
      %p686 = scmp.eq.s32.totalorder %s78, 0
      %p687 = por %p685, %p686
      %s688 = ssub.s32 %s72, %s79
      %p689 = scmp.eq.s32.totalorder %s688, 0
      %s691 = sadd.s32 %s690, 1
      %s692 = scalar_select %p689, %s690, %s691
      %p695 = pneg %p689
      %p696 = scmp.eq.s32.totalorder %s72, 1
      %p697 = por %p695, %p696
      %p698 = scmp.ne.s32.totalorder %s690, %s693
      %p699 = scmp.eq.s32.totalorder %s72, 0
      %p700 = por %p698, %p699
      %p701 = scmp.ne.s32.totalorder %s690, %s693
      %p702 = scmp.eq.s32.totalorder %s77, 1
      %p703 = por %p701, %p702
      %p704 = scmp.ne.s32.totalorder %s693, %s694
      %p705 = scmp.eq.s32.totalorder %s77, 0
      %p706 = por %p704, %p705
      %p707 = scmp.ne.s32.totalorder %s693, %s694
      %p708 = scmp.eq.s32.totalorder %s78, 1
      %p709 = por %p707, %p708
      %p711 = scmp.ne.s32.totalorder %s694, %s710
      %p712 = scmp.eq.s32.totalorder %s78, 0
      %p713 = por %p711, %p712
      %s714 = ssub.s32 %s72, %s79
      %p715 = scmp.eq.s32.totalorder %s714, 0
      %s717 = sadd.s32 %s716, 1
      %s718 = scalar_select %p715, %s716, %s717
      %p721 = pneg %p715
      %p722 = scmp.eq.s32.totalorder %s72, 1
      %p723 = por %p721, %p722
      %p724 = scmp.ne.s32.totalorder %s716, %s719
      %p725 = scmp.eq.s32.totalorder %s72, 0
      %p726 = por %p724, %p725
      %p727 = scmp.ne.s32.totalorder %s716, %s719
      %p728 = scmp.eq.s32.totalorder %s77, 1
      %p729 = por %p727, %p728
      %p730 = scmp.ne.s32.totalorder %s719, %s720
      %p731 = scmp.eq.s32.totalorder %s77, 0
      %p732 = por %p730, %p731
      %p733 = scmp.ne.s32.totalorder %s719, %s720
      %p734 = scmp.eq.s32.totalorder %s78, 1
      %p735 = por %p733, %p734
      %p737 = scmp.ne.s32.totalorder %s720, %s736
      %p738 = scmp.eq.s32.totalorder %s78, 0
      %p739 = por %p737, %p738
      %p740 = scmp.le.s32.totalorder 1, %s72
      %p741 = scmp.lt.s32.totalorder %s72, 3
      %p742 = pnand %p740, %p741
      %p743 = pneg %p742
      // Predicated region
      $region9: #{tpu_custom_call.1} parent=5 // pred_check
        _
      $region10: #{tpu_custom_call.1} parent=5 // pred_check_branch
        %745 = sbr.rel (%p742) target = $region12
      $region11: #{tpu_custom_call.1} parent=5 // pred_region
        %s746 = ssub.s32 %s72, 1
        // Predicated region
        $region13: #{tpu_custom_call.1} parent=11 // pred_check
          %p747 = pneg %p197
        $region14: #{tpu_custom_call.1} parent=11 // pred_check_branch
          %749 = sbr.rel (%p747) target = $region16
        $region15: #{tpu_custom_call.1} parent=11 // pred_region
          _
        $region16: #{tpu_custom_call.1} parent=11 // pred_fallthru
          _
        // Predicated region
        $region17: #{tpu_custom_call.1} parent=11 // pred_check
          %p750 = pneg %p218
        $region18: #{tpu_custom_call.1} parent=11 // pred_check_branch
          %752 = sbr.rel (%p750) target = $region20
        $region19: #{tpu_custom_call.1} parent=11 // pred_region
          _
        $region20: #{tpu_custom_call.1} parent=11 // pred_fallthru
          _
        // Predicated region
        $region21: #{tpu_custom_call.1} parent=11 // pred_check
          %p753 = pneg %p239
        $region22: #{tpu_custom_call.1} parent=11 // pred_check_branch
          %755 = sbr.rel (%p753) target = $region24
        $region23: #{tpu_custom_call.1} parent=11 // pred_region
          _
        $region24: #{tpu_custom_call.1} parent=11 // pred_fallthru
          _
        // Predicated region
        $region25: #{tpu_custom_call.1} parent=11 // pred_check
          %p756 = pneg %p260
        $region26: #{tpu_custom_call.1} parent=11 // pred_check_branch
          %758 = sbr.rel (%p756) target = $region28
        $region27: #{tpu_custom_call.1} parent=11 // pred_region
          _
        $region28: #{tpu_custom_call.1} parent=11 // pred_fallthru
          _
        // Predicated region
        $region29: #{tpu_custom_call.1} parent=11 // pred_check
          %p759 = pneg %p281
        $region30: #{tpu_custom_call.1} parent=11 // pred_check_branch
          %761 = sbr.rel (%p759) target = $region32
        $region31: #{tpu_custom_call.1} parent=11 // pred_region
          _
        $region32: #{tpu_custom_call.1} parent=11 // pred_fallthru
          _
        // Predicated region
        $region33: #{tpu_custom_call.1} parent=11 // pred_check
          %p762 = pneg %p302
        $region34: #{tpu_custom_call.1} parent=11 // pred_check_branch
          %764 = sbr.rel (%p762) target = $region36
        $region35: #{tpu_custom_call.1} parent=11 // pred_region
          _
        $region36: #{tpu_custom_call.1} parent=11 // pred_fallthru
          _
        // Predicated region
        $region37: #{tpu_custom_call.1} parent=11 // pred_check
          %p765 = pneg %p323
        $region38: #{tpu_custom_call.1} parent=11 // pred_check_branch
          %767 = sbr.rel (%p765) target = $region40
        $region39: #{tpu_custom_call.1} parent=11 // pred_region
          _
        $region40: #{tpu_custom_call.1} parent=11 // pred_fallthru
          _
        // Predicated region
        $region41: #{tpu_custom_call.1} parent=11 // pred_check
          %p768 = pneg %p344
        $region42: #{tpu_custom_call.1} parent=11 // pred_check_branch
          %770 = sbr.rel (%p768) target = $region44
        $region43: #{tpu_custom_call.1} parent=11 // pred_region
          _
        $region44: #{tpu_custom_call.1} parent=11 // pred_fallthru
          _
        // Predicated region
        $region45: #{tpu_custom_call.1} parent=11 // pred_check
          %p771 = pneg %p365
        $region46: #{tpu_custom_call.1} parent=11 // pred_check_branch
          %773 = sbr.rel (%p771) target = $region48
        $region47: #{tpu_custom_call.1} parent=11 // pred_region
          _
        $region48: #{tpu_custom_call.1} parent=11 // pred_fallthru
          _
        // Predicated region
        $region49: #{tpu_custom_call.1} parent=11 // pred_check
          %p774 = pneg %p386
        $region50: #{tpu_custom_call.1} parent=11 // pred_check_branch
          %776 = sbr.rel (%p774) target = $region52
        $region51: #{tpu_custom_call.1} parent=11 // pred_region
          _
        $region52: #{tpu_custom_call.1} parent=11 // pred_fallthru
          _
        // Predicated region
        $region53: #{tpu_custom_call.1} parent=11 // pred_check
          %p777 = pneg %p407
        $region54: #{tpu_custom_call.1} parent=11 // pred_check_branch
          %779 = sbr.rel (%p777) target = $region56
        $region55: #{tpu_custom_call.1} parent=11 // pred_region
          _
        $region56: #{tpu_custom_call.1} parent=11 // pred_fallthru
          _
        // Predicated region
        $region57: #{tpu_custom_call.1} parent=11 // pred_check
          %p780 = pneg %p428
        $region58: #{tpu_custom_call.1} parent=11 // pred_check_branch
          %782 = sbr.rel (%p780) target = $region60
        $region59: #{tpu_custom_call.1} parent=11 // pred_region
          _
        $region60: #{tpu_custom_call.1} parent=11 // pred_fallthru
          _
        // Predicated region
        $region61: #{tpu_custom_call.1} parent=11 // pred_check
          %p783 = pneg %p449
        $region62: #{tpu_custom_call.1} parent=11 // pred_check_branch
          %785 = sbr.rel (%p783) target = $region64
        $region63: #{tpu_custom_call.1} parent=11 // pred_region
          _
        $region64: #{tpu_custom_call.1} parent=11 // pred_fallthru
          _
        // Predicated region
        $region65: #{tpu_custom_call.1} parent=11 // pred_check
          %p786 = pneg %p470
        $region66: #{tpu_custom_call.1} parent=11 // pred_check_branch
          %788 = sbr.rel (%p786) target = $region68
        $region67: #{tpu_custom_call.1} parent=11 // pred_region
          _
        $region68: #{tpu_custom_call.1} parent=11 // pred_fallthru
          _
        // Predicated region
        $region69: #{tpu_custom_call.1} parent=11 // pred_check
          %p789 = pneg %p491
        $region70: #{tpu_custom_call.1} parent=11 // pred_check_branch
          %791 = sbr.rel (%p789) target = $region72
        $region71: #{tpu_custom_call.1} parent=11 // pred_region
          _
        $region72: #{tpu_custom_call.1} parent=11 // pred_fallthru
          _
        // Predicated region
        $region73: #{tpu_custom_call.1} parent=11 // pred_check
          %p792 = pneg %p512
        $region74: #{tpu_custom_call.1} parent=11 // pred_check_branch
          %794 = sbr.rel (%p792) target = $region76
        $region75: #{tpu_custom_call.1} parent=11 // pred_region
          _
        $region76: #{tpu_custom_call.1} parent=11 // pred_fallthru
          _
        // Predicated region
        $region77: #{tpu_custom_call.1} parent=11 // pred_check
          %p795 = pneg %p533
        $region78: #{tpu_custom_call.1} parent=11 // pred_check_branch
          %797 = sbr.rel (%p795) target = $region80
        $region79: #{tpu_custom_call.1} parent=11 // pred_region
          _
        $region80: #{tpu_custom_call.1} parent=11 // pred_fallthru
          _
        // Predicated region
        $region81: #{tpu_custom_call.1} parent=11 // pred_check
          %p798 = pneg %p554
        $region82: #{tpu_custom_call.1} parent=11 // pred_check_branch
          %800 = sbr.rel (%p798) target = $region84
        $region83: #{tpu_custom_call.1} parent=11 // pred_region
          _
        $region84: #{tpu_custom_call.1} parent=11 // pred_fallthru
          _
        // Predicated region
        $region85: #{tpu_custom_call.1} parent=11 // pred_check
          %p801 = pneg %p575
        $region86: #{tpu_custom_call.1} parent=11 // pred_check_branch
          %803 = sbr.rel (%p801) target = $region88
        $region87: #{tpu_custom_call.1} parent=11 // pred_region
          _
        $region88: #{tpu_custom_call.1} parent=11 // pred_fallthru
          _
        // Predicated region
        $region89: #{tpu_custom_call.1} parent=11 // pred_check
          %p804 = pneg %p596
        $region90: #{tpu_custom_call.1} parent=11 // pred_check_branch
          %806 = sbr.rel (%p804) target = $region92
        $region91: #{tpu_custom_call.1} parent=11 // pred_region
          _
        $region92: #{tpu_custom_call.1} parent=11 // pred_fallthru
          _
        // Predicated region
        $region93: #{tpu_custom_call.1} parent=11 // pred_check
          %p807 = pneg %p617
        $region94: #{tpu_custom_call.1} parent=11 // pred_check_branch
          %809 = sbr.rel (%p807) target = $region96
        $region95: #{tpu_custom_call.1} parent=11 // pred_region
          _
        $region96: #{tpu_custom_call.1} parent=11 // pred_fallthru
          _
        // Predicated region
        $region97: #{tpu_custom_call.1} parent=11 // pred_check
          %p810 = pneg %p638
        $region98: #{tpu_custom_call.1} parent=11 // pred_check_branch
          %812 = sbr.rel (%p810) target = $region100
        $region99: #{tpu_custom_call.1} parent=11 // pred_region
          _
        $region100: #{tpu_custom_call.1} parent=11 // pred_fallthru
          _
        // Predicated region
        $region101: #{tpu_custom_call.1} parent=11 // pred_check
          %p813 = pneg %p659
        $region102: #{tpu_custom_call.1} parent=11 // pred_check_branch
          %815 = sbr.rel (%p813) target = $region104
        $region103: #{tpu_custom_call.1} parent=11 // pred_region
          _
        $region104: #{tpu_custom_call.1} parent=11 // pred_fallthru
          _
        // Predicated region
        $region105: #{tpu_custom_call.1} parent=11 // pred_check
          %p816 = pneg %p680
        $region106: #{tpu_custom_call.1} parent=11 // pred_check_branch
          %818 = sbr.rel (%p816) target = $region108
        $region107: #{tpu_custom_call.1} parent=11 // pred_region
          _
        $region108: #{tpu_custom_call.1} parent=11 // pred_fallthru
          _
      $region12: #{tpu_custom_call.1} parent=5 // pred_fallthru
        _
      %p819 = scmp.lt.s32.totalorder %s72, 2
      // Predicated region
      $region109: #{tpu_custom_call.1} parent=5 // pred_check
        %p820 = pneg %p819
      $region110: #{tpu_custom_call.1} parent=5 // pred_check_branch
        %822 = sbr.rel (%p820) target = $region112
      $region111: #{tpu_custom_call.1} parent=5 // pred_region
        // Predicated region
        $region113: #{tpu_custom_call.1} parent=111 // pred_check
          %p823 = pneg %p92
        $region114: #{tpu_custom_call.1} parent=111 // pred_check_branch
          %825 = sbr.rel (%p823) target = $region116
        $region115: #{tpu_custom_call.1} parent=111 // pred_region
          %p826 = scmp.lt.s32.totalorder %s72, 1
          %s827 = scalar_select %p826, %s72, 1
          %s828 = smul.addr %s827, 2
          %s829 = smul.addr %s828, 8
          %s830 = scalar_lea.vmem %s1, %s829
        $region116: #{tpu_custom_call.1} parent=111 // pred_fallthru
          _
        // Predicated region
        $region117: #{tpu_custom_call.1} parent=111 // pred_check
          %p831 = pneg %p118
        $region118: #{tpu_custom_call.1} parent=111 // pred_check_branch
          %833 = sbr.rel (%p831) target = $region120
        $region119: #{tpu_custom_call.1} parent=111 // pred_region
          %p834 = scmp.lt.s32.totalorder %s72, 1
          %s835 = scalar_select %p834, %s72, 1
          %s836 = smul.addr %s835, 8
          %s837 = smul.addr %s836, 8
          %s838 = scalar_lea.vmem %s3, %s837
        $region120: #{tpu_custom_call.1} parent=111 // pred_fallthru
          _
        // Predicated region
        $region121: #{tpu_custom_call.1} parent=111 // pred_check
          %p839 = pneg %p144
        $region122: #{tpu_custom_call.1} parent=111 // pred_check_branch
          %841 = sbr.rel (%p839) target = $region124
        $region123: #{tpu_custom_call.1} parent=111 // pred_region
          %p842 = scmp.lt.s32.totalorder %s72, 1
          %s843 = scalar_select %p842, %s72, 1
          %s844 = smul.addr %s843, 8
          %s845 = smul.addr %s844, 8
          %s846 = scalar_lea.vmem %s5, %s845
        $region124: #{tpu_custom_call.1} parent=111 // pred_fallthru
          _
        // Predicated region
        $region125: #{tpu_custom_call.1} parent=111 // pred_check
          %p847 = pneg %p170
        $region126: #{tpu_custom_call.1} parent=111 // pred_check_branch
          %849 = sbr.rel (%p847) target = $region128
        $region127: #{tpu_custom_call.1} parent=111 // pred_region
          %p850 = scmp.lt.s32.totalorder %s72, 1
          %s851 = scalar_select %p850, %s72, 1
          %s852 = smul.addr %s851, 8
          %s853 = smul.addr %s852, 8
          %s854 = scalar_lea.vmem %s7, %s853
        $region128: #{tpu_custom_call.1} parent=111 // pred_fallthru
          _
      $region112: #{tpu_custom_call.1} parent=5 // pred_fallthru
        _
      %p855 = scmp.le.s32.totalorder 1, %s72
      %p856 = scmp.lt.s32.totalorder %s72, 3
      %p857 = pnand %p855, %p856
      %p858 = pneg %p857
      // Predicated region
      $region129: #{tpu_custom_call.1} parent=5 // pred_check
        _
      $region130: #{tpu_custom_call.1} parent=5 // pred_check_branch
        %860 = sbr.rel (%p857) target = $region132
      $region131: #{tpu_custom_call.1} parent=5 // pred_region
        %s861 = ssub.s32 %s72, 1
        %p862 = scmp.lt.s32.totalorder %s77, 1
        %s863 = scalar_select %p862, %s77, 1
        %s864 = smul.addr %s863, 2
        %s865 = smul.addr %s864, 8
        %s866 = scalar_lea.vmem %s1, %s865
        %p867 = pneg %p98
        %p868 = pneg %p95
        %p869 = scmp.lt.s32.totalorder %s77, 1
        %s870 = scalar_select %p869, %s77, 1
        %s871 = smul.addr %s870, 8
        %s872 = smul.addr %s871, 8
        %s873 = scalar_lea.vmem %s3, %s872
        %p874 = pneg %p124
        %p875 = pneg %p121
        %p876 = scmp.lt.s32.totalorder %s77, 1
        %s877 = scalar_select %p876, %s77, 1
        %s878 = smul.addr %s877, 8
        %s879 = smul.addr %s878, 8
        %s880 = scalar_lea.vmem %s5, %s879
        %p881 = pneg %p150
        %p882 = pneg %p147
        %p883 = scmp.lt.s32.totalorder %s77, 1
        %s884 = scalar_select %p883, %s77, 1
        %s885 = smul.addr %s884, 8
        %s886 = smul.addr %s885, 8
        %s887 = scalar_lea.vmem %s7, %s886
        %p888 = pneg %p176
        %p889 = pneg %p173
        %p890 = pneg %p197
        %p891 = pneg %p194
        %p892 = pneg %p218
        %p893 = pneg %p215
        %p894 = pneg %p239
        %p895 = pneg %p236
        %p896 = pneg %p260
        %p897 = pneg %p257
        %p898 = pneg %p281
        %p899 = pneg %p278
        %p900 = pneg %p302
        %p901 = pneg %p299
        %p902 = pneg %p323
        %p903 = pneg %p320
        %p904 = pneg %p344
        %p905 = pneg %p341
        %p906 = pneg %p365
        %p907 = pneg %p362
        %p908 = pneg %p386
        %p909 = pneg %p383
        %p910 = pneg %p407
        %p911 = pneg %p404
        %p912 = pneg %p428
        %p913 = pneg %p425
        %p914 = pneg %p449
        %p915 = pneg %p446
        %p916 = pneg %p470
        %p917 = pneg %p467
        %p918 = pneg %p491
        %p919 = pneg %p488
        %p920 = pneg %p512
        %p921 = pneg %p509
        %p922 = pneg %p533
        %p923 = pneg %p530
        %p924 = pneg %p554
        %p925 = pneg %p551
        %p926 = pneg %p575
        %p927 = pneg %p572
        %p928 = pneg %p596
        %p929 = pneg %p593
        %p930 = pneg %p617
        %p931 = pneg %p614
        %p932 = pneg %p638
        %p933 = pneg %p635
        %p934 = pneg %p659
        %p935 = pneg %p656
        %p936 = pneg %p680
        %p937 = pneg %p677
        %p938 = pneg %p706
        %p939 = pneg %p703
        %s940 = sand.u32 %s693, 1
        %s941 = scalar_lea.sflag [#allocation3], %s940
        %s942 = sand.u32 %s693, 1
        %s943 = scalar_lea.vmem [#allocation2], %s942
        %p944 = pneg %p732
        %p945 = pneg %p729
        %s946 = sand.u32 %s719, 1
        %s947 = scalar_lea.sflag [#allocation5], %s946
        %s948 = sand.u32 %s719, 1
        %s949 = scalar_lea.vmem [#allocation4], %s948
        %p950 = scmp.lt.s32.totalorder %s77, 1
        %s951 = scalar_select %p950, %s77, 1
        %s952 = smul.addr %s951, 2
        %s953 = smul.addr %s952, 8
        %s954 = scalar_lea.vmem %s1, %s953
        %p955 = scmp.lt.s32.totalorder %s77, 1
        %s956 = scalar_select %p955, %s77, 1
        %s957 = smul.addr %s956, 8
        %s958 = smul.addr %s957, 8
        %s959 = scalar_lea.vmem %s3, %s958
        %p960 = scmp.lt.s32.totalorder %s77, 1
        %s961 = scalar_select %p960, %s77, 1
        %s962 = smul.addr %s961, 8
        %s963 = smul.addr %s962, 8
        %s964 = scalar_lea.vmem %s5, %s963
        %p965 = scmp.lt.s32.totalorder %s77, 1
        %s966 = scalar_select %p965, %s77, 1
        %s967 = smul.addr %s966, 8
        %s968 = smul.addr %s967, 8
        %s969 = scalar_lea.vmem %s7, %s968
        %v971 = vld [vmem:[%s954] sm:$0xff]
        %v972 = vld [vmem:[%s954 + $0x8] sm:$0xff]
        %v973 = vld [vmem:[%s959] sm:$0xff]
        %v974 = vld [vmem:[%s959 + $0x8] sm:$0xff]
        %v975 = vld [vmem:[%s959 + $0x10] sm:$0xff]
        %v976 = vld [vmem:[%s959 + $0x18] sm:$0xff]
        %v977 = vld [vmem:[%s959 + $0x20] sm:$0xff]
        %v978 = vld [vmem:[%s959 + $0x28] sm:$0xff]
        %v979 = vld [vmem:[%s959 + $0x30] sm:$0xff]
        %v980 = vld [vmem:[%s959 + $0x38] sm:$0xff]
        %v981 = vld [vmem:[%s964] sm:$0xff]
        %v982 = vld [vmem:[%s964 + $0x8] sm:$0xff]
        %v983 = vld [vmem:[%s964 + $0x10] sm:$0xff]
        %v984 = vld [vmem:[%s964 + $0x18] sm:$0xff]
        %v985 = vld [vmem:[%s964 + $0x20] sm:$0xff]
        %v986 = vld [vmem:[%s964 + $0x28] sm:$0xff]
        %v987 = vld [vmem:[%s964 + $0x30] sm:$0xff]
        %v988 = vld [vmem:[%s964 + $0x38] sm:$0xff]
        %v989 = vld [vmem:[%s969] sm:$0xff]
        %v990 = vld [vmem:[%s969 + $0x8] sm:$0xff]
        %v991 = vld [vmem:[%s969 + $0x10] sm:$0xff]
        %v992 = vld [vmem:[%s969 + $0x18] sm:$0xff]
        %v993 = vld [vmem:[%s969 + $0x20] sm:$0xff]
        %v994 = vld [vmem:[%s969 + $0x28] sm:$0xff]
        %v995 = vld [vmem:[%s969 + $0x30] sm:$0xff]
        %v996 = vld [vmem:[%s969 + $0x38] sm:$0xff]
        %v997 = vld [vmem:[%s9] sm:$0xf]
        %v998 = vld [vmem:[%s9 + $0x4] sm:$0xf]
        %v999 = vld [vmem:[%s9 + $0x8] sm:$0xf]
        %v1000 = vld [vmem:[%s9 + $0xc] sm:$0xf]
        %v1001 = vld [vmem:[%s9 + $0x10] sm:$0xf]
        %v1002 = vld [vmem:[%s9 + $0x14] sm:$0xf]
        %v1003 = vld [vmem:[%s9 + $0x18] sm:$0xf]
        %v1004 = vld [vmem:[%s9 + $0x1c] sm:$0xf]
        %v1005 = vld [vmem:[%s9 + $0x20] sm:$0xf]
        %v1006 = vld [vmem:[%s9 + $0x24] sm:$0xf]
        %v1007 = vld [vmem:[%s9 + $0x28] sm:$0xf]
        %v1008 = vld [vmem:[%s9 + $0x2c] sm:$0xf]
        %v1009 = vld [vmem:[%s9 + $0x30] sm:$0xf]
        %v1010 = vld [vmem:[%s9 + $0x34] sm:$0xf]
        %v1011 = vld [vmem:[%s9 + $0x38] sm:$0xf]
        %v1012 = vld [vmem:[%s9 + $0x3c] sm:$0xf]
        %v1013 = vld [vmem:[%s9 + $0x40] sm:$0xf]
        %v1014 = vld [vmem:[%s9 + $0x44] sm:$0xf]
        %v1015 = vpack.c.bf16 %v971, %v971
        %v1016 = vpack.c.bf16 %v972, %v972
        %v1017 = vld [vmem:[%s11] sm:$0x1]
        %v1019 = vperm.slane %v1017, 0
        %v1039 = vunpack.c.l.b16 %v997
        %v1040 = vunpack.c.l.b16 %v998
        %v1041 = vunpack.c.l.b16 %v999
        %v1042 = vunpack.c.l.b16 %v1000
        %v1043 = vunpack.c.l.b16 %v1001
        %v1044 = vunpack.c.l.b16 %v1002
        %v1045 = vunpack.c.l.b16 %v1003
        %v1046 = vunpack.c.l.b16 %v1004
        %v1047 = vunpack.c.l.b16 %v1005
        %v1048 = vunpack.c.l.b16 %v1006
        %v1049 = vunpack.c.l.b16 %v1007
        %v1050 = vunpack.c.l.b16 %v1008
        %v1051 = vunpack.c.l.b16 %v1009
        %v1052 = vunpack.c.l.b16 %v1010
        %v1053 = vunpack.c.l.b16 %v1011
        %v1054 = vunpack.c.l.b16 %v1012
        %v1055 = vunpack.c.l.b16 %v1013
        %v1056 = vunpack.c.l.b16 %v1014
        %v1057 = vpack.c.b16 %v1040, %v1039
        %v1058 = vpack.c.b16 %v1042, %v1041
        %v1059 = vpack.c.b16 %v1044, %v1043
        %v1060 = vpack.c.b16 %v1046, %v1045
        %v1061 = vpack.c.b16 %v1048, %v1047
        %v1062 = vpack.c.b16 %v1050, %v1049
        %v1063 = vpack.c.b16 %v1052, %v1051
        %v1064 = vpack.c.b16 %v1054, %v1053
        %v1065 = vpack.c.b16 %v1056, %v1055
        %vm1075 = vcmask 130048
        %v1077 = vsel %vm1075, %v1016, 0
        %1079 = vmatpush.bf16.msra.mxu0 %v1064
        %1080 = vmatpush.bf16.msra.mxu0 %v1063
        %1081 = vmatpush.bf16.msra.mxu0 %v1062
        %1082 = vmatpush.bf16.msra.mxu0 %v1061
        %1083 = vmatpush.bf16.msra.mxu0 %v1060
        %1084 = vmatpush.bf16.msra.mxu0 %v1059
        %1085 = vmatpush.bf16.msra.mxu0 %v1058
        %1086 = vmatpush.bf16.msra.mxu0 %v1057
        %1087 = vmatmul.bf16.gmra.mxu0 %v1015
        %v1088 = vpop.f32.mrf.mxu0
        %v1089 = vadd.f32 %v1019, %v1088
        %v1090 = vpop.f32.mrf.mxu0
        %1091 = vdwg.mxu0
        %1092 = vmatpush.bf16.msra.mxu0 0
        %1093 = vmatpush.bf16.msra.mxu0 0
        %1094 = vmatpush.bf16.msra.mxu0 0
        %1095 = vmatpush.bf16.msra.mxu0 0
        %1096 = vmatpush.bf16.msra.mxu0 0
        %1097 = vmatpush.bf16.msra.mxu0 0
        %1098 = vmatpush.bf16.msra.mxu0 0
        %1099 = vmatpush.bf16.msra.mxu0 %v1065
        %1100 = vmatmul.bf16.gmra.mxu0 %v1077
        %v1101 = vpop.f32.mrf.mxu0
        %v1102 = vadd.f32 %v1089, %v1101
        %v1103 = vpop.f32.mrf.mxu0
        %1104 = vdwg.mxu0
        %v1105 = vmul.f32 %v1102, %v1102
        %v1106 = vmul.f32 %v1102, %v1105
        %v1107 = vmul.f32 %v1106, 0.044715
        %v1108 = vadd.f32 %v1102, %v1107
        %v1109 = vmul.f32 %v1108, 0.7978846
        %v1110 = vtanh.pop %v1109
        %v1111 = vadd.f32 %v1110, 1.0
        %v1112 = vmul.f32 %v1111, 0.5
        %v1113 = vmul.f32 %v1102, %v1112
        %1115 = vrot.lane.b32.xlu0 %v1113, 96
        %v1116 = vpop.permute.xlu0 %1115
        %v1118 = vadd.f32 %v1113, %v1116
        %v1119 = vld [vmem:[%s13] sm:$0x1]
        %1121 = vset.pattern.permute.xlu0 0
        %1122 = vperm.xlu0 %1121, %v973
        %v1123 = vpop.permute.xlu0 %1122
        %1126 = vset.pattern.permute.xlu0 0
        %1127 = vperm.xlu0 %1126, %v974
        %v1128 = vpop.permute.xlu0 %1127
        %1131 = vset.pattern.permute.xlu0 0
        %1132 = vperm.xlu0 %1131, %v975
        %v1133 = vpop.permute.xlu0 %1132
        %1136 = vset.pattern.permute.xlu0 0
        %1137 = vperm.xlu0 %1136, %v976
        %v1138 = vpop.permute.xlu0 %1137
        %1141 = vset.pattern.permute.xlu0 0
        %1142 = vperm.xlu0 %1141, %v977
        %v1143 = vpop.permute.xlu0 %1142
        %1146 = vset.pattern.permute.xlu0 0
        %1147 = vperm.xlu0 %1146, %v978
        %v1148 = vpop.permute.xlu0 %1147
        %1151 = vset.pattern.permute.xlu0 0
        %1152 = vperm.xlu0 %1151, %v979
        %v1153 = vpop.permute.xlu0 %1152
        %1156 = vset.pattern.permute.xlu0 0
        %1157 = vperm.xlu0 %1156, %v980
        %v1158 = vpop.permute.xlu0 %1157
        %v1161 = vperm.slane %v1119, 0
        %v1163 = vmul.f32 %v1123, %v1161
        %v1164 = vmul.f32 %v1128, %v1161
        %v1165 = vmul.f32 %v1133, %v1161
        %v1166 = vmul.f32 %v1138, %v1161
        %v1167 = vmul.f32 %v1143, %v1161
        %v1168 = vmul.f32 %v1148, %v1161
        %v1169 = vmul.f32 %v1153, %v1161
        %v1170 = vmul.f32 %v1158, %v1161
        %v1171 = vld [vmem:[%s15] sm:$0x1]
        %1173 = vset.pattern.permute.xlu0 0
        %1174 = vperm.xlu0 %1173, %v981
        %v1175 = vpop.permute.xlu0 %1174
        %1178 = vset.pattern.permute.xlu0 0
        %1179 = vperm.xlu0 %1178, %v982
        %v1180 = vpop.permute.xlu0 %1179
        %1183 = vset.pattern.permute.xlu0 0
        %1184 = vperm.xlu0 %1183, %v983
        %v1185 = vpop.permute.xlu0 %1184
        %1188 = vset.pattern.permute.xlu0 0
        %1189 = vperm.xlu0 %1188, %v984
        %v1190 = vpop.permute.xlu0 %1189
        %1193 = vset.pattern.permute.xlu0 0
        %1194 = vperm.xlu0 %1193, %v985
        %v1195 = vpop.permute.xlu0 %1194
        %1198 = vset.pattern.permute.xlu0 0
        %1199 = vperm.xlu0 %1198, %v986
        %v1200 = vpop.permute.xlu0 %1199
        %1203 = vset.pattern.permute.xlu0 0
        %1204 = vperm.xlu0 %1203, %v987
        %v1205 = vpop.permute.xlu0 %1204
        %1208 = vset.pattern.permute.xlu0 0
        %1209 = vperm.xlu0 %1208, %v988
        %v1210 = vpop.permute.xlu0 %1209
        %v1213 = vperm.slane %v1171, 0
        %v1215 = vmul.f32 %v1175, %v1213
        %v1216 = vmul.f32 %v1180, %v1213
        %v1217 = vmul.f32 %v1185, %v1213
        %v1218 = vmul.f32 %v1190, %v1213
        %v1219 = vmul.f32 %v1195, %v1213
        %v1220 = vmul.f32 %v1200, %v1213
        %v1221 = vmul.f32 %v1205, %v1213
        %v1222 = vmul.f32 %v1210, %v1213
        %v1223 = vadd.f32 %v1163, %v1215
        %v1224 = vadd.f32 %v1164, %v1216
        %v1225 = vadd.f32 %v1165, %v1217
        %v1226 = vadd.f32 %v1166, %v1218
        %v1227 = vadd.f32 %v1167, %v1219
        %v1228 = vadd.f32 %v1168, %v1220
        %v1229 = vadd.f32 %v1169, %v1221
        %v1230 = vadd.f32 %v1170, %v1222
        %v1231 = vld [vmem:[%s17] sm:$0x1]
        %1233 = vset.pattern.permute.xlu0 0
        %1234 = vperm.xlu0 %1233, %v989
        %v1235 = vpop.permute.xlu0 %1234
        %1238 = vset.pattern.permute.xlu0 0
        %1239 = vperm.xlu0 %1238, %v990
        %v1240 = vpop.permute.xlu0 %1239
        %1243 = vset.pattern.permute.xlu0 0
        %1244 = vperm.xlu0 %1243, %v991
        %v1245 = vpop.permute.xlu0 %1244
        %1248 = vset.pattern.permute.xlu0 0
        %1249 = vperm.xlu0 %1248, %v992
        %v1250 = vpop.permute.xlu0 %1249
        %1253 = vset.pattern.permute.xlu0 0
        %1254 = vperm.xlu0 %1253, %v993
        %v1255 = vpop.permute.xlu0 %1254
        %1258 = vset.pattern.permute.xlu0 0
        %1259 = vperm.xlu0 %1258, %v994
        %v1260 = vpop.permute.xlu0 %1259
        %1263 = vset.pattern.permute.xlu0 0
        %1264 = vperm.xlu0 %1263, %v995
        %v1265 = vpop.permute.xlu0 %1264
        %1268 = vset.pattern.permute.xlu0 0
        %1269 = vperm.xlu0 %1268, %v996
        %v1270 = vpop.permute.xlu0 %1269
        %v1273 = vperm.slane %v1231, 0
        %v1275 = vmul.f32 %v1235, %v1273
        %v1276 = vmul.f32 %v1240, %v1273
        %v1277 = vmul.f32 %v1245, %v1273
        %v1278 = vmul.f32 %v1250, %v1273
        %v1279 = vmul.f32 %v1255, %v1273
        %v1280 = vmul.f32 %v1260, %v1273
        %v1281 = vmul.f32 %v1265, %v1273
        %v1282 = vmul.f32 %v1270, %v1273
        %v1283 = vadd.f32 %v1223, %v1275
        %v1284 = vadd.f32 %v1224, %v1276
        %v1285 = vadd.f32 %v1225, %v1277
        %v1286 = vadd.f32 %v1226, %v1278
        %v1287 = vadd.f32 %v1227, %v1279
        %v1288 = vadd.f32 %v1228, %v1280
        %v1289 = vadd.f32 %v1229, %v1281
        %v1290 = vadd.f32 %v1230, %v1282
        %v1291 = vld [vmem:[%s19] sm:$0x1]
        %v1293 = vperm.slane %v1291, 0
        %v1295 = vadd.f32 %v1283, %v1293
        %v1296 = vadd.f32 %v1284, %v1293
        %v1297 = vadd.f32 %v1285, %v1293
        %v1298 = vadd.f32 %v1286, %v1293
        %v1299 = vadd.f32 %v1287, %v1293
        %v1300 = vadd.f32 %v1288, %v1293
        %v1301 = vadd.f32 %v1289, %v1293
        %v1302 = vadd.f32 %v1290, %v1293
        %v1303 = vmax.f32 %v1295, 0.0
        %v1304 = vmax.f32 %v1296, 0.0
        %v1305 = vmax.f32 %v1297, 0.0
        %v1306 = vmax.f32 %v1298, 0.0
        %v1307 = vmax.f32 %v1299, 0.0
        %v1308 = vmax.f32 %v1300, 0.0
        %v1309 = vmax.f32 %v1301, 0.0
        %v1310 = vmax.f32 %v1302, 0.0
        %v1311 = vld [vmem:[%s21] sm:$0xf]
        %v1312 = vld [vmem:[%s21 + $0x4] sm:$0xf]
        %v1313 = vld [vmem:[%s21 + $0x8] sm:$0xf]
        %v1314 = vld [vmem:[%s21 + $0xc] sm:$0xf]
        %v1315 = vld [vmem:[%s21 + $0x10] sm:$0xf]
        %v1316 = vld [vmem:[%s21 + $0x14] sm:$0xf]
        %v1317 = vld [vmem:[%s21 + $0x18] sm:$0xf]
        %v1318 = vld [vmem:[%s21 + $0x1c] sm:$0xf]
        %v1319 = vpack.c.bf16 %v1304, %v1303
        %v1320 = vpack.c.bf16 %v1306, %v1305
        %v1321 = vpack.c.bf16 %v1308, %v1307
        %v1322 = vpack.c.bf16 %v1310, %v1309
        %v1323 = vld [vmem:[%s23] sm:$0x1]
        %v1325 = vperm.slane %v1323, 0
        %v1335 = vunpack.c.l.b16 %v1311
        %v1336 = vunpack.c.l.b16 %v1312
        %v1337 = vunpack.c.l.b16 %v1313
        %v1338 = vunpack.c.l.b16 %v1314
        %v1339 = vunpack.c.l.b16 %v1315
        %v1340 = vunpack.c.l.b16 %v1316
        %v1341 = vunpack.c.l.b16 %v1317
        %v1342 = vunpack.c.l.b16 %v1318
        %v1343 = vpack.c.b16 %v1336, %v1335
        %v1344 = vpack.c.b16 %v1338, %v1337
        %v1345 = vpack.c.b16 %v1340, %v1339
        %v1346 = vpack.c.b16 %v1342, %v1341
        %vm1351 = vcmask 523264
        %v1353 = vsel %vm1351, %v1319, 0
        %v1356 = vsel %vm1351, %v1320, 0
        %v1359 = vsel %vm1351, %v1321, 0
        %v1362 = vsel %vm1351, %v1322, 0
        %1364 = vmatpush.bf16.msra.mxu0 0
        %1365 = vmatpush.bf16.msra.mxu0 0
        %1366 = vmatpush.bf16.msra.mxu0 0
        %1367 = vmatpush.bf16.msra.mxu0 0
        %1368 = vmatpush.bf16.msra.mxu0 %v1346
        %1369 = vmatpush.bf16.msra.mxu0 %v1345
        %1370 = vmatpush.bf16.msra.mxu0 %v1344
        %1371 = vmatpush.bf16.msra.mxu0 %v1343
        %1372 = vmatmul.bf16.gmra.mxu0 %v1353
        %v1373 = vpop.f32.mrf.mxu0
        %v1374 = vadd.f32 %v1325, %v1373
        %v1375 = vpop.f32.mrf.mxu0
        %v1376 = vadd.f32 %v1325, %v1375
        %1377 = vmatmul.bf16.gmra.mxu0 %v1356
        %v1378 = vpop.f32.mrf.mxu0
        %v1379 = vadd.f32 %v1325, %v1378
        %v1380 = vpop.f32.mrf.mxu0
        %v1381 = vadd.f32 %v1325, %v1380
        %1382 = vmatmul.bf16.gmra.mxu0 %v1359
        %v1383 = vpop.f32.mrf.mxu0
        %v1384 = vadd.f32 %v1325, %v1383
        %v1385 = vpop.f32.mrf.mxu0
        %v1386 = vadd.f32 %v1325, %v1385
        %1387 = vmatmul.bf16.gmra.mxu0 %v1362
        %v1388 = vpop.f32.mrf.mxu0
        %v1389 = vadd.f32 %v1325, %v1388
        %v1390 = vpop.f32.mrf.mxu0
        %v1391 = vadd.f32 %v1325, %v1390
        %1392 = vdwg.mxu0
        %v1393 = vmax.f32 %v1374, 0.0
        %v1394 = vmax.f32 %v1376, 0.0
        %v1395 = vmax.f32 %v1379, 0.0
        %v1396 = vmax.f32 %v1381, 0.0
        %v1397 = vmax.f32 %v1384, 0.0
        %v1398 = vmax.f32 %v1386, 0.0
        %v1399 = vmax.f32 %v1389, 0.0
        %v1400 = vmax.f32 %v1391, 0.0
        %v1401 = vld [vmem:[%s25] sm:$0xf]
        %v1402 = vld [vmem:[%s25 + $0x4] sm:$0xf]
        %v1403 = vld [vmem:[%s25 + $0x8] sm:$0xf]
        %v1404 = vld [vmem:[%s25 + $0xc] sm:$0xf]
        %v1405 = vpack.c.bf16 %v1394, %v1393
        %v1406 = vpack.c.bf16 %v1396, %v1395
        %v1407 = vpack.c.bf16 %v1398, %v1397
        %v1408 = vpack.c.bf16 %v1400, %v1399
        %v1409 = vld [vmem:[%s27] sm:$0x1]
        %v1411 = vperm.slane %v1409, 0
        %v1417 = vunpack.c.l.b16 %v1401
        %v1418 = vunpack.c.l.b16 %v1402
        %v1419 = vunpack.c.l.b16 %v1403
        %v1420 = vunpack.c.l.b16 %v1404
        %v1421 = vpack.c.b16 %v1418, %v1417
        %v1422 = vpack.c.b16 %v1420, %v1419
        %vm1425 = vcmask 261120
        %v1427 = vsel %vm1425, %v1405, 0
        %v1430 = vsel %vm1425, %v1406, 0
        %v1433 = vsel %vm1425, %v1407, 0
        %v1436 = vsel %vm1425, %v1408, 0
        %1438 = vmatpush.bf16.msra.mxu0 0
        %1439 = vmatpush.bf16.msra.mxu0 0
        %1440 = vmatpush.bf16.msra.mxu0 0
        %1441 = vmatpush.bf16.msra.mxu0 0
        %1442 = vmatpush.bf16.msra.mxu0 0
        %1443 = vmatpush.bf16.msra.mxu0 0
        %1444 = vmatpush.bf16.msra.mxu0 %v1422
        %1445 = vmatpush.bf16.msra.mxu0 %v1421
        %1446 = vmatmul.bf16.gmra.mxu0 %v1427
        %v1447 = vpop.f32.mrf.mxu0
        %v1448 = vadd.f32 %v1411, %v1447
        %v1449 = vpop.f32.mrf.mxu0
        %v1450 = vadd.f32 %v1411, %v1449
        %1451 = vmatmul.bf16.gmra.mxu0 %v1430
        %v1452 = vpop.f32.mrf.mxu0
        %v1453 = vadd.f32 %v1411, %v1452
        %v1454 = vpop.f32.mrf.mxu0
        %v1455 = vadd.f32 %v1411, %v1454
        %1456 = vmatmul.bf16.gmra.mxu0 %v1433
        %v1457 = vpop.f32.mrf.mxu0
        %v1458 = vadd.f32 %v1411, %v1457
        %v1459 = vpop.f32.mrf.mxu0
        %v1460 = vadd.f32 %v1411, %v1459
        %1461 = vmatmul.bf16.gmra.mxu0 %v1436
        %v1462 = vpop.f32.mrf.mxu0
        %v1463 = vadd.f32 %v1411, %v1462
        %v1464 = vpop.f32.mrf.mxu0
        %v1465 = vadd.f32 %v1411, %v1464
        %1466 = vdwg.mxu0
        %v1467 = vld [vmem:[%s29] sm:$0xf]
        %v1468 = vld [vmem:[%s29 + $0x4] sm:$0xf]
        %v1469 = vld [vmem:[%s29 + $0x8] sm:$0xf]
        %v1470 = vld [vmem:[%s29 + $0xc] sm:$0xf]
        %v1471 = vld [vmem:[%s29 + $0x10] sm:$0xf]
        %v1472 = vld [vmem:[%s29 + $0x14] sm:$0xf]
        %v1473 = vld [vmem:[%s29 + $0x18] sm:$0xf]
        %v1474 = vld [vmem:[%s29 + $0x1c] sm:$0xf]
        %v1475 = vpack.c.bf16 %v1296, %v1295
        %v1476 = vpack.c.bf16 %v1298, %v1297
        %v1477 = vpack.c.bf16 %v1300, %v1299
        %v1478 = vpack.c.bf16 %v1302, %v1301
        %v1487 = vunpack.c.l.b16 %v1467
        %v1488 = vunpack.c.l.b16 %v1468
        %v1489 = vunpack.c.l.b16 %v1469
        %v1490 = vunpack.c.l.b16 %v1470
        %v1491 = vunpack.c.l.b16 %v1471
        %v1492 = vunpack.c.l.b16 %v1472
        %v1493 = vunpack.c.l.b16 %v1473
        %v1494 = vunpack.c.l.b16 %v1474
        %v1495 = vpack.c.b16 %v1488, %v1487
        %v1496 = vpack.c.b16 %v1490, %v1489
        %v1497 = vpack.c.b16 %v1492, %v1491
        %v1498 = vpack.c.b16 %v1494, %v1493
        %v1504 = vsel %vm1351, %v1475, 0
        %v1507 = vsel %vm1351, %v1476, 0
        %v1510 = vsel %vm1351, %v1477, 0
        %v1513 = vsel %vm1351, %v1478, 0
        %1515 = vmatpush.bf16.msra.mxu0 0
        %1516 = vmatpush.bf16.msra.mxu0 0
        %1517 = vmatpush.bf16.msra.mxu0 0
        %1518 = vmatpush.bf16.msra.mxu0 0
        %1519 = vmatpush.bf16.msra.mxu0 %v1498
        %1520 = vmatpush.bf16.msra.mxu0 %v1497
        %1521 = vmatpush.bf16.msra.mxu0 %v1496
        %1522 = vmatpush.bf16.msra.mxu0 %v1495
        %1523 = vmatmul.bf16.gmra.mxu0 %v1504
        %v1524 = vpop.f32.mrf.mxu0
        %v1525 = vadd.f32 %v1448, %v1524
        %v1526 = vpop.f32.mrf.mxu0
        %v1527 = vadd.f32 %v1450, %v1526
        %1528 = vmatmul.bf16.gmra.mxu0 %v1507
        %v1529 = vpop.f32.mrf.mxu0
        %v1530 = vadd.f32 %v1453, %v1529
        %v1531 = vpop.f32.mrf.mxu0
        %v1532 = vadd.f32 %v1455, %v1531
        %1533 = vmatmul.bf16.gmra.mxu0 %v1510
        %v1534 = vpop.f32.mrf.mxu0
        %v1535 = vadd.f32 %v1458, %v1534
        %v1536 = vpop.f32.mrf.mxu0
        %v1537 = vadd.f32 %v1460, %v1536
        %1538 = vmatmul.bf16.gmra.mxu0 %v1513
        %v1539 = vpop.f32.mrf.mxu0
        %v1540 = vadd.f32 %v1463, %v1539
        %v1541 = vpop.f32.mrf.mxu0
        %v1542 = vadd.f32 %v1465, %v1541
        %1543 = vdwg.mxu0
        %v1544 = vsel %vm1425, %v1525, -inf
        %v1545 = vrot.slane %v1544, 4
        %v1546 = vmax.f32 %v1544, %v1545
        %v1547 = vrot.slane %v1546, 2
        %v1548 = vmax.f32 %v1546, %v1547
        %v1549 = vrot.slane %v1548, 1
        %v1550 = vmax.f32 %v1548, %v1549
        %v1551 = vsel %vm1425, %v1527, -inf
        %v1552 = vrot.slane %v1551, 4
        %v1553 = vmax.f32 %v1551, %v1552
        %v1554 = vrot.slane %v1553, 2
        %v1555 = vmax.f32 %v1553, %v1554
        %v1556 = vrot.slane %v1555, 1
        %v1557 = vmax.f32 %v1555, %v1556
        %v1558 = vsel %vm1425, %v1530, -inf
        %v1559 = vrot.slane %v1558, 4
        %v1560 = vmax.f32 %v1558, %v1559
        %v1561 = vrot.slane %v1560, 2
        %v1562 = vmax.f32 %v1560, %v1561
        %v1563 = vrot.slane %v1562, 1
        %v1564 = vmax.f32 %v1562, %v1563
        %v1565 = vsel %vm1425, %v1532, -inf
        %v1566 = vrot.slane %v1565, 4
        %v1567 = vmax.f32 %v1565, %v1566
        %v1568 = vrot.slane %v1567, 2
        %v1569 = vmax.f32 %v1567, %v1568
        %v1570 = vrot.slane %v1569, 1
        %v1571 = vmax.f32 %v1569, %v1570
        %v1572 = vsel %vm1425, %v1535, -inf
        %v1573 = vrot.slane %v1572, 4
        %v1574 = vmax.f32 %v1572, %v1573
        %v1575 = vrot.slane %v1574, 2
        %v1576 = vmax.f32 %v1574, %v1575
        %v1577 = vrot.slane %v1576, 1
        %v1578 = vmax.f32 %v1576, %v1577
        %v1579 = vsel %vm1425, %v1537, -inf
        %v1580 = vrot.slane %v1579, 4
        %v1581 = vmax.f32 %v1579, %v1580
        %v1582 = vrot.slane %v1581, 2
        %v1583 = vmax.f32 %v1581, %v1582
        %v1584 = vrot.slane %v1583, 1
        %v1585 = vmax.f32 %v1583, %v1584
        %v1586 = vsel %vm1425, %v1540, -inf
        %v1587 = vrot.slane %v1586, 4
        %v1588 = vmax.f32 %v1586, %v1587
        %v1589 = vrot.slane %v1588, 2
        %v1590 = vmax.f32 %v1588, %v1589
        %v1591 = vrot.slane %v1590, 1
        %v1592 = vmax.f32 %v1590, %v1591
        %v1593 = vsel %vm1425, %v1542, -inf
        %v1594 = vrot.slane %v1593, 4
        %v1595 = vmax.f32 %v1593, %v1594
        %v1596 = vrot.slane %v1595, 2
        %v1597 = vmax.f32 %v1595, %v1596
        %v1598 = vrot.slane %v1597, 1
        %v1599 = vmax.f32 %v1597, %v1598
        %v1600 = vmax.f32 %v1525, 0.0
        %v1601 = vmax.f32 %v1527, 0.0
        %v1602 = vmax.f32 %v1530, 0.0
        %v1603 = vmax.f32 %v1532, 0.0
        %v1604 = vmax.f32 %v1535, 0.0
        %v1605 = vmax.f32 %v1537, 0.0
        %v1606 = vmax.f32 %v1540, 0.0
        %v1607 = vmax.f32 %v1542, 0.0
        %v1608 = vld [vmem:[%s31] sm:$0xf]
        %v1609 = vld [vmem:[%s31 + $0x4] sm:$0xf]
        %v1610 = vld [vmem:[%s31 + $0x8] sm:$0xf]
        %v1611 = vld [vmem:[%s31 + $0xc] sm:$0xf]
        %v1612 = vpack.c.bf16 %v1601, %v1600
        %v1613 = vpack.c.bf16 %v1603, %v1602
        %v1614 = vpack.c.bf16 %v1605, %v1604
        %v1615 = vpack.c.bf16 %v1607, %v1606
        %v1616 = vmax.f32 %v1550, 0.0
        %v1617 = vmax.f32 %v1557, 0.0
        %v1618 = vmax.f32 %v1564, 0.0
        %v1619 = vmax.f32 %v1571, 0.0
        %v1620 = vmax.f32 %v1578, 0.0
        %v1621 = vmax.f32 %v1585, 0.0
        %v1622 = vmax.f32 %v1592, 0.0
        %v1623 = vmax.f32 %v1599, 0.0
        %v1624 = vld [vmem:[%s33] sm:$0xf]
        %v1625 = vld [vmem:[%s33 + $0x4] sm:$0xf]
        %v1626 = vld [vmem:[%s33 + $0x8] sm:$0xf]
        %v1627 = vld [vmem:[%s33 + $0xc] sm:$0xf]
        %v1628 = vpack.c.bf16 %v1616, %v1616
        %v1629 = vpack.c.bf16 %v1617, %v1617
        %v1630 = vpack.c.bf16 %v1618, %v1618
        %v1631 = vpack.c.bf16 %v1619, %v1619
        %v1632 = vpack.c.bf16 %v1620, %v1620
        %v1633 = vpack.c.bf16 %v1621, %v1621
        %v1634 = vpack.c.bf16 %v1622, %v1622
        %v1635 = vpack.c.bf16 %v1623, %v1623
        %v1644 = vunpack.c.l.b16 %v1628
        %v1645 = vunpack.c.l.b16 %v1629
        %v1646 = vunpack.c.l.b16 %v1630
        %v1647 = vunpack.c.l.b16 %v1631
        %v1648 = vunpack.c.l.b16 %v1632
        %v1649 = vunpack.c.l.b16 %v1633
        %v1650 = vunpack.c.l.b16 %v1634
        %v1651 = vunpack.c.l.b16 %v1635
        %vm1652 = vcmask 1041409
        %v1653 = vsel %vm1652, %v1645, %v1644
        %vm1654 = vcmask 1042434
        %v1655 = vsel %vm1654, %v1646, %v1653
        %vm1656 = vcmask 1043459
        %v1657 = vsel %vm1656, %v1647, %v1655
        %vm1658 = vcmask 1044484
        %v1659 = vsel %vm1658, %v1648, %v1657
        %vm1660 = vcmask 1045509
        %v1661 = vsel %vm1660, %v1649, %v1659
        %vm1662 = vcmask 1046534
        %v1663 = vsel %vm1662, %v1650, %v1661
        %vm1664 = vcmask 1047559
        %v1665 = vsel %vm1664, %v1651, %v1663
        %v1666 = vpack.c.b16 %v1665, %v1665
        %v1671 = vunpack.c.l.b16 %v1624
        %v1672 = vunpack.c.l.b16 %v1625
        %v1673 = vunpack.c.l.b16 %v1626
        %v1674 = vunpack.c.l.b16 %v1627
        %v1675 = vpack.c.b16 %v1672, %v1671
        %v1676 = vpack.c.b16 %v1674, %v1673
        %v1680 = vsel %vm1425, %v1666, 0
        %1682 = vmatpush.bf16.msra.mxu0 0
        %1683 = vmatpush.bf16.msra.mxu0 0
        %1684 = vmatpush.bf16.msra.mxu0 0
        %1685 = vmatpush.bf16.msra.mxu0 0
        %1686 = vmatpush.bf16.msra.mxu0 0
        %1687 = vmatpush.bf16.msra.mxu0 0
        %1688 = vmatpush.bf16.msra.mxu0 %v1676
        %1689 = vmatpush.bf16.msra.mxu0 %v1675
        %1690 = vmatmul.bf16.gmra.mxu0 %v1680
        %v1691 = vpop.f32.mrf.mxu0
        %v1692 = vadd.f32 0.0, %v1691
        %v1693 = vpop.f32.mrf.mxu0
        %1694 = vdwg.mxu0
        %v1696 = vrot.slane %v1692, 1
        %v1697 = vrot.slane %v1692, 2
        %v1698 = vrot.slane %v1692, 3
        %v1699 = vrot.slane %v1692, 4
        %v1700 = vrot.slane %v1692, 5
        %v1701 = vrot.slane %v1692, 6
        %v1702 = vrot.slane %v1692, 7
        %v1703 = vperm.slane %v1692, 0
        %v1704 = vperm.slane %v1696, 0
        %v1705 = vperm.slane %v1697, 0
        %v1706 = vperm.slane %v1698, 0
        %v1707 = vperm.slane %v1699, 0
        %v1708 = vperm.slane %v1700, 0
        %v1709 = vperm.slane %v1701, 0
        %v1710 = vperm.slane %v1702, 0
        %v1723 = vunpack.c.l.b16 %v1608
        %v1724 = vunpack.c.l.b16 %v1609
        %v1725 = vunpack.c.l.b16 %v1610
        %v1726 = vunpack.c.l.b16 %v1611
        %v1727 = vpack.c.b16 %v1724, %v1723
        %v1728 = vpack.c.b16 %v1726, %v1725
        %v1732 = vsel %vm1425, %v1612, 0
        %v1735 = vsel %vm1425, %v1613, 0
        %v1738 = vsel %vm1425, %v1614, 0
        %v1741 = vsel %vm1425, %v1615, 0
        %1743 = vmatpush.bf16.msra.mxu0 0
        %1744 = vmatpush.bf16.msra.mxu0 0
        %1745 = vmatpush.bf16.msra.mxu0 0
        %1746 = vmatpush.bf16.msra.mxu0 0
        %1747 = vmatpush.bf16.msra.mxu0 0
        %1748 = vmatpush.bf16.msra.mxu0 0
        %1749 = vmatpush.bf16.msra.mxu0 %v1728
        %1750 = vmatpush.bf16.msra.mxu0 %v1727
        %1751 = vmatmul.bf16.gmra.mxu0 %v1732
        %v1752 = vpop.f32.mrf.mxu0
        %v1753 = vadd.f32 %v1703, %v1752
        %v1754 = vpop.f32.mrf.mxu0
        %v1755 = vadd.f32 %v1704, %v1754
        %1756 = vmatmul.bf16.gmra.mxu0 %v1735
        %v1757 = vpop.f32.mrf.mxu0
        %v1758 = vadd.f32 %v1705, %v1757
        %v1759 = vpop.f32.mrf.mxu0
        %v1760 = vadd.f32 %v1706, %v1759
        %1761 = vmatmul.bf16.gmra.mxu0 %v1738
        %v1762 = vpop.f32.mrf.mxu0
        %v1763 = vadd.f32 %v1707, %v1762
        %v1764 = vpop.f32.mrf.mxu0
        %v1765 = vadd.f32 %v1708, %v1764
        %1766 = vmatmul.bf16.gmra.mxu0 %v1741
        %v1767 = vpop.f32.mrf.mxu0
        %v1768 = vadd.f32 %v1709, %v1767
        %v1769 = vpop.f32.mrf.mxu0
        %v1770 = vadd.f32 %v1710, %v1769
        %1771 = vdwg.mxu0
        %v1772 = vld [vmem:[%s35] sm:$0x1]
        %v1774 = vperm.slane %v1772, 0
        %v1776 = vadd.f32 %v1753, %v1774
        %v1777 = vadd.f32 %v1755, %v1774
        %v1778 = vadd.f32 %v1758, %v1774
        %v1779 = vadd.f32 %v1760, %v1774
        %v1780 = vadd.f32 %v1763, %v1774
        %v1781 = vadd.f32 %v1765, %v1774
        %v1782 = vadd.f32 %v1768, %v1774
        %v1783 = vadd.f32 %v1770, %v1774
        %v1784 = vmax.f32 %v1776, 0.0
        %v1785 = vmax.f32 %v1777, 0.0
        %v1786 = vmax.f32 %v1778, 0.0
        %v1787 = vmax.f32 %v1779, 0.0
        %v1788 = vmax.f32 %v1780, 0.0
        %v1789 = vmax.f32 %v1781, 0.0
        %v1790 = vmax.f32 %v1782, 0.0
        %v1791 = vmax.f32 %v1783, 0.0
        %v1792 = vld [vmem:[%s37] sm:$0xf]
        %v1793 = vld [vmem:[%s37 + $0x4] sm:$0xf]
        %v1794 = vld [vmem:[%s37 + $0x8] sm:$0xf]
        %v1795 = vld [vmem:[%s37 + $0xc] sm:$0xf]
        %v1796 = vpack.c.bf16 %v1785, %v1784
        %v1797 = vpack.c.bf16 %v1787, %v1786
        %v1798 = vpack.c.bf16 %v1789, %v1788
        %v1799 = vpack.c.bf16 %v1791, %v1790
        %v1800 = vld [vmem:[%s39] sm:$0x1]
        %v1802 = vperm.slane %v1800, 0
        %v1808 = vunpack.c.l.b16 %v1792
        %v1809 = vunpack.c.l.b16 %v1793
        %v1810 = vunpack.c.l.b16 %v1794
        %v1811 = vunpack.c.l.b16 %v1795
        %v1812 = vpack.c.b16 %v1809, %v1808
        %v1813 = vpack.c.b16 %v1811, %v1810
        %v1817 = vsel %vm1425, %v1796, 0
        %v1820 = vsel %vm1425, %v1797, 0
        %v1823 = vsel %vm1425, %v1798, 0
        %v1826 = vsel %vm1425, %v1799, 0
        %1828 = vmatpush.bf16.msra.mxu0 0
        %1829 = vmatpush.bf16.msra.mxu0 0
        %1830 = vmatpush.bf16.msra.mxu0 0
        %1831 = vmatpush.bf16.msra.mxu0 0
        %1832 = vmatpush.bf16.msra.mxu0 0
        %1833 = vmatpush.bf16.msra.mxu0 0
        %1834 = vmatpush.bf16.msra.mxu0 %v1813
        %1835 = vmatpush.bf16.msra.mxu0 %v1812
        %1836 = vmatmul.bf16.gmra.mxu0 %v1817
        %v1837 = vpop.f32.mrf.mxu0
        %v1838 = vadd.f32 %v1802, %v1837
        %v1839 = vpop.f32.mrf.mxu0
        %v1840 = vadd.f32 %v1802, %v1839
        %1841 = vmatmul.bf16.gmra.mxu0 %v1820
        %v1842 = vpop.f32.mrf.mxu0
        %v1843 = vadd.f32 %v1802, %v1842
        %v1844 = vpop.f32.mrf.mxu0
        %v1845 = vadd.f32 %v1802, %v1844
        %1846 = vmatmul.bf16.gmra.mxu0 %v1823
        %v1847 = vpop.f32.mrf.mxu0
        %v1848 = vadd.f32 %v1802, %v1847
        %v1849 = vpop.f32.mrf.mxu0
        %v1850 = vadd.f32 %v1802, %v1849
        %1851 = vmatmul.bf16.gmra.mxu0 %v1826
        %v1852 = vpop.f32.mrf.mxu0
        %v1853 = vadd.f32 %v1802, %v1852
        %v1854 = vpop.f32.mrf.mxu0
        %v1855 = vadd.f32 %v1802, %v1854
        %1856 = vdwg.mxu0
        %v1857 = vld [vmem:[%s41] sm:$0xf]
        %v1858 = vld [vmem:[%s41 + $0x4] sm:$0xf]
        %v1859 = vld [vmem:[%s41 + $0x8] sm:$0xf]
        %v1860 = vld [vmem:[%s41 + $0xc] sm:$0xf]
        %v1861 = vpack.c.bf16 %v1527, %v1525
        %v1862 = vpack.c.bf16 %v1532, %v1530
        %v1863 = vpack.c.bf16 %v1537, %v1535
        %v1864 = vpack.c.bf16 %v1542, %v1540
        %v1865 = vld [vmem:[%s43] sm:$0xf]
        %v1866 = vld [vmem:[%s43 + $0x4] sm:$0xf]
        %v1867 = vld [vmem:[%s43 + $0x8] sm:$0xf]
        %v1868 = vld [vmem:[%s43 + $0xc] sm:$0xf]
        %v1869 = vpack.c.bf16 %v1550, %v1550
        %v1870 = vpack.c.bf16 %v1557, %v1557
        %v1871 = vpack.c.bf16 %v1564, %v1564
        %v1872 = vpack.c.bf16 %v1571, %v1571
        %v1873 = vpack.c.bf16 %v1578, %v1578
        %v1874 = vpack.c.bf16 %v1585, %v1585
        %v1875 = vpack.c.bf16 %v1592, %v1592
        %v1876 = vpack.c.bf16 %v1599, %v1599
        %v1885 = vunpack.c.l.b16 %v1869
        %v1886 = vunpack.c.l.b16 %v1870
        %v1887 = vunpack.c.l.b16 %v1871
        %v1888 = vunpack.c.l.b16 %v1872
        %v1889 = vunpack.c.l.b16 %v1873
        %v1890 = vunpack.c.l.b16 %v1874
        %v1891 = vunpack.c.l.b16 %v1875
        %v1892 = vunpack.c.l.b16 %v1876
        %v1893 = vsel %vm1652, %v1886, %v1885
        %v1894 = vsel %vm1654, %v1887, %v1893
        %v1895 = vsel %vm1656, %v1888, %v1894
        %v1896 = vsel %vm1658, %v1889, %v1895
        %v1897 = vsel %vm1660, %v1890, %v1896
        %v1898 = vsel %vm1662, %v1891, %v1897
        %v1899 = vsel %vm1664, %v1892, %v1898
        %v1900 = vpack.c.b16 %v1899, %v1899
        %v1905 = vunpack.c.l.b16 %v1865
        %v1906 = vunpack.c.l.b16 %v1866
        %v1907 = vunpack.c.l.b16 %v1867
        %v1908 = vunpack.c.l.b16 %v1868
        %v1909 = vpack.c.b16 %v1906, %v1905
        %v1910 = vpack.c.b16 %v1908, %v1907
        %v1914 = vsel %vm1425, %v1900, 0
        %1916 = vmatpush.bf16.msra.mxu0 0
        %1917 = vmatpush.bf16.msra.mxu0 0
        %1918 = vmatpush.bf16.msra.mxu0 0
        %1919 = vmatpush.bf16.msra.mxu0 0
        %1920 = vmatpush.bf16.msra.mxu0 0
        %1921 = vmatpush.bf16.msra.mxu0 0
        %1922 = vmatpush.bf16.msra.mxu0 %v1910
        %1923 = vmatpush.bf16.msra.mxu0 %v1909
        %1924 = vmatmul.bf16.gmra.mxu0 %v1914
        %v1925 = vpop.f32.mrf.mxu0
        %v1926 = vadd.f32 0.0, %v1925
        %v1927 = vpop.f32.mrf.mxu0
        %1928 = vdwg.mxu0
        %v1930 = vrot.slane %v1926, 1
        %v1931 = vrot.slane %v1926, 2
        %v1932 = vrot.slane %v1926, 3
        %v1933 = vrot.slane %v1926, 4
        %v1934 = vrot.slane %v1926, 5
        %v1935 = vrot.slane %v1926, 6
        %v1936 = vrot.slane %v1926, 7
        %v1937 = vperm.slane %v1926, 0
        %v1938 = vperm.slane %v1930, 0
        %v1939 = vperm.slane %v1931, 0
        %v1940 = vperm.slane %v1932, 0
        %v1941 = vperm.slane %v1933, 0
        %v1942 = vperm.slane %v1934, 0
        %v1943 = vperm.slane %v1935, 0
        %v1944 = vperm.slane %v1936, 0
        %v1957 = vunpack.c.l.b16 %v1857
        %v1958 = vunpack.c.l.b16 %v1858
        %v1959 = vunpack.c.l.b16 %v1859
        %v1960 = vunpack.c.l.b16 %v1860
        %v1961 = vpack.c.b16 %v1958, %v1957
        %v1962 = vpack.c.b16 %v1960, %v1959
        %v1966 = vsel %vm1425, %v1861, 0
        %v1969 = vsel %vm1425, %v1862, 0
        %v1972 = vsel %vm1425, %v1863, 0
        %v1975 = vsel %vm1425, %v1864, 0
        %1977 = vmatpush.bf16.msra.mxu0 0
        %1978 = vmatpush.bf16.msra.mxu0 0
        %1979 = vmatpush.bf16.msra.mxu0 0
        %1980 = vmatpush.bf16.msra.mxu0 0
        %1981 = vmatpush.bf16.msra.mxu0 0
        %1982 = vmatpush.bf16.msra.mxu0 0
        %1983 = vmatpush.bf16.msra.mxu0 %v1962
        %1984 = vmatpush.bf16.msra.mxu0 %v1961
        %1985 = vmatmul.bf16.gmra.mxu0 %v1966
        %v1986 = vpop.f32.mrf.mxu0
        %v1987 = vadd.f32 %v1937, %v1986
        %v1988 = vpop.f32.mrf.mxu0
        %v1989 = vadd.f32 %v1938, %v1988
        %1990 = vmatmul.bf16.gmra.mxu0 %v1969
        %v1991 = vpop.f32.mrf.mxu0
        %v1992 = vadd.f32 %v1939, %v1991
        %v1993 = vpop.f32.mrf.mxu0
        %v1994 = vadd.f32 %v1940, %v1993
        %1995 = vmatmul.bf16.gmra.mxu0 %v1972
        %v1996 = vpop.f32.mrf.mxu0
        %v1997 = vadd.f32 %v1941, %v1996
        %v1998 = vpop.f32.mrf.mxu0
        %v1999 = vadd.f32 %v1942, %v1998
        %2000 = vmatmul.bf16.gmra.mxu0 %v1975
        %v2001 = vpop.f32.mrf.mxu0
        %v2002 = vadd.f32 %v1943, %v2001
        %v2003 = vpop.f32.mrf.mxu0
        %v2004 = vadd.f32 %v1944, %v2003
        %2005 = vdwg.mxu0
        %v2006 = vadd.f32 %v1987, %v1838
        %v2007 = vadd.f32 %v1989, %v1840
        %v2008 = vadd.f32 %v1992, %v1843
        %v2009 = vadd.f32 %v1994, %v1845
        %v2010 = vadd.f32 %v1997, %v1848
        %v2011 = vadd.f32 %v1999, %v1850
        %v2012 = vadd.f32 %v2002, %v1853
        %v2013 = vadd.f32 %v2004, %v1855
        %v2014 = vsel %vm1425, %v2006, -inf
        %v2015 = vrot.slane %v2014, 4
        %v2016 = vmax.f32 %v2014, %v2015
        %v2017 = vrot.slane %v2016, 2
        %v2018 = vmax.f32 %v2016, %v2017
        %v2019 = vrot.slane %v2018, 1
        %v2020 = vmax.f32 %v2018, %v2019
        %v2021 = vsel %vm1425, %v2007, -inf
        %v2022 = vrot.slane %v2021, 4
        %v2023 = vmax.f32 %v2021, %v2022
        %v2024 = vrot.slane %v2023, 2
        %v2025 = vmax.f32 %v2023, %v2024
        %v2026 = vrot.slane %v2025, 1
        %v2027 = vmax.f32 %v2025, %v2026
        %v2028 = vsel %vm1425, %v2008, -inf
        %v2029 = vrot.slane %v2028, 4
        %v2030 = vmax.f32 %v2028, %v2029
        %v2031 = vrot.slane %v2030, 2
        %v2032 = vmax.f32 %v2030, %v2031
        %v2033 = vrot.slane %v2032, 1
        %v2034 = vmax.f32 %v2032, %v2033
        %v2035 = vsel %vm1425, %v2009, -inf
        %v2036 = vrot.slane %v2035, 4
        %v2037 = vmax.f32 %v2035, %v2036
        %v2038 = vrot.slane %v2037, 2
        %v2039 = vmax.f32 %v2037, %v2038
        %v2040 = vrot.slane %v2039, 1
        %v2041 = vmax.f32 %v2039, %v2040
        %v2042 = vsel %vm1425, %v2010, -inf
        %v2043 = vrot.slane %v2042, 4
        %v2044 = vmax.f32 %v2042, %v2043
        %v2045 = vrot.slane %v2044, 2
        %v2046 = vmax.f32 %v2044, %v2045
        %v2047 = vrot.slane %v2046, 1
        %v2048 = vmax.f32 %v2046, %v2047
        %v2049 = vsel %vm1425, %v2011, -inf
        %v2050 = vrot.slane %v2049, 4
        %v2051 = vmax.f32 %v2049, %v2050
        %v2052 = vrot.slane %v2051, 2
        %v2053 = vmax.f32 %v2051, %v2052
        %v2054 = vrot.slane %v2053, 1
        %v2055 = vmax.f32 %v2053, %v2054
        %v2056 = vsel %vm1425, %v2012, -inf
        %v2057 = vrot.slane %v2056, 4
        %v2058 = vmax.f32 %v2056, %v2057
        %v2059 = vrot.slane %v2058, 2
        %v2060 = vmax.f32 %v2058, %v2059
        %v2061 = vrot.slane %v2060, 1
        %v2062 = vmax.f32 %v2060, %v2061
        %v2063 = vsel %vm1425, %v2013, -inf
        %v2064 = vrot.slane %v2063, 4
        %v2065 = vmax.f32 %v2063, %v2064
        %v2066 = vrot.slane %v2065, 2
        %v2067 = vmax.f32 %v2065, %v2066
        %v2068 = vrot.slane %v2067, 1
        %v2069 = vmax.f32 %v2067, %v2068
        %v2070 = vmax.f32 %v2006, 0.0
        %v2071 = vmax.f32 %v2007, 0.0
        %v2072 = vmax.f32 %v2008, 0.0
        %v2073 = vmax.f32 %v2009, 0.0
        %v2074 = vmax.f32 %v2010, 0.0
        %v2075 = vmax.f32 %v2011, 0.0
        %v2076 = vmax.f32 %v2012, 0.0
        %v2077 = vmax.f32 %v2013, 0.0
        %s2078 = scalar_lea.vmem %s31, 16
        %v2079 = vld [vmem:[%s2078] sm:$0xf]
        %v2080 = vld [vmem:[%s2078 + $0x4] sm:$0xf]
        %v2081 = vld [vmem:[%s2078 + $0x8] sm:$0xf]
        %v2082 = vld [vmem:[%s2078 + $0xc] sm:$0xf]
        %v2083 = vpack.c.bf16 %v2071, %v2070
        %v2084 = vpack.c.bf16 %v2073, %v2072
        %v2085 = vpack.c.bf16 %v2075, %v2074
        %v2086 = vpack.c.bf16 %v2077, %v2076
        %v2087 = vmax.f32 %v2020, 0.0
        %v2088 = vmax.f32 %v2027, 0.0
        %v2089 = vmax.f32 %v2034, 0.0
        %v2090 = vmax.f32 %v2041, 0.0
        %v2091 = vmax.f32 %v2048, 0.0
        %v2092 = vmax.f32 %v2055, 0.0
        %v2093 = vmax.f32 %v2062, 0.0
        %v2094 = vmax.f32 %v2069, 0.0
        %s2095 = scalar_lea.vmem %s33, 16
        %v2096 = vld [vmem:[%s2095] sm:$0xf]
        %v2097 = vld [vmem:[%s2095 + $0x4] sm:$0xf]
        %v2098 = vld [vmem:[%s2095 + $0x8] sm:$0xf]
        %v2099 = vld [vmem:[%s2095 + $0xc] sm:$0xf]
        %v2100 = vpack.c.bf16 %v2087, %v2087
        %v2101 = vpack.c.bf16 %v2088, %v2088
        %v2102 = vpack.c.bf16 %v2089, %v2089
        %v2103 = vpack.c.bf16 %v2090, %v2090
        %v2104 = vpack.c.bf16 %v2091, %v2091
        %v2105 = vpack.c.bf16 %v2092, %v2092
        %v2106 = vpack.c.bf16 %v2093, %v2093
        %v2107 = vpack.c.bf16 %v2094, %v2094
        %v2116 = vunpack.c.l.b16 %v2100
        %v2117 = vunpack.c.l.b16 %v2101
        %v2118 = vunpack.c.l.b16 %v2102
        %v2119 = vunpack.c.l.b16 %v2103
        %v2120 = vunpack.c.l.b16 %v2104
        %v2121 = vunpack.c.l.b16 %v2105
        %v2122 = vunpack.c.l.b16 %v2106
        %v2123 = vunpack.c.l.b16 %v2107
        %v2124 = vsel %vm1652, %v2117, %v2116
        %v2125 = vsel %vm1654, %v2118, %v2124
        %v2126 = vsel %vm1656, %v2119, %v2125
        %v2127 = vsel %vm1658, %v2120, %v2126
        %v2128 = vsel %vm1660, %v2121, %v2127
        %v2129 = vsel %vm1662, %v2122, %v2128
        %v2130 = vsel %vm1664, %v2123, %v2129
        %v2131 = vpack.c.b16 %v2130, %v2130
        %v2136 = vunpack.c.l.b16 %v2096
        %v2137 = vunpack.c.l.b16 %v2097
        %v2138 = vunpack.c.l.b16 %v2098
        %v2139 = vunpack.c.l.b16 %v2099
        %v2140 = vpack.c.b16 %v2137, %v2136
        %v2141 = vpack.c.b16 %v2139, %v2138
        %v2145 = vsel %vm1425, %v2131, 0
        %2147 = vmatpush.bf16.msra.mxu0 0
        %2148 = vmatpush.bf16.msra.mxu0 0
        %2149 = vmatpush.bf16.msra.mxu0 0
        %2150 = vmatpush.bf16.msra.mxu0 0
        %2151 = vmatpush.bf16.msra.mxu0 0
        %2152 = vmatpush.bf16.msra.mxu0 0
        %2153 = vmatpush.bf16.msra.mxu0 %v2141
        %2154 = vmatpush.bf16.msra.mxu0 %v2140
        %2155 = vmatmul.bf16.gmra.mxu0 %v2145
        %v2156 = vpop.f32.mrf.mxu0
        %v2157 = vadd.f32 0.0, %v2156
        %v2158 = vpop.f32.mrf.mxu0
        %2159 = vdwg.mxu0
        %v2161 = vrot.slane %v2157, 1
        %v2162 = vrot.slane %v2157, 2
        %v2163 = vrot.slane %v2157, 3
        %v2164 = vrot.slane %v2157, 4
        %v2165 = vrot.slane %v2157, 5
        %v2166 = vrot.slane %v2157, 6
        %v2167 = vrot.slane %v2157, 7
        %v2168 = vperm.slane %v2157, 0
        %v2169 = vperm.slane %v2161, 0
        %v2170 = vperm.slane %v2162, 0
        %v2171 = vperm.slane %v2163, 0
        %v2172 = vperm.slane %v2164, 0
        %v2173 = vperm.slane %v2165, 0
        %v2174 = vperm.slane %v2166, 0
        %v2175 = vperm.slane %v2167, 0
        %v2188 = vunpack.c.l.b16 %v2079
        %v2189 = vunpack.c.l.b16 %v2080
        %v2190 = vunpack.c.l.b16 %v2081
        %v2191 = vunpack.c.l.b16 %v2082
        %v2192 = vpack.c.b16 %v2189, %v2188
        %v2193 = vpack.c.b16 %v2191, %v2190
        %v2197 = vsel %vm1425, %v2083, 0
        %v2200 = vsel %vm1425, %v2084, 0
        %v2203 = vsel %vm1425, %v2085, 0
        %v2206 = vsel %vm1425, %v2086, 0
        %2208 = vmatpush.bf16.msra.mxu0 0
        %2209 = vmatpush.bf16.msra.mxu0 0
        %2210 = vmatpush.bf16.msra.mxu0 0
        %2211 = vmatpush.bf16.msra.mxu0 0
        %2212 = vmatpush.bf16.msra.mxu0 0
        %2213 = vmatpush.bf16.msra.mxu0 0
        %2214 = vmatpush.bf16.msra.mxu0 %v2193
        %2215 = vmatpush.bf16.msra.mxu0 %v2192
        %2216 = vmatmul.bf16.gmra.mxu0 %v2197
        %v2217 = vpop.f32.mrf.mxu0
        %v2218 = vadd.f32 %v2168, %v2217
        %v2219 = vpop.f32.mrf.mxu0
        %v2220 = vadd.f32 %v2169, %v2219
        %2221 = vmatmul.bf16.gmra.mxu0 %v2200
        %v2222 = vpop.f32.mrf.mxu0
        %v2223 = vadd.f32 %v2170, %v2222
        %v2224 = vpop.f32.mrf.mxu0
        %v2225 = vadd.f32 %v2171, %v2224
        %2226 = vmatmul.bf16.gmra.mxu0 %v2203
        %v2227 = vpop.f32.mrf.mxu0
        %v2228 = vadd.f32 %v2172, %v2227
        %v2229 = vpop.f32.mrf.mxu0
        %v2230 = vadd.f32 %v2173, %v2229
        %2231 = vmatmul.bf16.gmra.mxu0 %v2206
        %v2232 = vpop.f32.mrf.mxu0
        %v2233 = vadd.f32 %v2174, %v2232
        %v2234 = vpop.f32.mrf.mxu0
        %v2235 = vadd.f32 %v2175, %v2234
        %2236 = vdwg.mxu0
        %s2237 = scalar_lea.vmem %s35, 1
        %v2238 = vld [vmem:[%s2237] sm:$0x1]
        %v2240 = vperm.slane %v2238, 0
        %v2242 = vadd.f32 %v2218, %v2240
        %v2243 = vadd.f32 %v2220, %v2240
        %v2244 = vadd.f32 %v2223, %v2240
        %v2245 = vadd.f32 %v2225, %v2240
        %v2246 = vadd.f32 %v2228, %v2240
        %v2247 = vadd.f32 %v2230, %v2240
        %v2248 = vadd.f32 %v2233, %v2240
        %v2249 = vadd.f32 %v2235, %v2240
        %v2250 = vmax.f32 %v2242, 0.0
        %v2251 = vmax.f32 %v2243, 0.0
        %v2252 = vmax.f32 %v2244, 0.0
        %v2253 = vmax.f32 %v2245, 0.0
        %v2254 = vmax.f32 %v2246, 0.0
        %v2255 = vmax.f32 %v2247, 0.0
        %v2256 = vmax.f32 %v2248, 0.0
        %v2257 = vmax.f32 %v2249, 0.0
        %s2258 = scalar_lea.vmem %s37, 16
        %v2259 = vld [vmem:[%s2258] sm:$0xf]
        %v2260 = vld [vmem:[%s2258 + $0x4] sm:$0xf]
        %v2261 = vld [vmem:[%s2258 + $0x8] sm:$0xf]
        %v2262 = vld [vmem:[%s2258 + $0xc] sm:$0xf]
        %v2263 = vpack.c.bf16 %v2251, %v2250
        %v2264 = vpack.c.bf16 %v2253, %v2252
        %v2265 = vpack.c.bf16 %v2255, %v2254
        %v2266 = vpack.c.bf16 %v2257, %v2256
        %s2267 = scalar_lea.vmem %s39, 1
        %v2268 = vld [vmem:[%s2267] sm:$0x1]
        %v2270 = vperm.slane %v2268, 0
        %v2276 = vunpack.c.l.b16 %v2259
        %v2277 = vunpack.c.l.b16 %v2260
        %v2278 = vunpack.c.l.b16 %v2261
        %v2279 = vunpack.c.l.b16 %v2262
        %v2280 = vpack.c.b16 %v2277, %v2276
        %v2281 = vpack.c.b16 %v2279, %v2278
        %v2285 = vsel %vm1425, %v2263, 0
        %v2288 = vsel %vm1425, %v2264, 0
        %v2291 = vsel %vm1425, %v2265, 0
        %v2294 = vsel %vm1425, %v2266, 0
        %2296 = vmatpush.bf16.msra.mxu0 0
        %2297 = vmatpush.bf16.msra.mxu0 0
        %2298 = vmatpush.bf16.msra.mxu0 0
        %2299 = vmatpush.bf16.msra.mxu0 0
        %2300 = vmatpush.bf16.msra.mxu0 0
        %2301 = vmatpush.bf16.msra.mxu0 0
        %2302 = vmatpush.bf16.msra.mxu0 %v2281
        %2303 = vmatpush.bf16.msra.mxu0 %v2280
        %2304 = vmatmul.bf16.gmra.mxu0 %v2285
        %v2305 = vpop.f32.mrf.mxu0
        %v2306 = vadd.f32 %v2270, %v2305
        %v2307 = vpop.f32.mrf.mxu0
        %v2308 = vadd.f32 %v2270, %v2307
        %2309 = vmatmul.bf16.gmra.mxu0 %v2288
        %v2310 = vpop.f32.mrf.mxu0
        %v2311 = vadd.f32 %v2270, %v2310
        %v2312 = vpop.f32.mrf.mxu0
        %v2313 = vadd.f32 %v2270, %v2312
        %2314 = vmatmul.bf16.gmra.mxu0 %v2291
        %v2315 = vpop.f32.mrf.mxu0
        %v2316 = vadd.f32 %v2270, %v2315
        %v2317 = vpop.f32.mrf.mxu0
        %v2318 = vadd.f32 %v2270, %v2317
        %2319 = vmatmul.bf16.gmra.mxu0 %v2294
        %v2320 = vpop.f32.mrf.mxu0
        %v2321 = vadd.f32 %v2270, %v2320
        %v2322 = vpop.f32.mrf.mxu0
        %v2323 = vadd.f32 %v2270, %v2322
        %2324 = vdwg.mxu0
        %s2325 = scalar_lea.vmem %s41, 16
        %v2326 = vld [vmem:[%s2325] sm:$0xf]
        %v2327 = vld [vmem:[%s2325 + $0x4] sm:$0xf]
        %v2328 = vld [vmem:[%s2325 + $0x8] sm:$0xf]
        %v2329 = vld [vmem:[%s2325 + $0xc] sm:$0xf]
        %v2330 = vpack.c.bf16 %v2007, %v2006
        %v2331 = vpack.c.bf16 %v2009, %v2008
        %v2332 = vpack.c.bf16 %v2011, %v2010
        %v2333 = vpack.c.bf16 %v2013, %v2012
        %s2334 = scalar_lea.vmem %s43, 16
        %v2335 = vld [vmem:[%s2334] sm:$0xf]
        %v2336 = vld [vmem:[%s2334 + $0x4] sm:$0xf]
        %v2337 = vld [vmem:[%s2334 + $0x8] sm:$0xf]
        %v2338 = vld [vmem:[%s2334 + $0xc] sm:$0xf]
        %v2339 = vpack.c.bf16 %v2020, %v2020
        %v2340 = vpack.c.bf16 %v2027, %v2027
        %v2341 = vpack.c.bf16 %v2034, %v2034
        %v2342 = vpack.c.bf16 %v2041, %v2041
        %v2343 = vpack.c.bf16 %v2048, %v2048
        %v2344 = vpack.c.bf16 %v2055, %v2055
        %v2345 = vpack.c.bf16 %v2062, %v2062
        %v2346 = vpack.c.bf16 %v2069, %v2069
        %v2355 = vunpack.c.l.b16 %v2339
        %v2356 = vunpack.c.l.b16 %v2340
        %v2357 = vunpack.c.l.b16 %v2341
        %v2358 = vunpack.c.l.b16 %v2342
        %v2359 = vunpack.c.l.b16 %v2343
        %v2360 = vunpack.c.l.b16 %v2344
        %v2361 = vunpack.c.l.b16 %v2345
        %v2362 = vunpack.c.l.b16 %v2346
        %v2363 = vsel %vm1652, %v2356, %v2355
        %v2364 = vsel %vm1654, %v2357, %v2363
        %v2365 = vsel %vm1656, %v2358, %v2364
        %v2366 = vsel %vm1658, %v2359, %v2365
        %v2367 = vsel %vm1660, %v2360, %v2366
        %v2368 = vsel %vm1662, %v2361, %v2367
        %v2369 = vsel %vm1664, %v2362, %v2368
        %v2370 = vpack.c.b16 %v2369, %v2369
        %v2375 = vunpack.c.l.b16 %v2335
        %v2376 = vunpack.c.l.b16 %v2336
        %v2377 = vunpack.c.l.b16 %v2337
        %v2378 = vunpack.c.l.b16 %v2338
        %v2379 = vpack.c.b16 %v2376, %v2375
        %v2380 = vpack.c.b16 %v2378, %v2377
        %v2384 = vsel %vm1425, %v2370, 0
        %2386 = vmatpush.bf16.msra.mxu0 0
        %2387 = vmatpush.bf16.msra.mxu0 0
        %2388 = vmatpush.bf16.msra.mxu0 0
        %2389 = vmatpush.bf16.msra.mxu0 0
        %2390 = vmatpush.bf16.msra.mxu0 0
        %2391 = vmatpush.bf16.msra.mxu0 0
        %2392 = vmatpush.bf16.msra.mxu0 %v2380
        %2393 = vmatpush.bf16.msra.mxu0 %v2379
        %2394 = vmatmul.bf16.gmra.mxu0 %v2384
        %v2395 = vpop.f32.mrf.mxu0
        %v2396 = vadd.f32 0.0, %v2395
        %v2397 = vpop.f32.mrf.mxu0
        %2398 = vdwg.mxu0
        %v2400 = vrot.slane %v2396, 1
        %v2401 = vrot.slane %v2396, 2
        %v2402 = vrot.slane %v2396, 3
        %v2403 = vrot.slane %v2396, 4
        %v2404 = vrot.slane %v2396, 5
        %v2405 = vrot.slane %v2396, 6
        %v2406 = vrot.slane %v2396, 7
        %v2407 = vperm.slane %v2396, 0
        %v2408 = vperm.slane %v2400, 0
        %v2409 = vperm.slane %v2401, 0
        %v2410 = vperm.slane %v2402, 0
        %v2411 = vperm.slane %v2403, 0
        %v2412 = vperm.slane %v2404, 0
        %v2413 = vperm.slane %v2405, 0
        %v2414 = vperm.slane %v2406, 0
        %v2427 = vunpack.c.l.b16 %v2326
        %v2428 = vunpack.c.l.b16 %v2327
        %v2429 = vunpack.c.l.b16 %v2328
        %v2430 = vunpack.c.l.b16 %v2329
        %v2431 = vpack.c.b16 %v2428, %v2427
        %v2432 = vpack.c.b16 %v2430, %v2429
        %v2436 = vsel %vm1425, %v2330, 0
        %v2439 = vsel %vm1425, %v2331, 0
        %v2442 = vsel %vm1425, %v2332, 0
        %v2445 = vsel %vm1425, %v2333, 0
        %2447 = vmatpush.bf16.msra.mxu0 0
        %2448 = vmatpush.bf16.msra.mxu0 0
        %2449 = vmatpush.bf16.msra.mxu0 0
        %2450 = vmatpush.bf16.msra.mxu0 0
        %2451 = vmatpush.bf16.msra.mxu0 0
        %2452 = vmatpush.bf16.msra.mxu0 0
        %2453 = vmatpush.bf16.msra.mxu0 %v2432
        %2454 = vmatpush.bf16.msra.mxu0 %v2431
        %2455 = vmatmul.bf16.gmra.mxu0 %v2436
        %v2456 = vpop.f32.mrf.mxu0
        %v2457 = vadd.f32 %v2407, %v2456
        %v2458 = vpop.f32.mrf.mxu0
        %v2459 = vadd.f32 %v2408, %v2458
        %2460 = vmatmul.bf16.gmra.mxu0 %v2439
        %v2461 = vpop.f32.mrf.mxu0
        %v2462 = vadd.f32 %v2409, %v2461
        %v2463 = vpop.f32.mrf.mxu0
        %v2464 = vadd.f32 %v2410, %v2463
        %2465 = vmatmul.bf16.gmra.mxu0 %v2442
        %v2466 = vpop.f32.mrf.mxu0
        %v2467 = vadd.f32 %v2411, %v2466
        %v2468 = vpop.f32.mrf.mxu0
        %v2469 = vadd.f32 %v2412, %v2468
        %2470 = vmatmul.bf16.gmra.mxu0 %v2445
        %v2471 = vpop.f32.mrf.mxu0
        %v2472 = vadd.f32 %v2413, %v2471
        %v2473 = vpop.f32.mrf.mxu0
        %v2474 = vadd.f32 %v2414, %v2473
        %2475 = vdwg.mxu0
        %v2476 = vadd.f32 %v2457, %v2306
        %v2477 = vadd.f32 %v2459, %v2308
        %v2478 = vadd.f32 %v2462, %v2311
        %v2479 = vadd.f32 %v2464, %v2313
        %v2480 = vadd.f32 %v2467, %v2316
        %v2481 = vadd.f32 %v2469, %v2318
        %v2482 = vadd.f32 %v2472, %v2321
        %v2483 = vadd.f32 %v2474, %v2323
        %v2484 = vsel %vm1425, %v2476, -inf
        %v2485 = vrot.slane %v2484, 4
        %v2486 = vmax.f32 %v2484, %v2485
        %v2487 = vrot.slane %v2486, 2
        %v2488 = vmax.f32 %v2486, %v2487
        %v2489 = vrot.slane %v2488, 1
        %v2490 = vmax.f32 %v2488, %v2489
        %v2491 = vsel %vm1425, %v2477, -inf
        %v2492 = vrot.slane %v2491, 4
        %v2493 = vmax.f32 %v2491, %v2492
        %v2494 = vrot.slane %v2493, 2
        %v2495 = vmax.f32 %v2493, %v2494
        %v2496 = vrot.slane %v2495, 1
        %v2497 = vmax.f32 %v2495, %v2496
        %v2498 = vsel %vm1425, %v2478, -inf
        %v2499 = vrot.slane %v2498, 4
        %v2500 = vmax.f32 %v2498, %v2499
        %v2501 = vrot.slane %v2500, 2
        %v2502 = vmax.f32 %v2500, %v2501
        %v2503 = vrot.slane %v2502, 1
        %v2504 = vmax.f32 %v2502, %v2503
        %v2505 = vsel %vm1425, %v2479, -inf
        %v2506 = vrot.slane %v2505, 4
        %v2507 = vmax.f32 %v2505, %v2506
        %v2508 = vrot.slane %v2507, 2
        %v2509 = vmax.f32 %v2507, %v2508
        %v2510 = vrot.slane %v2509, 1
        %v2511 = vmax.f32 %v2509, %v2510
        %v2512 = vsel %vm1425, %v2480, -inf
        %v2513 = vrot.slane %v2512, 4
        %v2514 = vmax.f32 %v2512, %v2513
        %v2515 = vrot.slane %v2514, 2
        %v2516 = vmax.f32 %v2514, %v2515
        %v2517 = vrot.slane %v2516, 1
        %v2518 = vmax.f32 %v2516, %v2517
        %v2519 = vsel %vm1425, %v2481, -inf
        %v2520 = vrot.slane %v2519, 4
        %v2521 = vmax.f32 %v2519, %v2520
        %v2522 = vrot.slane %v2521, 2
        %v2523 = vmax.f32 %v2521, %v2522
        %v2524 = vrot.slane %v2523, 1
        %v2525 = vmax.f32 %v2523, %v2524
        %v2526 = vsel %vm1425, %v2482, -inf
        %v2527 = vrot.slane %v2526, 4
        %v2528 = vmax.f32 %v2526, %v2527
        %v2529 = vrot.slane %v2528, 2
        %v2530 = vmax.f32 %v2528, %v2529
        %v2531 = vrot.slane %v2530, 1
        %v2532 = vmax.f32 %v2530, %v2531
        %v2533 = vsel %vm1425, %v2483, -inf
        %v2534 = vrot.slane %v2533, 4
        %v2535 = vmax.f32 %v2533, %v2534
        %v2536 = vrot.slane %v2535, 2
        %v2537 = vmax.f32 %v2535, %v2536
        %v2538 = vrot.slane %v2537, 1
        %v2539 = vmax.f32 %v2537, %v2538
        %v2540 = vmax.f32 %v2476, 0.0
        %v2541 = vmax.f32 %v2477, 0.0
        %v2542 = vmax.f32 %v2478, 0.0
        %v2543 = vmax.f32 %v2479, 0.0
        %v2544 = vmax.f32 %v2480, 0.0
        %v2545 = vmax.f32 %v2481, 0.0
        %v2546 = vmax.f32 %v2482, 0.0
        %v2547 = vmax.f32 %v2483, 0.0
        %s2548 = scalar_lea.vmem %s31, 32
        %v2549 = vld [vmem:[%s2548] sm:$0xf]
        %v2550 = vld [vmem:[%s2548 + $0x4] sm:$0xf]
        %v2551 = vld [vmem:[%s2548 + $0x8] sm:$0xf]
        %v2552 = vld [vmem:[%s2548 + $0xc] sm:$0xf]
        %v2553 = vpack.c.bf16 %v2541, %v2540
        %v2554 = vpack.c.bf16 %v2543, %v2542
        %v2555 = vpack.c.bf16 %v2545, %v2544
        %v2556 = vpack.c.bf16 %v2547, %v2546
        %v2557 = vmax.f32 %v2490, 0.0
        %v2558 = vmax.f32 %v2497, 0.0
        %v2559 = vmax.f32 %v2504, 0.0
        %v2560 = vmax.f32 %v2511, 0.0
        %v2561 = vmax.f32 %v2518, 0.0
        %v2562 = vmax.f32 %v2525, 0.0
        %v2563 = vmax.f32 %v2532, 0.0
        %v2564 = vmax.f32 %v2539, 0.0
        %s2565 = scalar_lea.vmem %s33, 32
        %v2566 = vld [vmem:[%s2565] sm:$0xf]
        %v2567 = vld [vmem:[%s2565 + $0x4] sm:$0xf]
        %v2568 = vld [vmem:[%s2565 + $0x8] sm:$0xf]
        %v2569 = vld [vmem:[%s2565 + $0xc] sm:$0xf]
        %v2570 = vpack.c.bf16 %v2557, %v2557
        %v2571 = vpack.c.bf16 %v2558, %v2558
        %v2572 = vpack.c.bf16 %v2559, %v2559
        %v2573 = vpack.c.bf16 %v2560, %v2560
        %v2574 = vpack.c.bf16 %v2561, %v2561
        %v2575 = vpack.c.bf16 %v2562, %v2562
        %v2576 = vpack.c.bf16 %v2563, %v2563
        %v2577 = vpack.c.bf16 %v2564, %v2564
        %v2586 = vunpack.c.l.b16 %v2570
        %v2587 = vunpack.c.l.b16 %v2571
        %v2588 = vunpack.c.l.b16 %v2572
        %v2589 = vunpack.c.l.b16 %v2573
        %v2590 = vunpack.c.l.b16 %v2574
        %v2591 = vunpack.c.l.b16 %v2575
        %v2592 = vunpack.c.l.b16 %v2576
        %v2593 = vunpack.c.l.b16 %v2577
        %v2594 = vsel %vm1652, %v2587, %v2586
        %v2595 = vsel %vm1654, %v2588, %v2594
        %v2596 = vsel %vm1656, %v2589, %v2595
        %v2597 = vsel %vm1658, %v2590, %v2596
        %v2598 = vsel %vm1660, %v2591, %v2597
        %v2599 = vsel %vm1662, %v2592, %v2598
        %v2600 = vsel %vm1664, %v2593, %v2599
        %v2601 = vpack.c.b16 %v2600, %v2600
        %v2606 = vunpack.c.l.b16 %v2566
        %v2607 = vunpack.c.l.b16 %v2567
        %v2608 = vunpack.c.l.b16 %v2568
        %v2609 = vunpack.c.l.b16 %v2569
        %v2610 = vpack.c.b16 %v2607, %v2606
        %v2611 = vpack.c.b16 %v2609, %v2608
        %v2615 = vsel %vm1425, %v2601, 0
        %2617 = vmatpush.bf16.msra.mxu0 0
        %2618 = vmatpush.bf16.msra.mxu0 0
        %2619 = vmatpush.bf16.msra.mxu0 0
        %2620 = vmatpush.bf16.msra.mxu0 0
        %2621 = vmatpush.bf16.msra.mxu0 0
        %2622 = vmatpush.bf16.msra.mxu0 0
        %2623 = vmatpush.bf16.msra.mxu0 %v2611
        %2624 = vmatpush.bf16.msra.mxu0 %v2610
        %2625 = vmatmul.bf16.gmra.mxu0 %v2615
        %v2626 = vpop.f32.mrf.mxu0
        %v2627 = vadd.f32 0.0, %v2626
        %v2628 = vpop.f32.mrf.mxu0
        %2629 = vdwg.mxu0
        %v2631 = vrot.slane %v2627, 1
        %v2632 = vrot.slane %v2627, 2
        %v2633 = vrot.slane %v2627, 3
        %v2634 = vrot.slane %v2627, 4
        %v2635 = vrot.slane %v2627, 5
        %v2636 = vrot.slane %v2627, 6
        %v2637 = vrot.slane %v2627, 7
        %v2638 = vperm.slane %v2627, 0
        %v2639 = vperm.slane %v2631, 0
        %v2640 = vperm.slane %v2632, 0
        %v2641 = vperm.slane %v2633, 0
        %v2642 = vperm.slane %v2634, 0
        %v2643 = vperm.slane %v2635, 0
        %v2644 = vperm.slane %v2636, 0
        %v2645 = vperm.slane %v2637, 0
        %v2658 = vunpack.c.l.b16 %v2549
        %v2659 = vunpack.c.l.b16 %v2550
        %v2660 = vunpack.c.l.b16 %v2551
        %v2661 = vunpack.c.l.b16 %v2552
        %v2662 = vpack.c.b16 %v2659, %v2658
        %v2663 = vpack.c.b16 %v2661, %v2660
        %v2667 = vsel %vm1425, %v2553, 0
        %v2670 = vsel %vm1425, %v2554, 0
        %v2673 = vsel %vm1425, %v2555, 0
        %v2676 = vsel %vm1425, %v2556, 0
        %2678 = vmatpush.bf16.msra.mxu0 0
        %2679 = vmatpush.bf16.msra.mxu0 0
        %2680 = vmatpush.bf16.msra.mxu0 0
        %2681 = vmatpush.bf16.msra.mxu0 0
        %2682 = vmatpush.bf16.msra.mxu0 0
        %2683 = vmatpush.bf16.msra.mxu0 0
        %2684 = vmatpush.bf16.msra.mxu0 %v2663
        %2685 = vmatpush.bf16.msra.mxu0 %v2662
        %2686 = vmatmul.bf16.gmra.mxu0 %v2667
        %v2687 = vpop.f32.mrf.mxu0
        %v2688 = vadd.f32 %v2638, %v2687
        %v2689 = vpop.f32.mrf.mxu0
        %v2690 = vadd.f32 %v2639, %v2689
        %2691 = vmatmul.bf16.gmra.mxu0 %v2670
        %v2692 = vpop.f32.mrf.mxu0
        %v2693 = vadd.f32 %v2640, %v2692
        %v2694 = vpop.f32.mrf.mxu0
        %v2695 = vadd.f32 %v2641, %v2694
        %2696 = vmatmul.bf16.gmra.mxu0 %v2673
        %v2697 = vpop.f32.mrf.mxu0
        %v2698 = vadd.f32 %v2642, %v2697
        %v2699 = vpop.f32.mrf.mxu0
        %v2700 = vadd.f32 %v2643, %v2699
        %2701 = vmatmul.bf16.gmra.mxu0 %v2676
        %v2702 = vpop.f32.mrf.mxu0
        %v2703 = vadd.f32 %v2644, %v2702
        %v2704 = vpop.f32.mrf.mxu0
        %v2705 = vadd.f32 %v2645, %v2704
        %2706 = vdwg.mxu0
        %s2707 = scalar_lea.vmem %s35, 2
        %v2708 = vld [vmem:[%s2707] sm:$0x1]
        %v2710 = vperm.slane %v2708, 0
        %v2712 = vadd.f32 %v2688, %v2710
        %v2713 = vadd.f32 %v2690, %v2710
        %v2714 = vadd.f32 %v2693, %v2710
        %v2715 = vadd.f32 %v2695, %v2710
        %v2716 = vadd.f32 %v2698, %v2710
        %v2717 = vadd.f32 %v2700, %v2710
        %v2718 = vadd.f32 %v2703, %v2710
        %v2719 = vadd.f32 %v2705, %v2710
        %v2720 = vmax.f32 %v2712, 0.0
        %v2721 = vmax.f32 %v2713, 0.0
        %v2722 = vmax.f32 %v2714, 0.0
        %v2723 = vmax.f32 %v2715, 0.0
        %v2724 = vmax.f32 %v2716, 0.0
        %v2725 = vmax.f32 %v2717, 0.0
        %v2726 = vmax.f32 %v2718, 0.0
        %v2727 = vmax.f32 %v2719, 0.0
        %s2728 = scalar_lea.vmem %s37, 32
        %v2729 = vld [vmem:[%s2728] sm:$0xf]
        %v2730 = vld [vmem:[%s2728 + $0x4] sm:$0xf]
        %v2731 = vld [vmem:[%s2728 + $0x8] sm:$0xf]
        %v2732 = vld [vmem:[%s2728 + $0xc] sm:$0xf]
        %v2733 = vpack.c.bf16 %v2721, %v2720
        %v2734 = vpack.c.bf16 %v2723, %v2722
        %v2735 = vpack.c.bf16 %v2725, %v2724
        %v2736 = vpack.c.bf16 %v2727, %v2726
        %s2737 = scalar_lea.vmem %s39, 2
        %v2738 = vld [vmem:[%s2737] sm:$0x1]
        %v2740 = vperm.slane %v2738, 0
        %v2746 = vunpack.c.l.b16 %v2729
        %v2747 = vunpack.c.l.b16 %v2730
        %v2748 = vunpack.c.l.b16 %v2731
        %v2749 = vunpack.c.l.b16 %v2732
        %v2750 = vpack.c.b16 %v2747, %v2746
        %v2751 = vpack.c.b16 %v2749, %v2748
        %v2755 = vsel %vm1425, %v2733, 0
        %v2758 = vsel %vm1425, %v2734, 0
        %v2761 = vsel %vm1425, %v2735, 0
        %v2764 = vsel %vm1425, %v2736, 0
        %2766 = vmatpush.bf16.msra.mxu0 0
        %2767 = vmatpush.bf16.msra.mxu0 0
        %2768 = vmatpush.bf16.msra.mxu0 0
        %2769 = vmatpush.bf16.msra.mxu0 0
        %2770 = vmatpush.bf16.msra.mxu0 0
        %2771 = vmatpush.bf16.msra.mxu0 0
        %2772 = vmatpush.bf16.msra.mxu0 %v2751
        %2773 = vmatpush.bf16.msra.mxu0 %v2750
        %2774 = vmatmul.bf16.gmra.mxu0 %v2755
        %v2775 = vpop.f32.mrf.mxu0
        %v2776 = vadd.f32 %v2740, %v2775
        %v2777 = vpop.f32.mrf.mxu0
        %v2778 = vadd.f32 %v2740, %v2777
        %2779 = vmatmul.bf16.gmra.mxu0 %v2758
        %v2780 = vpop.f32.mrf.mxu0
        %v2781 = vadd.f32 %v2740, %v2780
        %v2782 = vpop.f32.mrf.mxu0
        %v2783 = vadd.f32 %v2740, %v2782
        %2784 = vmatmul.bf16.gmra.mxu0 %v2761
        %v2785 = vpop.f32.mrf.mxu0
        %v2786 = vadd.f32 %v2740, %v2785
        %v2787 = vpop.f32.mrf.mxu0
        %v2788 = vadd.f32 %v2740, %v2787
        %2789 = vmatmul.bf16.gmra.mxu0 %v2764
        %v2790 = vpop.f32.mrf.mxu0
        %v2791 = vadd.f32 %v2740, %v2790
        %v2792 = vpop.f32.mrf.mxu0
        %v2793 = vadd.f32 %v2740, %v2792
        %2794 = vdwg.mxu0
        %s2795 = scalar_lea.vmem %s41, 32
        %v2796 = vld [vmem:[%s2795] sm:$0xf]
        %v2797 = vld [vmem:[%s2795 + $0x4] sm:$0xf]
        %v2798 = vld [vmem:[%s2795 + $0x8] sm:$0xf]
        %v2799 = vld [vmem:[%s2795 + $0xc] sm:$0xf]
        %v2800 = vpack.c.bf16 %v2477, %v2476
        %v2801 = vpack.c.bf16 %v2479, %v2478
        %v2802 = vpack.c.bf16 %v2481, %v2480
        %v2803 = vpack.c.bf16 %v2483, %v2482
        %s2804 = scalar_lea.vmem %s43, 32
        %v2805 = vld [vmem:[%s2804] sm:$0xf]
        %v2806 = vld [vmem:[%s2804 + $0x4] sm:$0xf]
        %v2807 = vld [vmem:[%s2804 + $0x8] sm:$0xf]
        %v2808 = vld [vmem:[%s2804 + $0xc] sm:$0xf]
        %v2809 = vpack.c.bf16 %v2490, %v2490
        %v2810 = vpack.c.bf16 %v2497, %v2497
        %v2811 = vpack.c.bf16 %v2504, %v2504
        %v2812 = vpack.c.bf16 %v2511, %v2511
        %v2813 = vpack.c.bf16 %v2518, %v2518
        %v2814 = vpack.c.bf16 %v2525, %v2525
        %v2815 = vpack.c.bf16 %v2532, %v2532
        %v2816 = vpack.c.bf16 %v2539, %v2539
        %v2825 = vunpack.c.l.b16 %v2809
        %v2826 = vunpack.c.l.b16 %v2810
        %v2827 = vunpack.c.l.b16 %v2811
        %v2828 = vunpack.c.l.b16 %v2812
        %v2829 = vunpack.c.l.b16 %v2813
        %v2830 = vunpack.c.l.b16 %v2814
        %v2831 = vunpack.c.l.b16 %v2815
        %v2832 = vunpack.c.l.b16 %v2816
        %v2833 = vsel %vm1652, %v2826, %v2825
        %v2834 = vsel %vm1654, %v2827, %v2833
        %v2835 = vsel %vm1656, %v2828, %v2834
        %v2836 = vsel %vm1658, %v2829, %v2835
        %v2837 = vsel %vm1660, %v2830, %v2836
        %v2838 = vsel %vm1662, %v2831, %v2837
        %v2839 = vsel %vm1664, %v2832, %v2838
        %v2840 = vpack.c.b16 %v2839, %v2839
        %v2845 = vunpack.c.l.b16 %v2805
        %v2846 = vunpack.c.l.b16 %v2806
        %v2847 = vunpack.c.l.b16 %v2807
        %v2848 = vunpack.c.l.b16 %v2808
        %v2849 = vpack.c.b16 %v2846, %v2845
        %v2850 = vpack.c.b16 %v2848, %v2847
        %v2854 = vsel %vm1425, %v2840, 0
        %2856 = vmatpush.bf16.msra.mxu0 0
        %2857 = vmatpush.bf16.msra.mxu0 0
        %2858 = vmatpush.bf16.msra.mxu0 0
        %2859 = vmatpush.bf16.msra.mxu0 0
        %2860 = vmatpush.bf16.msra.mxu0 0
        %2861 = vmatpush.bf16.msra.mxu0 0
        %2862 = vmatpush.bf16.msra.mxu0 %v2850
        %2863 = vmatpush.bf16.msra.mxu0 %v2849
        %2864 = vmatmul.bf16.gmra.mxu0 %v2854
        %v2865 = vpop.f32.mrf.mxu0
        %v2866 = vadd.f32 0.0, %v2865
        %v2867 = vpop.f32.mrf.mxu0
        %2868 = vdwg.mxu0
        %v2870 = vrot.slane %v2866, 1
        %v2871 = vrot.slane %v2866, 2
        %v2872 = vrot.slane %v2866, 3
        %v2873 = vrot.slane %v2866, 4
        %v2874 = vrot.slane %v2866, 5
        %v2875 = vrot.slane %v2866, 6
        %v2876 = vrot.slane %v2866, 7
        %v2877 = vperm.slane %v2866, 0
        %v2878 = vperm.slane %v2870, 0
        %v2879 = vperm.slane %v2871, 0
        %v2880 = vperm.slane %v2872, 0
        %v2881 = vperm.slane %v2873, 0
        %v2882 = vperm.slane %v2874, 0
        %v2883 = vperm.slane %v2875, 0
        %v2884 = vperm.slane %v2876, 0
        %v2897 = vunpack.c.l.b16 %v2796
        %v2898 = vunpack.c.l.b16 %v2797
        %v2899 = vunpack.c.l.b16 %v2798
        %v2900 = vunpack.c.l.b16 %v2799
        %v2901 = vpack.c.b16 %v2898, %v2897
        %v2902 = vpack.c.b16 %v2900, %v2899
        %v2906 = vsel %vm1425, %v2800, 0
        %v2909 = vsel %vm1425, %v2801, 0
        %v2912 = vsel %vm1425, %v2802, 0
        %v2915 = vsel %vm1425, %v2803, 0
        %2917 = vmatpush.bf16.msra.mxu0 0
        %2918 = vmatpush.bf16.msra.mxu0 0
        %2919 = vmatpush.bf16.msra.mxu0 0
        %2920 = vmatpush.bf16.msra.mxu0 0
        %2921 = vmatpush.bf16.msra.mxu0 0
        %2922 = vmatpush.bf16.msra.mxu0 0
        %2923 = vmatpush.bf16.msra.mxu0 %v2902
        %2924 = vmatpush.bf16.msra.mxu0 %v2901
        %2925 = vmatmul.bf16.gmra.mxu0 %v2906
        %v2926 = vpop.f32.mrf.mxu0
        %v2927 = vadd.f32 %v2877, %v2926
        %v2928 = vpop.f32.mrf.mxu0
        %v2929 = vadd.f32 %v2878, %v2928
        %2930 = vmatmul.bf16.gmra.mxu0 %v2909
        %v2931 = vpop.f32.mrf.mxu0
        %v2932 = vadd.f32 %v2879, %v2931
        %v2933 = vpop.f32.mrf.mxu0
        %v2934 = vadd.f32 %v2880, %v2933
        %2935 = vmatmul.bf16.gmra.mxu0 %v2912
        %v2936 = vpop.f32.mrf.mxu0
        %v2937 = vadd.f32 %v2881, %v2936
        %v2938 = vpop.f32.mrf.mxu0
        %v2939 = vadd.f32 %v2882, %v2938
        %2940 = vmatmul.bf16.gmra.mxu0 %v2915
        %v2941 = vpop.f32.mrf.mxu0
        %v2942 = vadd.f32 %v2883, %v2941
        %v2943 = vpop.f32.mrf.mxu0
        %v2944 = vadd.f32 %v2884, %v2943
        %2945 = vdwg.mxu0
        %v2946 = vadd.f32 %v2927, %v2776
        %v2947 = vadd.f32 %v2929, %v2778
        %v2948 = vadd.f32 %v2932, %v2781
        %v2949 = vadd.f32 %v2934, %v2783
        %v2950 = vadd.f32 %v2937, %v2786
        %v2951 = vadd.f32 %v2939, %v2788
        %v2952 = vadd.f32 %v2942, %v2791
        %v2953 = vadd.f32 %v2944, %v2793
        %v2954 = vsel %vm1425, %v2946, -inf
        %v2955 = vrot.slane %v2954, 4
        %v2956 = vmax.f32 %v2954, %v2955
        %v2957 = vrot.slane %v2956, 2
        %v2958 = vmax.f32 %v2956, %v2957
        %v2959 = vrot.slane %v2958, 1
        %v2960 = vmax.f32 %v2958, %v2959
        %v2961 = vsel %vm1425, %v2947, -inf
        %v2962 = vrot.slane %v2961, 4
        %v2963 = vmax.f32 %v2961, %v2962
        %v2964 = vrot.slane %v2963, 2
        %v2965 = vmax.f32 %v2963, %v2964
        %v2966 = vrot.slane %v2965, 1
        %v2967 = vmax.f32 %v2965, %v2966
        %v2968 = vsel %vm1425, %v2948, -inf
        %v2969 = vrot.slane %v2968, 4
        %v2970 = vmax.f32 %v2968, %v2969
        %v2971 = vrot.slane %v2970, 2
        %v2972 = vmax.f32 %v2970, %v2971
        %v2973 = vrot.slane %v2972, 1
        %v2974 = vmax.f32 %v2972, %v2973
        %v2975 = vsel %vm1425, %v2949, -inf
        %v2976 = vrot.slane %v2975, 4
        %v2977 = vmax.f32 %v2975, %v2976
        %v2978 = vrot.slane %v2977, 2
        %v2979 = vmax.f32 %v2977, %v2978
        %v2980 = vrot.slane %v2979, 1
        %v2981 = vmax.f32 %v2979, %v2980
        %v2982 = vsel %vm1425, %v2950, -inf
        %v2983 = vrot.slane %v2982, 4
        %v2984 = vmax.f32 %v2982, %v2983
        %v2985 = vrot.slane %v2984, 2
        %v2986 = vmax.f32 %v2984, %v2985
        %v2987 = vrot.slane %v2986, 1
        %v2988 = vmax.f32 %v2986, %v2987
        %v2989 = vsel %vm1425, %v2951, -inf
        %v2990 = vrot.slane %v2989, 4
        %v2991 = vmax.f32 %v2989, %v2990
        %v2992 = vrot.slane %v2991, 2
        %v2993 = vmax.f32 %v2991, %v2992
        %v2994 = vrot.slane %v2993, 1
        %v2995 = vmax.f32 %v2993, %v2994
        %v2996 = vsel %vm1425, %v2952, -inf
        %v2997 = vrot.slane %v2996, 4
        %v2998 = vmax.f32 %v2996, %v2997
        %v2999 = vrot.slane %v2998, 2
        %v3000 = vmax.f32 %v2998, %v2999
        %v3001 = vrot.slane %v3000, 1
        %v3002 = vmax.f32 %v3000, %v3001
        %v3003 = vsel %vm1425, %v2953, -inf
        %v3004 = vrot.slane %v3003, 4
        %v3005 = vmax.f32 %v3003, %v3004
        %v3006 = vrot.slane %v3005, 2
        %v3007 = vmax.f32 %v3005, %v3006
        %v3008 = vrot.slane %v3007, 1
        %v3009 = vmax.f32 %v3007, %v3008
        %v3010 = vmax.f32 %v2946, 0.0
        %v3011 = vmax.f32 %v2947, 0.0
        %v3012 = vmax.f32 %v2948, 0.0
        %v3013 = vmax.f32 %v2949, 0.0
        %v3014 = vmax.f32 %v2950, 0.0
        %v3015 = vmax.f32 %v2951, 0.0
        %v3016 = vmax.f32 %v2952, 0.0
        %v3017 = vmax.f32 %v2953, 0.0
        %s3018 = scalar_lea.vmem %s31, 48
        %v3019 = vld [vmem:[%s3018] sm:$0xf]
        %v3020 = vld [vmem:[%s3018 + $0x4] sm:$0xf]
        %v3021 = vld [vmem:[%s3018 + $0x8] sm:$0xf]
        %v3022 = vld [vmem:[%s3018 + $0xc] sm:$0xf]
        %v3023 = vpack.c.bf16 %v3011, %v3010
        %v3024 = vpack.c.bf16 %v3013, %v3012
        %v3025 = vpack.c.bf16 %v3015, %v3014
        %v3026 = vpack.c.bf16 %v3017, %v3016
        %v3027 = vmax.f32 %v2960, 0.0
        %v3028 = vmax.f32 %v2967, 0.0
        %v3029 = vmax.f32 %v2974, 0.0
        %v3030 = vmax.f32 %v2981, 0.0
        %v3031 = vmax.f32 %v2988, 0.0
        %v3032 = vmax.f32 %v2995, 0.0
        %v3033 = vmax.f32 %v3002, 0.0
        %v3034 = vmax.f32 %v3009, 0.0
        %s3035 = scalar_lea.vmem %s33, 48
        %v3036 = vld [vmem:[%s3035] sm:$0xf]
        %v3037 = vld [vmem:[%s3035 + $0x4] sm:$0xf]
        %v3038 = vld [vmem:[%s3035 + $0x8] sm:$0xf]
        %v3039 = vld [vmem:[%s3035 + $0xc] sm:$0xf]
        %v3040 = vpack.c.bf16 %v3027, %v3027
        %v3041 = vpack.c.bf16 %v3028, %v3028
        %v3042 = vpack.c.bf16 %v3029, %v3029
        %v3043 = vpack.c.bf16 %v3030, %v3030
        %v3044 = vpack.c.bf16 %v3031, %v3031
        %v3045 = vpack.c.bf16 %v3032, %v3032
        %v3046 = vpack.c.bf16 %v3033, %v3033
        %v3047 = vpack.c.bf16 %v3034, %v3034
        %v3056 = vunpack.c.l.b16 %v3040
        %v3057 = vunpack.c.l.b16 %v3041
        %v3058 = vunpack.c.l.b16 %v3042
        %v3059 = vunpack.c.l.b16 %v3043
        %v3060 = vunpack.c.l.b16 %v3044
        %v3061 = vunpack.c.l.b16 %v3045
        %v3062 = vunpack.c.l.b16 %v3046
        %v3063 = vunpack.c.l.b16 %v3047
        %v3064 = vsel %vm1652, %v3057, %v3056
        %v3065 = vsel %vm1654, %v3058, %v3064
        %v3066 = vsel %vm1656, %v3059, %v3065
        %v3067 = vsel %vm1658, %v3060, %v3066
        %v3068 = vsel %vm1660, %v3061, %v3067
        %v3069 = vsel %vm1662, %v3062, %v3068
        %v3070 = vsel %vm1664, %v3063, %v3069
        %v3071 = vpack.c.b16 %v3070, %v3070
        %v3076 = vunpack.c.l.b16 %v3036
        %v3077 = vunpack.c.l.b16 %v3037
        %v3078 = vunpack.c.l.b16 %v3038
        %v3079 = vunpack.c.l.b16 %v3039
        %v3080 = vpack.c.b16 %v3077, %v3076
        %v3081 = vpack.c.b16 %v3079, %v3078
        %v3085 = vsel %vm1425, %v3071, 0
        %3087 = vmatpush.bf16.msra.mxu0 0
        %3088 = vmatpush.bf16.msra.mxu0 0
        %3089 = vmatpush.bf16.msra.mxu0 0
        %3090 = vmatpush.bf16.msra.mxu0 0
        %3091 = vmatpush.bf16.msra.mxu0 0
        %3092 = vmatpush.bf16.msra.mxu0 0
        %3093 = vmatpush.bf16.msra.mxu0 %v3081
        %3094 = vmatpush.bf16.msra.mxu0 %v3080
        %3095 = vmatmul.bf16.gmra.mxu0 %v3085
        %v3096 = vpop.f32.mrf.mxu0
        %v3097 = vadd.f32 0.0, %v3096
        %v3098 = vpop.f32.mrf.mxu0
        %3099 = vdwg.mxu0
        %v3101 = vrot.slane %v3097, 1
        %v3102 = vrot.slane %v3097, 2
        %v3103 = vrot.slane %v3097, 3
        %v3104 = vrot.slane %v3097, 4
        %v3105 = vrot.slane %v3097, 5
        %v3106 = vrot.slane %v3097, 6
        %v3107 = vrot.slane %v3097, 7
        %v3108 = vperm.slane %v3097, 0
        %v3109 = vperm.slane %v3101, 0
        %v3110 = vperm.slane %v3102, 0
        %v3111 = vperm.slane %v3103, 0
        %v3112 = vperm.slane %v3104, 0
        %v3113 = vperm.slane %v3105, 0
        %v3114 = vperm.slane %v3106, 0
        %v3115 = vperm.slane %v3107, 0
        %v3128 = vunpack.c.l.b16 %v3019
        %v3129 = vunpack.c.l.b16 %v3020
        %v3130 = vunpack.c.l.b16 %v3021
        %v3131 = vunpack.c.l.b16 %v3022
        %v3132 = vpack.c.b16 %v3129, %v3128
        %v3133 = vpack.c.b16 %v3131, %v3130
        %v3137 = vsel %vm1425, %v3023, 0
        %v3140 = vsel %vm1425, %v3024, 0
        %v3143 = vsel %vm1425, %v3025, 0
        %v3146 = vsel %vm1425, %v3026, 0
        %3148 = vmatpush.bf16.msra.mxu0 0
        %3149 = vmatpush.bf16.msra.mxu0 0
        %3150 = vmatpush.bf16.msra.mxu0 0
        %3151 = vmatpush.bf16.msra.mxu0 0
        %3152 = vmatpush.bf16.msra.mxu0 0
        %3153 = vmatpush.bf16.msra.mxu0 0
        %3154 = vmatpush.bf16.msra.mxu0 %v3133
        %3155 = vmatpush.bf16.msra.mxu0 %v3132
        %3156 = vmatmul.bf16.gmra.mxu0 %v3137
        %v3157 = vpop.f32.mrf.mxu0
        %v3158 = vadd.f32 %v3108, %v3157
        %v3159 = vpop.f32.mrf.mxu0
        %v3160 = vadd.f32 %v3109, %v3159
        %3161 = vmatmul.bf16.gmra.mxu0 %v3140
        %v3162 = vpop.f32.mrf.mxu0
        %v3163 = vadd.f32 %v3110, %v3162
        %v3164 = vpop.f32.mrf.mxu0
        %v3165 = vadd.f32 %v3111, %v3164
        %3166 = vmatmul.bf16.gmra.mxu0 %v3143
        %v3167 = vpop.f32.mrf.mxu0
        %v3168 = vadd.f32 %v3112, %v3167
        %v3169 = vpop.f32.mrf.mxu0
        %v3170 = vadd.f32 %v3113, %v3169
        %3171 = vmatmul.bf16.gmra.mxu0 %v3146
        %v3172 = vpop.f32.mrf.mxu0
        %v3173 = vadd.f32 %v3114, %v3172
        %v3174 = vpop.f32.mrf.mxu0
        %v3175 = vadd.f32 %v3115, %v3174
        %3176 = vdwg.mxu0
        %s3177 = scalar_lea.vmem %s35, 3
        %v3178 = vld [vmem:[%s3177] sm:$0x1]
        %v3180 = vperm.slane %v3178, 0
        %v3182 = vadd.f32 %v3158, %v3180
        %v3183 = vadd.f32 %v3160, %v3180
        %v3184 = vadd.f32 %v3163, %v3180
        %v3185 = vadd.f32 %v3165, %v3180
        %v3186 = vadd.f32 %v3168, %v3180
        %v3187 = vadd.f32 %v3170, %v3180
        %v3188 = vadd.f32 %v3173, %v3180
        %v3189 = vadd.f32 %v3175, %v3180
        %v3190 = vmax.f32 %v3182, 0.0
        %v3191 = vmax.f32 %v3183, 0.0
        %v3192 = vmax.f32 %v3184, 0.0
        %v3193 = vmax.f32 %v3185, 0.0
        %v3194 = vmax.f32 %v3186, 0.0
        %v3195 = vmax.f32 %v3187, 0.0
        %v3196 = vmax.f32 %v3188, 0.0
        %v3197 = vmax.f32 %v3189, 0.0
        %s3198 = scalar_lea.vmem %s37, 48
        %v3199 = vld [vmem:[%s3198] sm:$0xf]
        %v3200 = vld [vmem:[%s3198 + $0x4] sm:$0xf]
        %v3201 = vld [vmem:[%s3198 + $0x8] sm:$0xf]
        %v3202 = vld [vmem:[%s3198 + $0xc] sm:$0xf]
        %v3203 = vpack.c.bf16 %v3191, %v3190
        %v3204 = vpack.c.bf16 %v3193, %v3192
        %v3205 = vpack.c.bf16 %v3195, %v3194
        %v3206 = vpack.c.bf16 %v3197, %v3196
        %s3207 = scalar_lea.vmem %s39, 3
        %v3208 = vld [vmem:[%s3207] sm:$0x1]
        %v3210 = vperm.slane %v3208, 0
        %v3216 = vunpack.c.l.b16 %v3199
        %v3217 = vunpack.c.l.b16 %v3200
        %v3218 = vunpack.c.l.b16 %v3201
        %v3219 = vunpack.c.l.b16 %v3202
        %v3220 = vpack.c.b16 %v3217, %v3216
        %v3221 = vpack.c.b16 %v3219, %v3218
        %v3225 = vsel %vm1425, %v3203, 0
        %v3228 = vsel %vm1425, %v3204, 0
        %v3231 = vsel %vm1425, %v3205, 0
        %v3234 = vsel %vm1425, %v3206, 0
        %3236 = vmatpush.bf16.msra.mxu0 0
        %3237 = vmatpush.bf16.msra.mxu0 0
        %3238 = vmatpush.bf16.msra.mxu0 0
        %3239 = vmatpush.bf16.msra.mxu0 0
        %3240 = vmatpush.bf16.msra.mxu0 0
        %3241 = vmatpush.bf16.msra.mxu0 0
        %3242 = vmatpush.bf16.msra.mxu0 %v3221
        %3243 = vmatpush.bf16.msra.mxu0 %v3220
        %3244 = vmatmul.bf16.gmra.mxu0 %v3225
        %v3245 = vpop.f32.mrf.mxu0
        %v3246 = vadd.f32 %v3210, %v3245
        %v3247 = vpop.f32.mrf.mxu0
        %v3248 = vadd.f32 %v3210, %v3247
        %3249 = vmatmul.bf16.gmra.mxu0 %v3228
        %v3250 = vpop.f32.mrf.mxu0
        %v3251 = vadd.f32 %v3210, %v3250
        %v3252 = vpop.f32.mrf.mxu0
        %v3253 = vadd.f32 %v3210, %v3252
        %3254 = vmatmul.bf16.gmra.mxu0 %v3231
        %v3255 = vpop.f32.mrf.mxu0
        %v3256 = vadd.f32 %v3210, %v3255
        %v3257 = vpop.f32.mrf.mxu0
        %v3258 = vadd.f32 %v3210, %v3257
        %3259 = vmatmul.bf16.gmra.mxu0 %v3234
        %v3260 = vpop.f32.mrf.mxu0
        %v3261 = vadd.f32 %v3210, %v3260
        %v3262 = vpop.f32.mrf.mxu0
        %v3263 = vadd.f32 %v3210, %v3262
        %3264 = vdwg.mxu0
        %s3265 = scalar_lea.vmem %s41, 48
        %v3266 = vld [vmem:[%s3265] sm:$0xf]
        %v3267 = vld [vmem:[%s3265 + $0x4] sm:$0xf]
        %v3268 = vld [vmem:[%s3265 + $0x8] sm:$0xf]
        %v3269 = vld [vmem:[%s3265 + $0xc] sm:$0xf]
        %v3270 = vpack.c.bf16 %v2947, %v2946
        %v3271 = vpack.c.bf16 %v2949, %v2948
        %v3272 = vpack.c.bf16 %v2951, %v2950
        %v3273 = vpack.c.bf16 %v2953, %v2952
        %s3274 = scalar_lea.vmem %s43, 48
        %v3275 = vld [vmem:[%s3274] sm:$0xf]
        %v3276 = vld [vmem:[%s3274 + $0x4] sm:$0xf]
        %v3277 = vld [vmem:[%s3274 + $0x8] sm:$0xf]
        %v3278 = vld [vmem:[%s3274 + $0xc] sm:$0xf]
        %v3279 = vpack.c.bf16 %v2960, %v2960
        %v3280 = vpack.c.bf16 %v2967, %v2967
        %v3281 = vpack.c.bf16 %v2974, %v2974
        %v3282 = vpack.c.bf16 %v2981, %v2981
        %v3283 = vpack.c.bf16 %v2988, %v2988
        %v3284 = vpack.c.bf16 %v2995, %v2995
        %v3285 = vpack.c.bf16 %v3002, %v3002
        %v3286 = vpack.c.bf16 %v3009, %v3009
        %v3295 = vunpack.c.l.b16 %v3279
        %v3296 = vunpack.c.l.b16 %v3280
        %v3297 = vunpack.c.l.b16 %v3281
        %v3298 = vunpack.c.l.b16 %v3282
        %v3299 = vunpack.c.l.b16 %v3283
        %v3300 = vunpack.c.l.b16 %v3284
        %v3301 = vunpack.c.l.b16 %v3285
        %v3302 = vunpack.c.l.b16 %v3286
        %v3303 = vsel %vm1652, %v3296, %v3295
        %v3304 = vsel %vm1654, %v3297, %v3303
        %v3305 = vsel %vm1656, %v3298, %v3304
        %v3306 = vsel %vm1658, %v3299, %v3305
        %v3307 = vsel %vm1660, %v3300, %v3306
        %v3308 = vsel %vm1662, %v3301, %v3307
        %v3309 = vsel %vm1664, %v3302, %v3308
        %v3310 = vpack.c.b16 %v3309, %v3309
        %v3315 = vunpack.c.l.b16 %v3275
        %v3316 = vunpack.c.l.b16 %v3276
        %v3317 = vunpack.c.l.b16 %v3277
        %v3318 = vunpack.c.l.b16 %v3278
        %v3319 = vpack.c.b16 %v3316, %v3315
        %v3320 = vpack.c.b16 %v3318, %v3317
        %v3324 = vsel %vm1425, %v3310, 0
        %3326 = vmatpush.bf16.msra.mxu0 0
        %3327 = vmatpush.bf16.msra.mxu0 0
        %3328 = vmatpush.bf16.msra.mxu0 0
        %3329 = vmatpush.bf16.msra.mxu0 0
        %3330 = vmatpush.bf16.msra.mxu0 0
        %3331 = vmatpush.bf16.msra.mxu0 0
        %3332 = vmatpush.bf16.msra.mxu0 %v3320
        %3333 = vmatpush.bf16.msra.mxu0 %v3319
        %3334 = vmatmul.bf16.gmra.mxu0 %v3324
        %v3335 = vpop.f32.mrf.mxu0
        %v3336 = vadd.f32 0.0, %v3335
        %v3337 = vpop.f32.mrf.mxu0
        %3338 = vdwg.mxu0
        %v3340 = vrot.slane %v3336, 1
        %v3341 = vrot.slane %v3336, 2
        %v3342 = vrot.slane %v3336, 3
        %v3343 = vrot.slane %v3336, 4
        %v3344 = vrot.slane %v3336, 5
        %v3345 = vrot.slane %v3336, 6
        %v3346 = vrot.slane %v3336, 7
        %v3347 = vperm.slane %v3336, 0
        %v3348 = vperm.slane %v3340, 0
        %v3349 = vperm.slane %v3341, 0
        %v3350 = vperm.slane %v3342, 0
        %v3351 = vperm.slane %v3343, 0
        %v3352 = vperm.slane %v3344, 0
        %v3353 = vperm.slane %v3345, 0
        %v3354 = vperm.slane %v3346, 0
        %v3367 = vunpack.c.l.b16 %v3266
        %v3368 = vunpack.c.l.b16 %v3267
        %v3369 = vunpack.c.l.b16 %v3268
        %v3370 = vunpack.c.l.b16 %v3269
        %v3371 = vpack.c.b16 %v3368, %v3367
        %v3372 = vpack.c.b16 %v3370, %v3369
        %v3376 = vsel %vm1425, %v3270, 0
        %v3379 = vsel %vm1425, %v3271, 0
        %v3382 = vsel %vm1425, %v3272, 0
        %v3385 = vsel %vm1425, %v3273, 0
        %3387 = vmatpush.bf16.msra.mxu0 0
        %3388 = vmatpush.bf16.msra.mxu0 0
        %3389 = vmatpush.bf16.msra.mxu0 0
        %3390 = vmatpush.bf16.msra.mxu0 0
        %3391 = vmatpush.bf16.msra.mxu0 0
        %3392 = vmatpush.bf16.msra.mxu0 0
        %3393 = vmatpush.bf16.msra.mxu0 %v3372
        %3394 = vmatpush.bf16.msra.mxu0 %v3371
        %3395 = vmatmul.bf16.gmra.mxu0 %v3376
        %v3396 = vpop.f32.mrf.mxu0
        %v3397 = vadd.f32 %v3347, %v3396
        %v3398 = vpop.f32.mrf.mxu0
        %v3399 = vadd.f32 %v3348, %v3398
        %3400 = vmatmul.bf16.gmra.mxu0 %v3379
        %v3401 = vpop.f32.mrf.mxu0
        %v3402 = vadd.f32 %v3349, %v3401
        %v3403 = vpop.f32.mrf.mxu0
        %v3404 = vadd.f32 %v3350, %v3403
        %3405 = vmatmul.bf16.gmra.mxu0 %v3382
        %v3406 = vpop.f32.mrf.mxu0
        %v3407 = vadd.f32 %v3351, %v3406
        %v3408 = vpop.f32.mrf.mxu0
        %v3409 = vadd.f32 %v3352, %v3408
        %3410 = vmatmul.bf16.gmra.mxu0 %v3385
        %v3411 = vpop.f32.mrf.mxu0
        %v3412 = vadd.f32 %v3353, %v3411
        %v3413 = vpop.f32.mrf.mxu0
        %v3414 = vadd.f32 %v3354, %v3413
        %3415 = vdwg.mxu0
        %v3416 = vadd.f32 %v3397, %v3246
        %v3417 = vadd.f32 %v3399, %v3248
        %v3418 = vadd.f32 %v3402, %v3251
        %v3419 = vadd.f32 %v3404, %v3253
        %v3420 = vadd.f32 %v3407, %v3256
        %v3421 = vadd.f32 %v3409, %v3258
        %v3422 = vadd.f32 %v3412, %v3261
        %v3423 = vadd.f32 %v3414, %v3263
        %v3424 = vsel %vm1425, %v3416, -inf
        %v3425 = vrot.slane %v3424, 4
        %v3426 = vmax.f32 %v3424, %v3425
        %v3427 = vrot.slane %v3426, 2
        %v3428 = vmax.f32 %v3426, %v3427
        %v3429 = vrot.slane %v3428, 1
        %v3430 = vmax.f32 %v3428, %v3429
        %v3431 = vsel %vm1425, %v3417, -inf
        %v3432 = vrot.slane %v3431, 4
        %v3433 = vmax.f32 %v3431, %v3432
        %v3434 = vrot.slane %v3433, 2
        %v3435 = vmax.f32 %v3433, %v3434
        %v3436 = vrot.slane %v3435, 1
        %v3437 = vmax.f32 %v3435, %v3436
        %v3438 = vsel %vm1425, %v3418, -inf
        %v3439 = vrot.slane %v3438, 4
        %v3440 = vmax.f32 %v3438, %v3439
        %v3441 = vrot.slane %v3440, 2
        %v3442 = vmax.f32 %v3440, %v3441
        %v3443 = vrot.slane %v3442, 1
        %v3444 = vmax.f32 %v3442, %v3443
        %v3445 = vsel %vm1425, %v3419, -inf
        %v3446 = vrot.slane %v3445, 4
        %v3447 = vmax.f32 %v3445, %v3446
        %v3448 = vrot.slane %v3447, 2
        %v3449 = vmax.f32 %v3447, %v3448
        %v3450 = vrot.slane %v3449, 1
        %v3451 = vmax.f32 %v3449, %v3450
        %v3452 = vsel %vm1425, %v3420, -inf
        %v3453 = vrot.slane %v3452, 4
        %v3454 = vmax.f32 %v3452, %v3453
        %v3455 = vrot.slane %v3454, 2
        %v3456 = vmax.f32 %v3454, %v3455
        %v3457 = vrot.slane %v3456, 1
        %v3458 = vmax.f32 %v3456, %v3457
        %v3459 = vsel %vm1425, %v3421, -inf
        %v3460 = vrot.slane %v3459, 4
        %v3461 = vmax.f32 %v3459, %v3460
        %v3462 = vrot.slane %v3461, 2
        %v3463 = vmax.f32 %v3461, %v3462
        %v3464 = vrot.slane %v3463, 1
        %v3465 = vmax.f32 %v3463, %v3464
        %v3466 = vsel %vm1425, %v3422, -inf
        %v3467 = vrot.slane %v3466, 4
        %v3468 = vmax.f32 %v3466, %v3467
        %v3469 = vrot.slane %v3468, 2
        %v3470 = vmax.f32 %v3468, %v3469
        %v3471 = vrot.slane %v3470, 1
        %v3472 = vmax.f32 %v3470, %v3471
        %v3473 = vsel %vm1425, %v3423, -inf
        %v3474 = vrot.slane %v3473, 4
        %v3475 = vmax.f32 %v3473, %v3474
        %v3476 = vrot.slane %v3475, 2
        %v3477 = vmax.f32 %v3475, %v3476
        %v3478 = vrot.slane %v3477, 1
        %v3479 = vmax.f32 %v3477, %v3478
        %v3480 = vmax.f32 %v3430, 0.0
        %v3481 = vmax.f32 %v3437, 0.0
        %v3482 = vmax.f32 %v3444, 0.0
        %v3483 = vmax.f32 %v3451, 0.0
        %v3484 = vmax.f32 %v3458, 0.0
        %v3485 = vmax.f32 %v3465, 0.0
        %v3486 = vmax.f32 %v3472, 0.0
        %v3487 = vmax.f32 %v3479, 0.0
        %v3488 = vld [vmem:[%s45] sm:$0xf]
        %v3489 = vld [vmem:[%s45 + $0x4] sm:$0xf]
        %v3490 = vld [vmem:[%s45 + $0x8] sm:$0xf]
        %v3491 = vld [vmem:[%s45 + $0xc] sm:$0xf]
        %v3492 = vpack.c.bf16 %v3480, %v3480
        %v3493 = vpack.c.bf16 %v3481, %v3481
        %v3494 = vpack.c.bf16 %v3482, %v3482
        %v3495 = vpack.c.bf16 %v3483, %v3483
        %v3496 = vpack.c.bf16 %v3484, %v3484
        %v3497 = vpack.c.bf16 %v3485, %v3485
        %v3498 = vpack.c.bf16 %v3486, %v3486
        %v3499 = vpack.c.bf16 %v3487, %v3487
        %v3500 = vld [vmem:[%s47] sm:$0x1]
        %v3502 = vperm.slane %v3500, 0
        %v3512 = vunpack.c.l.b16 %v3492
        %v3513 = vunpack.c.l.b16 %v3493
        %v3514 = vunpack.c.l.b16 %v3494
        %v3515 = vunpack.c.l.b16 %v3495
        %v3516 = vunpack.c.l.b16 %v3496
        %v3517 = vunpack.c.l.b16 %v3497
        %v3518 = vunpack.c.l.b16 %v3498
        %v3519 = vunpack.c.l.b16 %v3499
        %v3520 = vsel %vm1652, %v3513, %v3512
        %v3521 = vsel %vm1654, %v3514, %v3520
        %v3522 = vsel %vm1656, %v3515, %v3521
        %v3523 = vsel %vm1658, %v3516, %v3522
        %v3524 = vsel %vm1660, %v3517, %v3523
        %v3525 = vsel %vm1662, %v3518, %v3524
        %v3526 = vsel %vm1664, %v3519, %v3525
        %v3527 = vpack.c.b16 %v3526, %v3526
        %v3532 = vunpack.c.l.b16 %v3488
        %v3533 = vunpack.c.l.b16 %v3489
        %v3534 = vunpack.c.l.b16 %v3490
        %v3535 = vunpack.c.l.b16 %v3491
        %v3536 = vpack.c.b16 %v3533, %v3532
        %v3537 = vpack.c.b16 %v3535, %v3534
        %v3541 = vsel %vm1425, %v3527, 0
        %3543 = vmatpush.bf16.msra.mxu0 0
        %3544 = vmatpush.bf16.msra.mxu0 0
        %3545 = vmatpush.bf16.msra.mxu0 0
        %3546 = vmatpush.bf16.msra.mxu0 0
        %3547 = vmatpush.bf16.msra.mxu0 0
        %3548 = vmatpush.bf16.msra.mxu0 0
        %3549 = vmatpush.bf16.msra.mxu0 %v3537
        %3550 = vmatpush.bf16.msra.mxu0 %v3536
        %3551 = vmatmul.bf16.gmra.mxu0 %v3541
        %v3552 = vpop.f32.mrf.mxu0
        %v3553 = vadd.f32 %v3502, %v3552
        %v3554 = vpop.f32.mrf.mxu0
        %3555 = vdwg.mxu0
        %v3556 = vmul.f32 %v3553, %v3553
        %v3557 = vmul.f32 %v3553, %v3556
        %v3558 = vmul.f32 %v3557, 0.044715
        %v3559 = vadd.f32 %v3553, %v3558
        %v3560 = vmul.f32 %v3559, 0.7978846
        %v3561 = vtanh.pop %v3560
        %v3562 = vadd.f32 %v3561, 1.0
        %v3563 = vmul.f32 %v3562, 0.5
        %v3564 = vmul.f32 %v3553, %v3563
        %v3565 = vadd.f32 %v1118, %v3564
        %v3566 = vld [vmem:[%s49] sm:$0xf]
        %v3567 = vld [vmem:[%s49 + $0x4] sm:$0xf]
        %v3568 = vld [vmem:[%s49 + $0x8] sm:$0xf]
        %v3569 = vld [vmem:[%s49 + $0xc] sm:$0xf]
        %v3570 = vld [vmem:[%s51] sm:$0x1]
        %v3571 = vpack.c.bf16 %v3565, %v3565
        %v3573 = vperm.slane %v3570, 0
        %v3579 = vunpack.c.l.b16 %v3566
        %v3580 = vunpack.c.l.b16 %v3567
        %v3581 = vunpack.c.l.b16 %v3568
        %v3582 = vunpack.c.l.b16 %v3569
        %v3583 = vpack.c.b16 %v3580, %v3579
        %v3584 = vpack.c.b16 %v3582, %v3581
        %v3588 = vsel %vm1425, %v3571, 0
        %3590 = vmatpush.bf16.msra.mxu0 0
        %3591 = vmatpush.bf16.msra.mxu0 0
        %3592 = vmatpush.bf16.msra.mxu0 0
        %3593 = vmatpush.bf16.msra.mxu0 0
        %3594 = vmatpush.bf16.msra.mxu0 0
        %3595 = vmatpush.bf16.msra.mxu0 0
        %3596 = vmatpush.bf16.msra.mxu0 %v3584
        %3597 = vmatpush.bf16.msra.mxu0 %v3583
        %3598 = vmatmul.bf16.gmra.mxu0 %v3588
        %v3599 = vpop.f32.mrf.mxu0
        %v3600 = vadd.f32 %v3573, %v3599
        %v3601 = vpop.f32.mrf.mxu0
        %3602 = vdwg.mxu0
        %v3603 = vmul.f32 %v3600, %v3600
        %v3604 = vmul.f32 %v3600, %v3603
        %v3605 = vmul.f32 %v3604, 0.044715
        %v3606 = vadd.f32 %v3600, %v3605
        %v3607 = vmul.f32 %v3606, 0.7978846
        %v3608 = vtanh.pop %v3607
        %v3609 = vadd.f32 %v3608, 1.0
        %v3610 = vmul.f32 %v3609, 0.5
        %v3611 = vmul.f32 %v3600, %v3610
        %v3612 = vpack.c.bf16 %v3611, %v3611
        %v3614 = vsel %vm1425, %v3612, 0
        %3616 = vmatpush.bf16.msra.mxu0 0
        %3617 = vmatpush.bf16.msra.mxu0 0
        %3618 = vmatpush.bf16.msra.mxu0 0
        %3619 = vmatpush.bf16.msra.mxu0 0
        %3620 = vmatpush.bf16.msra.mxu0 0
        %3621 = vmatpush.bf16.msra.mxu0 0
        %3622 = vmatpush.bf16.msra.mxu0 %v3584
        %3623 = vmatpush.bf16.msra.mxu0 %v3583
        %3624 = vmatmul.bf16.gmra.mxu0 %v3614
        %v3625 = vpop.f32.mrf.mxu0
        %v3626 = vadd.f32 %v3573, %v3625
        %v3627 = vpop.f32.mrf.mxu0
        %3628 = vdwg.mxu0
        %v3629 = vmul.f32 %v3626, %v3626
        %v3630 = vmul.f32 %v3626, %v3629
        %v3631 = vmul.f32 %v3630, 0.044715
        %v3632 = vadd.f32 %v3626, %v3631
        %v3633 = vmul.f32 %v3632, 0.7978846
        %v3634 = vtanh.pop %v3633
        %v3635 = vadd.f32 %v3634, 1.0
        %v3636 = vmul.f32 %v3635, 0.5
        %v3637 = vmul.f32 %v3626, %v3636
        %v3638 = vsel %vm1425, %v3637, -inf
        %v3639 = vrot.slane %v3638, 4
        %v3640 = vmax.f32 %v3638, %v3639
        %v3641 = vrot.slane %v3640, 2
        %v3642 = vmax.f32 %v3640, %v3641
        %v3643 = vrot.slane %v3642, 1
        %v3644 = vmax.f32 %v3642, %v3643
        %v3645 = vld [vmem:[%s53] sm:$0xf]
        %v3646 = vld [vmem:[%s53 + $0x4] sm:$0xf]
        %v3647 = vld [vmem:[%s53 + $0x8] sm:$0xf]
        %v3648 = vld [vmem:[%s53 + $0xc] sm:$0xf]
        %v3649 = vpack.c.bf16 %v3644, %v3644
        %v3650 = vld [vmem:[%s55] sm:$0x1]
        %v3655 = vunpack.c.l.b16 %v3645
        %v3656 = vunpack.c.l.b16 %v3646
        %v3657 = vunpack.c.l.b16 %v3647
        %v3658 = vunpack.c.l.b16 %v3648
        %v3659 = vpack.c.b16 %v3656, %v3655
        %v3660 = vpack.c.b16 %v3658, %v3657
        %v3664 = vsel %vm1425, %v3649, 0
        %3666 = vmatpush.bf16.msra.mxu0 0
        %3667 = vmatpush.bf16.msra.mxu0 0
        %3668 = vmatpush.bf16.msra.mxu0 0
        %3669 = vmatpush.bf16.msra.mxu0 0
        %3670 = vmatpush.bf16.msra.mxu0 0
        %3671 = vmatpush.bf16.msra.mxu0 0
        %3672 = vmatpush.bf16.msra.mxu0 %v3660
        %3673 = vmatpush.bf16.msra.mxu0 %v3659
        %3674 = vmatmul.bf16.gmra.mxu0 %v3664
        %v3675 = vpop.f32.mrf.mxu0
        %v3676 = vadd.f32 %v3650, %v3675
        %v3677 = vpop.f32.mrf.mxu0
        %3678 = vdwg.mxu0
        %v3679 = vmul.f32 %v3676, %v3676
        %v3680 = vmul.f32 %v3676, %v3679
        %v3681 = vmul.f32 %v3680, 0.044715
        %v3682 = vadd.f32 %v3676, %v3681
        %v3683 = vmul.f32 %v3682, 0.7978846
        %v3684 = vtanh.pop %v3683
        %v3685 = vadd.f32 %v3684, 1.0
        %v3686 = vmul.f32 %v3685, 0.5
        %v3687 = vmul.f32 %v3676, %v3686
        %vm3688 = vcmask 253952
        %3689 = vst.msk [vmem:[%s949] sm:$0x1] %vm3688, %v3644
        %vm3690 = vcmask 65536
        %3691 = vst.msk [vmem:[%s943] sm:$0x1] %vm3690, %v3687
        %s3692 = sand.u32 %s693, 1
        %s3693 = scalar_lea.sflag [#allocation3], %s3692
        %s3694 = sand.u32 %s693, 1
        %s3695 = scalar_lea.vmem [#allocation2], %s3694
        %s3696 = sand.u32 %s719, 1
        %s3697 = scalar_lea.sflag [#allocation5], %s3696
        %s3698 = sand.u32 %s719, 1
        %s3699 = scalar_lea.vmem [#allocation4], %s3698
        // Predicated region
        $region133: #{tpu_custom_call.1} parent=131 // pred_check
          %p3700 = pneg %p703
        $region134: #{tpu_custom_call.1} parent=131 // pred_check_branch
          %3702 = sbr.rel (%p3700) target = $region136
        $region135: #{tpu_custom_call.1} parent=131 // pred_region
          %3704 = vsyncadd %s3693, 0
          %s3705 = scalar_lea.hbm %s57, %s77
          %s3707 = sshll.u32 %s3695, 4
          %s3708 = int_to_ptr.vmem [resolvable:$true] %s3707
          %s3709 = sshll.u32 %s3705, 4
          %s3710 = int_to_ptr.hbm [resolvable:$true] %s3709
          %3712 = dma.vmem_to_hbm [thread:$0]  %s3708, 16, %s3710, %s3693
        $region136: #{tpu_custom_call.1} parent=131 // pred_fallthru
          _
        // Predicated region
        $region137: #{tpu_custom_call.1} parent=131 // pred_check
          %p3713 = pneg %p729
        $region138: #{tpu_custom_call.1} parent=131 // pred_check_branch
          %3715 = sbr.rel (%p3713) target = $region140
        $region139: #{tpu_custom_call.1} parent=131 // pred_region
          %3717 = vsyncadd %s3697, 0
          %s3718 = scalar_lea.hbm %s59, %s77
          %s3720 = sshll.u32 %s3699, 4
          %s3721 = int_to_ptr.vmem [resolvable:$true] %s3720
          %s3722 = sshll.u32 %s3718, 4
          %s3723 = int_to_ptr.hbm [resolvable:$true] %s3722
          %3725 = dma.vmem_to_hbm [thread:$0]  %s3721, 16, %s3723, %s3697
        $region140: #{tpu_custom_call.1} parent=131 // pred_fallthru
          _
      $region132: #{tpu_custom_call.1} parent=5 // pred_fallthru
        _
      %p3726 = scmp.le.s32.totalorder 2, %s72
      // Predicated region
      $region141: #{tpu_custom_call.1} parent=5 // pred_check
        %p3727 = pneg %p3726
      $region142: #{tpu_custom_call.1} parent=5 // pred_check_branch
        %3729 = sbr.rel (%p3727) target = $region144
      $region143: #{tpu_custom_call.1} parent=5 // pred_region
        %s3730 = ssub.s32 %s72, 2
        // Predicated region
        $region145: #{tpu_custom_call.1} parent=143 // pred_check
          %p3731 = pneg %p709
        $region146: #{tpu_custom_call.1} parent=143 // pred_check_branch
          %3733 = sbr.rel (%p3731) target = $region148
        $region147: #{tpu_custom_call.1} parent=143 // pred_region
          %s3734 = sand.u32 %s694, 1
          %s3735 = scalar_lea.sflag [#allocation3], %s3734
          %s3736 = sand.u32 %s694, 1
          %s3737 = scalar_lea.vmem [#allocation2], %s3736
          %3739 = dma.done %s3735, 16
        $region148: #{tpu_custom_call.1} parent=143 // pred_fallthru
          _
        // Predicated region
        $region149: #{tpu_custom_call.1} parent=143 // pred_check
          %p3740 = pneg %p735
        $region150: #{tpu_custom_call.1} parent=143 // pred_check_branch
          %3742 = sbr.rel (%p3740) target = $region152
        $region151: #{tpu_custom_call.1} parent=143 // pred_region
          %s3743 = sand.u32 %s720, 1
          %s3744 = scalar_lea.sflag [#allocation5], %s3743
          %s3745 = sand.u32 %s720, 1
          %s3746 = scalar_lea.vmem [#allocation4], %s3745
          %3748 = dma.done %s3744, 16
        $region152: #{tpu_custom_call.1} parent=143 // pred_fallthru
          _
      $region144: #{tpu_custom_call.1} parent=5 // pred_fallthru
        _
    $region6: #{tpu_custom_call.1} parent=1 // loop_footer
      %s76 = sadd.s32 1, %s72
    $region7: #{tpu_custom_call.1} parent=1 // loop_footer_branch
      %71 = sbr.rel target = $region3
    $region8: #{tpu_custom_call.1} parent=1 // loop_exit
      _
    %3749 = vsyncpa [#allocation3], 1
    %s3750 = scalar_lea.sflag [#allocation3], 1
    %3751 = vsyncpa %s3750, 1
    %3752 = vsyncpa [#allocation5], 1
    %s3753 = scalar_lea.sflag [#allocation5], 1
    %3754 = vsyncpa %s3753, 1

</llo_original>
